<compile_context>
chip_gen: v7x
topology: tpu7x:2x2x1
jax: 0.10.0
libtpu: 0.0.40
codegen_flags: <defaults>
</compile_context>

<pallas_src>
import jax
import jax.numpy as jnp
from jax import lax
from jax.experimental import pallas as pl
from jax.experimental.pallas import tpu as pltpu

LN_EPS = 1e-5


def _round_up(n, m):
    return ((n + m - 1) // m) * m


def _mish(y):
    # mish(y) = y * tanh(softplus(y)) == y * (t^2 + 2t) / (t^2 + 2t + 2), t = exp(y).
    # Clamp at 20 (torch softplus threshold); for y > 20 the ratio is exactly 1 in f32.
    t = jnp.exp(jnp.minimum(y, 20.0))
    u = t * (t + 2.0)
    return y * (u / (u + 2.0))


def _ln_affine_mish(y, gamma, beta):
    # Two-pass (mean-subtracted) LayerNorm statistics in f32 — matches the torch
    # reference and avoids E[y^2]-E[y]^2 cancellation at large H.
    mu = jnp.mean(y, axis=-1, keepdims=True)
    yc = y - mu
    var = jnp.mean(yc * yc, axis=-1, keepdims=True)
    yn = yc * lax.rsqrt(var + LN_EPS)
    return _mish(yn * gamma + beta)


def ensemble_mlp_kernel(x_ref, w1p_ref, w2_ref, w3p_ref, vecs_ref, b3p_ref,
                        out_ref, y1_ref):
    E, H, _ = w2_ref.shape
    Hs = y1_ref.shape[1] // E            # 128-lane-aligned per-member slab stride
    tb = x_ref.shape[0]
    out_pack = out_ref.shape[1]
    cdt = w1p_ref.dtype                  # matmul operand dtype (bf16 by default)

    # Layer 1: ensemble folded into the matmul N dimension -> one wide MXU op.
    # Result parked in VMEM scratch so the member loop reads lane-aligned slabs
    # (and y1 does not stay live in vregs across the whole member loop).
    xb = x_ref[...].astype(cdt)
    y1_ref[...] = jnp.dot(xb, w1p_ref[...], preferred_element_type=jnp.float32)

    def member(e, acc):
        start = pl.multiple_of(e * Hs, 128)          # aligned per-member slab start
        v = vecs_ref[e]                              # (6, H) f32: b1, g1, be1, b2, g2, be2
        y = y1_ref[:, pl.ds(start, H)] + v[0:1]
        h = _ln_affine_mish(y, v[1:2], v[2:3]).astype(cdt)
        y2 = jnp.dot(h, w2_ref[e], preferred_element_type=jnp.float32) + v[3:4]
        h2 = _ln_affine_mish(y2, v[4:5], v[5:6]).astype(cdt)
        # W3 is lane-packed: member e's out_dim columns occupy lanes
        # [e*out_dim, (e+1)*out_dim) of one (tb, out_pack) slab, so all members
        # accumulate into a single lane-dense output store per tile.
        return acc + jnp.dot(h2, w3p_ref[e], preferred_element_type=jnp.float32)

    acc0 = jnp.zeros((tb, out_pack), jnp.float32)
    out = lax.fori_loop(0, E, member, acc0, unroll=True)
    out_ref[...] = (out + b3p_ref[...]).astype(out_ref.dtype)


def pack_params(params, compute_dtype=jnp.bfloat16):
    """Pre-pack ensemble parameters for the kernel.  Call ONCE per parameter
    update (hoisted out of the per-forward path: TDMPC2 planning calls the
    Q-ensemble many times per env step with fixed params)."""
    E, in_dim, H = params["w1"].shape
    out_dim = params["w3"].shape[-1]
    Hs = _round_up(H, 128)                  # 128-lane-aligned per-member slab
    out_pack = _round_up(E * out_dim, 128)  # lane-packed output width

    # W1 -> (in_dim, E*Hs): member e occupies columns [e*Hs, e*Hs + H); the
    # zero-padded columns keep every per-member slab start 128-lane aligned.
    w1p = jnp.concatenate(
        [jnp.pad(params["w1"][e], ((0, 0), (0, Hs - H))) for e in range(E)],
        axis=1).astype(compute_dtype)

    w2 = params["w2"].astype(compute_dtype)

    # W3 / b3 lane-packed: member e's out_dim output columns live at lanes
    # [e*out_dim, (e+1)*out_dim) of one out_pack-wide slab (zeros elsewhere).
    w3p = jnp.zeros((E, H, out_pack), jnp.float32)
    b3p = jnp.zeros((1, out_pack), jnp.float32)
    for e in range(E):
        w3p = w3p.at[e, :, e * out_dim:(e + 1) * out_dim].set(params["w3"][e])
        b3p = b3p.at[0, e * out_dim:(e + 1) * out_dim].set(params["b3"][e])
    w3p = w3p.astype(compute_dtype)

    # Six per-member hidden-width vectors -> one (E, 6, H) array (one DMA), f32.
    vecs = jnp.stack([params["b1"], params["g1"], params["be1"],
                      params["b2"], params["g2"], params["be2"]], axis=1)

    return dict(w1p=w1p, w2=w2, w3p=w3p, vecs=vecs, b3p=b3p,
                E=E, in_dim=in_dim, H=H, Hs=Hs,
                out_dim=out_dim, out_pack=out_pack)


def _const_index_map(ndim):
    return lambda b: (0,) * ndim


def _const_spec(shape, single_buffer):
    index_map = _const_index_map(len(shape))
    if single_buffer:
        # Constant-index weight blocks: single-buffer to halve resident VMEM
        # (matters at real TDMPC2 sizes under v5e's 16 MiB / v7x's 32 MiB scoped VMEM).
        return pl.BlockSpec(shape, index_map, pipeline_mode=pl.Buffered(1))
    return pl.BlockSpec(shape, index_map)


def _build_call(B, tb, packed, single_buffer):
    E, in_dim, H = packed["E"], packed["in_dim"], packed["H"]
    Hs, out_pack = packed["Hs"], packed["out_pack"]
    nb = B // tb

    weight_bytes = sum(int(packed[k].size) * packed[k].dtype.itemsize
                       for k in ("w1p", "w2", "w3p", "vecs", "b3p"))
    io_bytes = 2 * tb * (in_dim + out_pack) * 4            # double-buffered x / out tiles
    scratch_bytes = tb * E * Hs * 4
    vmem_limit = int(min(64 << 20,
                         max(32 << 20,
                             (1 if single_buffer else 2) * weight_bytes
                             + io_bytes + scratch_bytes + (4 << 20))))

    cost = pl.CostEstimate(
        flops=2 * B * E * (in_dim * Hs + H * H + H * out_pack),
        transcendentals=2 * E * B * (H + 1),               # exp per mish + rsqrt per LN
        bytes_accessed=B * in_dim * 4 + weight_bytes + B * out_pack * 4)

    return pl.pallas_call(
        ensemble_mlp_kernel,
        out_shape=jax.ShapeDtypeStruct((B, out_pack), jnp.float32),
        grid=(nb,),
        in_specs=[
            pl.BlockSpec((tb, in_dim), lambda b: (b, 0)),   # x, shared across members
            _const_spec((in_dim, E * Hs), single_buffer),   # packed W1   (resident)
            _const_spec((E, H, H), single_buffer),          # W2          (resident)
            _const_spec((E, H, out_pack), single_buffer),   # lane-packed W3
            _const_spec((E, 6, H), single_buffer),          # b1,g1,be1,b2,g2,be2
            _const_spec((1, out_pack), single_buffer),      # lane-packed b3
        ],
        out_specs=pl.BlockSpec((tb, out_pack), lambda b: (b, 0)),
        scratch_shapes=[pltpu.VMEM((tb, E * Hs), jnp.float32)],
        compiler_params=pltpu.CompilerParams(
            dimension_semantics=("parallel",),   # batch tiles shard across TCs on v7x
            vmem_limit_bytes=vmem_limit),
        cost_estimate=cost,
    )


def _pick_tile_b(B, max_tb=512):
    """Largest row tile <= max_tb giving >=4 grid steps (software pipelining)
    with an even step count (v7x 2-TensorCore sharding); falls back to 1 tile."""
    best = B
    for tb in range(8, min(B, max_tb) + 1, 8):
        if B % tb == 0 and (B // tb) >= 4 and (B // tb) % 2 == 0:
            best = tb
    return best


def ensemble_forward(x, packed, *, tile_b=None):
    """x: [B, in_dim]; packed: output of pack_params(). Returns [E, B, out_dim]."""
    B, in_dim = x.shape
    assert in_dim == packed["in_dim"]
    E, out_dim = packed["E"], packed["out_dim"]

    tb = _pick_tile_b(B) if tile_b is None else tile_b
    assert B % tb == 0

    args = (x, packed["w1p"], packed["w2"], packed["w3p"],
            packed["vecs"], packed["b3p"])
    try:
        out_packed = _build_call(B, tb, packed, single_buffer=True)(*args)
    except Exception:
        # pl.Buffered(1) unsupported on this JAX/Mosaic build -> default
        # double-buffering (identical results, just more resident VMEM).
        out_packed = _build_call(B, tb, packed, single_buffer=False)(*args)

    # Unpack the lane-packed (B, out_pack) slab -> (E, B, out_dim).
    out = out_packed[:, :E * out_dim].reshape(B, E, out_dim)
    return jnp.transpose(out, (1, 0, 2))


def reference_forward(x, p):
    """Pure-JAX f32 reference matching torch.vmap(fn, in_dims=(0, 0, None)) semantics."""
    def member(w1, b1, g1, be1, w2, b2, g2, be2, w3, b3):
        def nl(h, w, b, g, beta):
            y = h @ w + b
            mu = y.mean(-1, keepdims=True)
            var = ((y - mu) ** 2).mean(-1, keepdims=True)
            y = (y - mu) / jnp.sqrt(var + LN_EPS)
            y = y * g + beta
            return y * jnp.tanh(jax.nn.softplus(y))
        h = nl(x, w1, b1, g1, be1)
        h = nl(h, w2, b2, g2, be2)
        return h @ w3 + b3
    return jax.vmap(member)(p["w1"], p["b1"], p["g1"], p["be1"],
                            p["w2"], p["b2"], p["g2"], p["be2"],
                            p["w3"], p["b3"])


def make_params(key, E, in_dim, hidden, out_dim):
    """Deterministic synthetic init (uniform +/- 1/sqrt(fan_in), nn.Linear defaults)."""
    ks = jax.random.split(key, 6)
    def u(k, shape, fan_in):
        bound = 1.0 / jnp.sqrt(fan_in)
        return jax.random.uniform(k, shape, jnp.float32, -bound, bound)
    return {
        "w1": u(ks[0], (E, in_dim, hidden), in_dim),
        "b1": u(ks[1], (E, hidden), in_dim),
        "g1": jnp.ones((E, hidden), jnp.float32),    # LayerNorm gamma default
        "be1": jnp.zeros((E, hidden), jnp.float32),  # LayerNorm beta default
        "w2": u(ks[2], (E, hidden, hidden), hidden),
        "b2": u(ks[3], (E, hidden), hidden),
        "g2": jnp.ones((E, hidden), jnp.float32),
        "be2": jnp.zeros((E, hidden), jnp.float32),
        "w3": u(ks[4], (E, hidden, out_dim), hidden),
        "b3": u(ks[5], (E, out_dim), hidden),
    }
    # TODO(synk): dropout in the first NormedLinear is train-mode only (randomness='different');
    # eval-mode identity is implemented here.


if __name__ == "__main__":
    key = jax.random.PRNGKey(0)
    E, B, in_dim, hidden, out_dim = 3, 256, 32, 64, 8

    kx, kp = jax.random.split(key)
    x = jax.random.normal(kx, (B, in_dim), jnp.float32)
    params = make_params(kp, E, in_dim, hidden, out_dim)

    packed = pack_params(params)           # hoisted: done once per parameter update
    out = ensemble_forward(x, packed)      # tb=64 -> grid=(4,), pipelined batch tiles
    out = jax.block_until_ready(out)

    ref = reference_forward(x, params)
    assert out.shape == (E, B, out_dim)
    max_err = float(jnp.max(jnp.abs(out - ref)))
    rel_err = float(jnp.linalg.norm(out - ref) / jnp.linalg.norm(ref))
    # bf16 matmul operands (f32 accumulation / LN / mish) vs. f32 reference.
    assert max_err < 1e-1 and rel_err < 4e-2, (max_err, rel_err)
    print("KERNEL_OK")
</pallas_src>

<mosaic_0001>
module attributes {stable_mosaic.version = 11 : i64} {
  func.func @ensemble_mlp_kernel(%arg0: i32, %arg1: memref<64x32xf32, #tpu.memory_space<vmem>>, %arg2: memref<32x384xbf16, #tpu.memory_space<vmem>>, %arg3: memref<3x64x64xbf16, #tpu.memory_space<vmem>>, %arg4: memref<3x64x128xbf16, #tpu.memory_space<vmem>>, %arg5: memref<3x6x64xf32, #tpu.memory_space<vmem>>, %arg6: memref<1x128xf32, #tpu.memory_space<vmem>>, %arg7: memref<64x128xf32, #tpu.memory_space<vmem>>, %arg8: memref<64x384xf32, #tpu.memory_space<vmem>>) attributes {dimension_semantics = [#tpu.dimension_semantics<parallel>], iteration_bounds = array<i64: 4>, scalar_prefetch = 0 : i64, scratch_operands = 1 : i64, tpu.core_type = #tpu.core_type<tc>, window_params = [{transform_indices = @transform_0, window_bounds = array<i64: 64, 32>}, {pipeline_mode = #tpu.pipeline_mode<synchronous>, transform_indices = @transform_1, window_bounds = array<i64: 32, 384>}, {pipeline_mode = #tpu.pipeline_mode<synchronous>, transform_indices = @transform_2, window_bounds = array<i64: 3, 64, 64>}, {pipeline_mode = #tpu.pipeline_mode<synchronous>, transform_indices = @transform_3, window_bounds = array<i64: 3, 64, 128>}, {pipeline_mode = #tpu.pipeline_mode<synchronous>, transform_indices = @transform_4, window_bounds = array<i64: 3, 6, 64>}, {pipeline_mode = #tpu.pipeline_mode<synchronous>, transform_indices = @transform_5, window_bounds = array<i64: 1, 128>}, {transform_indices = @transform_6, window_bounds = array<i64: 64, 128>}]} {
    %c0 = arith.constant 0 : index
    %c0_0 = arith.constant 0 : index
    %0 = vector.load %arg1[%c0, %c0_0] : memref<64x32xf32, #tpu.memory_space<vmem>>, vector<64x32xf32>
    %1 = arith.truncf %0 : vector<64x32xf32> to vector<64x32xbf16>
    %c0_1 = arith.constant 0 : index
    %c0_2 = arith.constant 0 : index
    %2 = vector.load %arg2[%c0_1, %c0_2] : memref<32x384xbf16, #tpu.memory_space<vmem>>, vector<32x384xbf16>
    %cst = arith.constant dense<0.000000e+00> : vector<64x384xf32>
    %3 = tpu.matmul %1, %2, %cst {dimension_numbers = #tpu.dot_dimension_numbers<[1], [0], [0], [1], [0, 0, 1, 1], [], []>} : vector<64x32xbf16>, vector<32x384xbf16>, vector<64x384xf32> -> vector<64x384xf32>
    %c0_3 = arith.constant 0 : index
    %c0_4 = arith.constant 0 : index
    %4 = vector.load %arg8[%c0_3, %c0_4] : memref<64x384xf32, #tpu.memory_space<vmem>>, vector<64x384xf32>
    tpu.vector_store %arg8[%c0_3, %c0_4], %3 {strides = array<i32>} : memref<64x384xf32, #tpu.memory_space<vmem>>, vector<64x384xf32>,
    %cst_5 = arith.constant 0.000000e+00 : f32
    %5 = vector.broadcast %cst_5 : f32 to vector<64x128xf32>
    %c0_i32 = arith.constant 0 : i32
    %c128_i32 = arith.constant 128 : i32
    %6 = arith.muli %c0_i32, %c128_i32 : i32
    %7 = tpu.assume_multiple %6, 128 : i32
    %8 = arith.index_cast %c0_i32 : i32 to index
    %c0_6 = arith.constant 0 : index
    %c0_7 = arith.constant 0 : index
    %9 = vector.load %arg5[%8, %c0_6, %c0_7] : memref<3x6x64xf32, #tpu.memory_space<vmem>>, vector<1x6x64xf32>
    %10 = vector.shape_cast %9 : vector<1x6x64xf32> to vector<6x64xf32>
    %c0_8 = arith.constant 0 : index
    %11 = arith.index_cast %7 : i32 to index
    %12 = vector.load %arg8[%c0_8, %11] : memref<64x384xf32, #tpu.memory_space<vmem>>, vector<64x64xf32>
    %13 = vector.extract_strided_slice %10 {offsets = [0, 0], sizes = [1, 64], strides = [1, 1]} : vector<6x64xf32> to vector<1x64xf32>
    %14 = vector.broadcast %13 : vector<1x64xf32> to vector<64x64xf32>
    %15 = arith.addf %12, %14 : vector<64x64xf32>
    %16 = vector.extract_strided_slice %10 {offsets = [1, 0], sizes = [1, 64], strides = [1, 1]} : vector<6x64xf32> to vector<1x64xf32>
    %17 = vector.extract_strided_slice %10 {offsets = [2, 0], sizes = [1, 64], strides = [1, 1]} : vector<6x64xf32> to vector<1x64xf32>
    %cst_9 = arith.constant dense<0.000000e+00> : vector<64xf32>
    %18 = vector.multi_reduction <add>, %15, %cst_9 [1] : vector<64x64xf32> to vector<64xf32>
    %19 = vector.shape_cast %18 : vector<64xf32> to vector<64x1xf32>
    %cst_10 = arith.constant 6.400000e+01 : f32
    %20 = vector.broadcast %cst_10 : f32 to vector<64x1xf32>
    %21 = arith.divf %19, %20 : vector<64x1xf32>
    %22 = vector.broadcast %21 : vector<64x1xf32> to vector<64x64xf32>
    %23 = arith.subf %15, %22 : vector<64x64xf32>
    %24 = arith.mulf %23, %23 : vector<64x64xf32>
    %cst_11 = arith.constant dense<0.000000e+00> : vector<64xf32>
    %25 = vector.multi_reduction <add>, %24, %cst_11 [1] : vector<64x64xf32> to vector<64xf32>
    %26 = vector.shape_cast %25 : vector<64xf32> to vector<64x1xf32>
    %cst_12 = arith.constant 6.400000e+01 : f32
    %27 = vector.broadcast %cst_12 : f32 to vector<64x1xf32>
    %28 = arith.divf %26, %27 : vector<64x1xf32>
    %cst_13 = arith.constant 9.99999974E-6 : f32
    %29 = vector.broadcast %cst_13 : f32 to vector<64x1xf32>
    %30 = arith.addf %28, %29 : vector<64x1xf32>
    %31 = math.rsqrt %30 : vector<64x1xf32>
    %32 = vector.broadcast %31 : vector<64x1xf32> to vector<64x64xf32>
    %33 = arith.mulf %23, %32 : vector<64x64xf32>
    %34 = vector.broadcast %16 : vector<1x64xf32> to vector<64x64xf32>
    %35 = arith.mulf %33, %34 : vector<64x64xf32>
    %36 = vector.broadcast %17 : vector<1x64xf32> to vector<64x64xf32>
    %37 = arith.addf %35, %36 : vector<64x64xf32>
    %cst_14 = arith.constant 2.000000e+01 : f32
    %38 = vector.broadcast %cst_14 : f32 to vector<64x64xf32>
    %39 = arith.minimumf %37, %38 : vector<64x64xf32>
    %40 = math.exp %39 : vector<64x64xf32>
    %cst_15 = arith.constant 2.000000e+00 : f32
    %41 = vector.broadcast %cst_15 : f32 to vector<64x64xf32>
    %42 = arith.addf %40, %41 : vector<64x64xf32>
    %43 = arith.mulf %40, %42 : vector<64x64xf32>
    %cst_16 = arith.constant 2.000000e+00 : f32
    %44 = vector.broadcast %cst_16 : f32 to vector<64x64xf32>
    %45 = arith.addf %43, %44 : vector<64x64xf32>
    %46 = arith.divf %43, %45 : vector<64x64xf32>
    %47 = arith.mulf %37, %46 : vector<64x64xf32>
    %48 = arith.truncf %47 : vector<64x64xf32> to vector<64x64xbf16>
    %49 = arith.index_cast %c0_i32 : i32 to index
    %c0_17 = arith.constant 0 : index
    %c0_18 = arith.constant 0 : index
    %50 = vector.load %arg3[%49, %c0_17, %c0_18] : memref<3x64x64xbf16, #tpu.memory_space<vmem>>, vector<1x64x64xbf16>
    %51 = vector.shape_cast %50 : vector<1x64x64xbf16> to vector<64x64xbf16>
    %cst_19 = arith.constant dense<0.000000e+00> : vector<64x64xf32>
    %52 = tpu.matmul %48, %51, %cst_19 {dimension_numbers = #tpu.dot_dimension_numbers<[1], [0], [0], [1], [0, 0, 1, 1], [], []>} : vector<64x64xbf16>, vector<64x64xbf16>, vector<64x64xf32> -> vector<64x64xf32>
    %53 = vector.extract_strided_slice %10 {offsets = [3, 0], sizes = [1, 64], strides = [1, 1]} : vector<6x64xf32> to vector<1x64xf32>
    %54 = vector.broadcast %53 : vector<1x64xf32> to vector<64x64xf32>
    %55 = arith.addf %52, %54 : vector<64x64xf32>
    %56 = vector.extract_strided_slice %10 {offsets = [4, 0], sizes = [1, 64], strides = [1, 1]} : vector<6x64xf32> to vector<1x64xf32>
    %57 = vector.extract_strided_slice %10 {offsets = [5, 0], sizes = [1, 64], strides = [1, 1]} : vector<6x64xf32> to vector<1x64xf32>
    %cst_20 = arith.constant dense<0.000000e+00> : vector<64xf32>
    %58 = vector.multi_reduction <add>, %55, %cst_20 [1] : vector<64x64xf32> to vector<64xf32>
    %59 = vector.shape_cast %58 : vector<64xf32> to vector<64x1xf32>
    %cst_21 = arith.constant 6.400000e+01 : f32
    %60 = vector.broadcast %cst_21 : f32 to vector<64x1xf32>
    %61 = arith.divf %59, %60 : vector<64x1xf32>
    %62 = vector.broadcast %61 : vector<64x1xf32> to vector<64x64xf32>
    %63 = arith.subf %55, %62 : vector<64x64xf32>
    %64 = arith.mulf %63, %63 : vector<64x64xf32>
    %cst_22 = arith.constant dense<0.000000e+00> : vector<64xf32>
    %65 = vector.multi_reduction <add>, %64, %cst_22 [1] : vector<64x64xf32> to vector<64xf32>
    %66 = vector.shape_cast %65 : vector<64xf32> to vector<64x1xf32>
    %cst_23 = arith.constant 6.400000e+01 : f32
    %67 = vector.broadcast %cst_23 : f32 to vector<64x1xf32>
    %68 = arith.divf %66, %67 : vector<64x1xf32>
    %cst_24 = arith.constant 9.99999974E-6 : f32
    %69 = vector.broadcast %cst_24 : f32 to vector<64x1xf32>
    %70 = arith.addf %68, %69 : vector<64x1xf32>
    %71 = math.rsqrt %70 : vector<64x1xf32>
    %72 = vector.broadcast %71 : vector<64x1xf32> to vector<64x64xf32>
    %73 = arith.mulf %63, %72 : vector<64x64xf32>
    %74 = vector.broadcast %56 : vector<1x64xf32> to vector<64x64xf32>
    %75 = arith.mulf %73, %74 : vector<64x64xf32>
    %76 = vector.broadcast %57 : vector<1x64xf32> to vector<64x64xf32>
    %77 = arith.addf %75, %76 : vector<64x64xf32>
    %cst_25 = arith.constant 2.000000e+01 : f32
    %78 = vector.broadcast %cst_25 : f32 to vector<64x64xf32>
    %79 = arith.minimumf %77, %78 : vector<64x64xf32>
    %80 = math.exp %79 : vector<64x64xf32>
    %cst_26 = arith.constant 2.000000e+00 : f32
    %81 = vector.broadcast %cst_26 : f32 to vector<64x64xf32>
    %82 = arith.addf %80, %81 : vector<64x64xf32>
    %83 = arith.mulf %80, %82 : vector<64x64xf32>
    %cst_27 = arith.constant 2.000000e+00 : f32
    %84 = vector.broadcast %cst_27 : f32 to vector<64x64xf32>
    %85 = arith.addf %83, %84 : vector<64x64xf32>
    %86 = arith.divf %83, %85 : vector<64x64xf32>
    %87 = arith.mulf %77, %86 : vector<64x64xf32>
    %88 = arith.truncf %87 : vector<64x64xf32> to vector<64x64xbf16>
    %89 = arith.index_cast %c0_i32 : i32 to index
    %c0_28 = arith.constant 0 : index
    %c0_29 = arith.constant 0 : index
    %90 = vector.load %arg4[%89, %c0_28, %c0_29] : memref<3x64x128xbf16, #tpu.memory_space<vmem>>, vector<1x64x128xbf16>
    %91 = vector.shape_cast %90 : vector<1x64x128xbf16> to vector<64x128xbf16>
    %cst_30 = arith.constant dense<0.000000e+00> : vector<64x128xf32>
    %92 = tpu.matmul %88, %91, %cst_30 {dimension_numbers = #tpu.dot_dimension_numbers<[1], [0], [0], [1], [0, 0, 1, 1], [], []>} : vector<64x64xbf16>, vector<64x128xbf16>, vector<64x128xf32> -> vector<64x128xf32>
    %93 = arith.addf %5, %92 : vector<64x128xf32>
    %c1_i32 = arith.constant 1 : i32
    %c128_i32_31 = arith.constant 128 : i32
    %94 = arith.muli %c1_i32, %c128_i32_31 : i32
    %95 = tpu.assume_multiple %94, 128 : i32
    %96 = arith.index_cast %c1_i32 : i32 to index
    %c0_32 = arith.constant 0 : index
    %c0_33 = arith.constant 0 : index
    %97 = vector.load %arg5[%96, %c0_32, %c0_33] : memref<3x6x64xf32, #tpu.memory_space<vmem>>, vector<1x6x64xf32>
    %98 = vector.shape_cast %97 : vector<1x6x64xf32> to vector<6x64xf32>
    %c0_34 = arith.constant 0 : index
    %99 = arith.index_cast %95 : i32 to index
    %100 = vector.load %arg8[%c0_34, %99] : memref<64x384xf32, #tpu.memory_space<vmem>>, vector<64x64xf32>
    %101 = vector.extract_strided_slice %98 {offsets = [0, 0], sizes = [1, 64], strides = [1, 1]} : vector<6x64xf32> to vector<1x64xf32>
    %102 = vector.broadcast %101 : vector<1x64xf32> to vector<64x64xf32>
    %103 = arith.addf %100, %102 : vector<64x64xf32>
    %104 = vector.extract_strided_slice %98 {offsets = [1, 0], sizes = [1, 64], strides = [1, 1]} : vector<6x64xf32> to vector<1x64xf32>
    %105 = vector.extract_strided_slice %98 {offsets = [2, 0], sizes = [1, 64], strides = [1, 1]} : vector<6x64xf32> to vector<1x64xf32>
    %cst_35 = arith.constant dense<0.000000e+00> : vector<64xf32>
    %106 = vector.multi_reduction <add>, %103, %cst_35 [1] : vector<64x64xf32> to vector<64xf32>
    %107 = vector.shape_cast %106 : vector<64xf32> to vector<64x1xf32>
    %cst_36 = arith.constant 6.400000e+01 : f32
    %108 = vector.broadcast %cst_36 : f32 to vector<64x1xf32>
    %109 = arith.divf %107, %108 : vector<64x1xf32>
    %110 = vector.broadcast %109 : vector<64x1xf32> to vector<64x64xf32>
    %111 = arith.subf %103, %110 : vector<64x64xf32>
    %112 = arith.mulf %111, %111 : vector<64x64xf32>
    %cst_37 = arith.constant dense<0.000000e+00> : vector<64xf32>
    %113 = vector.multi_reduction <add>, %112, %cst_37 [1] : vector<64x64xf32> to vector<64xf32>
    %114 = vector.shape_cast %113 : vector<64xf32> to vector<64x1xf32>
    %cst_38 = arith.constant 6.400000e+01 : f32
    %115 = vector.broadcast %cst_38 : f32 to vector<64x1xf32>
    %116 = arith.divf %114, %115 : vector<64x1xf32>
    %cst_39 = arith.constant 9.99999974E-6 : f32
    %117 = vector.broadcast %cst_39 : f32 to vector<64x1xf32>
    %118 = arith.addf %116, %117 : vector<64x1xf32>
    %119 = math.rsqrt %118 : vector<64x1xf32>
    %120 = vector.broadcast %119 : vector<64x1xf32> to vector<64x64xf32>
    %121 = arith.mulf %111, %120 : vector<64x64xf32>
    %122 = vector.broadcast %104 : vector<1x64xf32> to vector<64x64xf32>
    %123 = arith.mulf %121, %122 : vector<64x64xf32>
    %124 = vector.broadcast %105 : vector<1x64xf32> to vector<64x64xf32>
    %125 = arith.addf %123, %124 : vector<64x64xf32>
    %cst_40 = arith.constant 2.000000e+01 : f32
    %126 = vector.broadcast %cst_40 : f32 to vector<64x64xf32>
    %127 = arith.minimumf %125, %126 : vector<64x64xf32>
    %128 = math.exp %127 : vector<64x64xf32>
    %cst_41 = arith.constant 2.000000e+00 : f32
    %129 = vector.broadcast %cst_41 : f32 to vector<64x64xf32>
    %130 = arith.addf %128, %129 : vector<64x64xf32>
    %131 = arith.mulf %128, %130 : vector<64x64xf32>
    %cst_42 = arith.constant 2.000000e+00 : f32
    %132 = vector.broadcast %cst_42 : f32 to vector<64x64xf32>
    %133 = arith.addf %131, %132 : vector<64x64xf32>
    %134 = arith.divf %131, %133 : vector<64x64xf32>
    %135 = arith.mulf %125, %134 : vector<64x64xf32>
    %136 = arith.truncf %135 : vector<64x64xf32> to vector<64x64xbf16>
    %137 = arith.index_cast %c1_i32 : i32 to index
    %c0_43 = arith.constant 0 : index
    %c0_44 = arith.constant 0 : index
    %138 = vector.load %arg3[%137, %c0_43, %c0_44] : memref<3x64x64xbf16, #tpu.memory_space<vmem>>, vector<1x64x64xbf16>
    %139 = vector.shape_cast %138 : vector<1x64x64xbf16> to vector<64x64xbf16>
    %cst_45 = arith.constant dense<0.000000e+00> : vector<64x64xf32>
    %140 = tpu.matmul %136, %139, %cst_45 {dimension_numbers = #tpu.dot_dimension_numbers<[1], [0], [0], [1], [0, 0, 1, 1], [], []>} : vector<64x64xbf16>, vector<64x64xbf16>, vector<64x64xf32> -> vector<64x64xf32>
    %141 = vector.extract_strided_slice %98 {offsets = [3, 0], sizes = [1, 64], strides = [1, 1]} : vector<6x64xf32> to vector<1x64xf32>
    %142 = vector.broadcast %141 : vector<1x64xf32> to vector<64x64xf32>
    %143 = arith.addf %140, %142 : vector<64x64xf32>
    %144 = vector.extract_strided_slice %98 {offsets = [4, 0], sizes = [1, 64], strides = [1, 1]} : vector<6x64xf32> to vector<1x64xf32>
    %145 = vector.extract_strided_slice %98 {offsets = [5, 0], sizes = [1, 64], strides = [1, 1]} : vector<6x64xf32> to vector<1x64xf32>
    %cst_46 = arith.constant dense<0.000000e+00> : vector<64xf32>
    %146 = vector.multi_reduction <add>, %143, %cst_46 [1] : vector<64x64xf32> to vector<64xf32>
    %147 = vector.shape_cast %146 : vector<64xf32> to vector<64x1xf32>
    %cst_47 = arith.constant 6.400000e+01 : f32
    %148 = vector.broadcast %cst_47 : f32 to vector<64x1xf32>
    %149 = arith.divf %147, %148 : vector<64x1xf32>
    %150 = vector.broadcast %149 : vector<64x1xf32> to vector<64x64xf32>
    %151 = arith.subf %143, %150 : vector<64x64xf32>
    %152 = arith.mulf %151, %151 : vector<64x64xf32>
    %cst_48 = arith.constant dense<0.000000e+00> : vector<64xf32>
    %153 = vector.multi_reduction <add>, %152, %cst_48 [1] : vector<64x64xf32> to vector<64xf32>
    %154 = vector.shape_cast %153 : vector<64xf32> to vector<64x1xf32>
    %cst_49 = arith.constant 6.400000e+01 : f32
    %155 = vector.broadcast %cst_49 : f32 to vector<64x1xf32>
    %156 = arith.divf %154, %155 : vector<64x1xf32>
    %cst_50 = arith.constant 9.99999974E-6 : f32
    %157 = vector.broadcast %cst_50 : f32 to vector<64x1xf32>
    %158 = arith.addf %156, %157 : vector<64x1xf32>
    %159 = math.rsqrt %158 : vector<64x1xf32>
    %160 = vector.broadcast %159 : vector<64x1xf32> to vector<64x64xf32>
    %161 = arith.mulf %151, %160 : vector<64x64xf32>
    %162 = vector.broadcast %144 : vector<1x64xf32> to vector<64x64xf32>
    %163 = arith.mulf %161, %162 : vector<64x64xf32>
    %164 = vector.broadcast %145 : vector<1x64xf32> to vector<64x64xf32>
    %165 = arith.addf %163, %164 : vector<64x64xf32>
    %cst_51 = arith.constant 2.000000e+01 : f32
    %166 = vector.broadcast %cst_51 : f32 to vector<64x64xf32>
    %167 = arith.minimumf %165, %166 : vector<64x64xf32>
    %168 = math.exp %167 : vector<64x64xf32>
    %cst_52 = arith.constant 2.000000e+00 : f32
    %169 = vector.broadcast %cst_52 : f32 to vector<64x64xf32>
    %170 = arith.addf %168, %169 : vector<64x64xf32>
    %171 = arith.mulf %168, %170 : vector<64x64xf32>
    %cst_53 = arith.constant 2.000000e+00 : f32
    %172 = vector.broadcast %cst_53 : f32 to vector<64x64xf32>
    %173 = arith.addf %171, %172 : vector<64x64xf32>
    %174 = arith.divf %171, %173 : vector<64x64xf32>
    %175 = arith.mulf %165, %174 : vector<64x64xf32>
    %176 = arith.truncf %175 : vector<64x64xf32> to vector<64x64xbf16>
    %177 = arith.index_cast %c1_i32 : i32 to index
    %c0_54 = arith.constant 0 : index
    %c0_55 = arith.constant 0 : index
    %178 = vector.load %arg4[%177, %c0_54, %c0_55] : memref<3x64x128xbf16, #tpu.memory_space<vmem>>, vector<1x64x128xbf16>
    %179 = vector.shape_cast %178 : vector<1x64x128xbf16> to vector<64x128xbf16>
    %cst_56 = arith.constant dense<0.000000e+00> : vector<64x128xf32>
    %180 = tpu.matmul %176, %179, %cst_56 {dimension_numbers = #tpu.dot_dimension_numbers<[1], [0], [0], [1], [0, 0, 1, 1], [], []>} : vector<64x64xbf16>, vector<64x128xbf16>, vector<64x128xf32> -> vector<64x128xf32>
    %181 = arith.addf %93, %180 : vector<64x128xf32>
    %c2_i32 = arith.constant 2 : i32
    %c128_i32_57 = arith.constant 128 : i32
    %182 = arith.muli %c2_i32, %c128_i32_57 : i32
    %183 = tpu.assume_multiple %182, 128 : i32
    %184 = arith.index_cast %c2_i32 : i32 to index
    %c0_58 = arith.constant 0 : index
    %c0_59 = arith.constant 0 : index
    %185 = vector.load %arg5[%184, %c0_58, %c0_59] : memref<3x6x64xf32, #tpu.memory_space<vmem>>, vector<1x6x64xf32>
    %186 = vector.shape_cast %185 : vector<1x6x64xf32> to vector<6x64xf32>
    %c0_60 = arith.constant 0 : index
    %187 = arith.index_cast %183 : i32 to index
    %188 = vector.load %arg8[%c0_60, %187] : memref<64x384xf32, #tpu.memory_space<vmem>>, vector<64x64xf32>
    %189 = vector.extract_strided_slice %186 {offsets = [0, 0], sizes = [1, 64], strides = [1, 1]} : vector<6x64xf32> to vector<1x64xf32>
    %190 = vector.broadcast %189 : vector<1x64xf32> to vector<64x64xf32>
    %191 = arith.addf %188, %190 : vector<64x64xf32>
    %192 = vector.extract_strided_slice %186 {offsets = [1, 0], sizes = [1, 64], strides = [1, 1]} : vector<6x64xf32> to vector<1x64xf32>
    %193 = vector.extract_strided_slice %186 {offsets = [2, 0], sizes = [1, 64], strides = [1, 1]} : vector<6x64xf32> to vector<1x64xf32>
    %cst_61 = arith.constant dense<0.000000e+00> : vector<64xf32>
    %194 = vector.multi_reduction <add>, %191, %cst_61 [1] : vector<64x64xf32> to vector<64xf32>
    %195 = vector.shape_cast %194 : vector<64xf32> to vector<64x1xf32>
    %cst_62 = arith.constant 6.400000e+01 : f32
    %196 = vector.broadcast %cst_62 : f32 to vector<64x1xf32>
    %197 = arith.divf %195, %196 : vector<64x1xf32>
    %198 = vector.broadcast %197 : vector<64x1xf32> to vector<64x64xf32>
    %199 = arith.subf %191, %198 : vector<64x64xf32>
    %200 = arith.mulf %199, %199 : vector<64x64xf32>
    %cst_63 = arith.constant dense<0.000000e+00> : vector<64xf32>
    %201 = vector.multi_reduction <add>, %200, %cst_63 [1] : vector<64x64xf32> to vector<64xf32>
    %202 = vector.shape_cast %201 : vector<64xf32> to vector<64x1xf32>
    %cst_64 = arith.constant 6.400000e+01 : f32
    %203 = vector.broadcast %cst_64 : f32 to vector<64x1xf32>
    %204 = arith.divf %202, %203 : vector<64x1xf32>
    %cst_65 = arith.constant 9.99999974E-6 : f32
    %205 = vector.broadcast %cst_65 : f32 to vector<64x1xf32>
    %206 = arith.addf %204, %205 : vector<64x1xf32>
    %207 = math.rsqrt %206 : vector<64x1xf32>
    %208 = vector.broadcast %207 : vector<64x1xf32> to vector<64x64xf32>
    %209 = arith.mulf %199, %208 : vector<64x64xf32>
    %210 = vector.broadcast %192 : vector<1x64xf32> to vector<64x64xf32>
    %211 = arith.mulf %209, %210 : vector<64x64xf32>
    %212 = vector.broadcast %193 : vector<1x64xf32> to vector<64x64xf32>
    %213 = arith.addf %211, %212 : vector<64x64xf32>
    %cst_66 = arith.constant 2.000000e+01 : f32
    %214 = vector.broadcast %cst_66 : f32 to vector<64x64xf32>
    %215 = arith.minimumf %213, %214 : vector<64x64xf32>
    %216 = math.exp %215 : vector<64x64xf32>
    %cst_67 = arith.constant 2.000000e+00 : f32
    %217 = vector.broadcast %cst_67 : f32 to vector<64x64xf32>
    %218 = arith.addf %216, %217 : vector<64x64xf32>
    %219 = arith.mulf %216, %218 : vector<64x64xf32>
    %cst_68 = arith.constant 2.000000e+00 : f32
    %220 = vector.broadcast %cst_68 : f32 to vector<64x64xf32>
    %221 = arith.addf %219, %220 : vector<64x64xf32>
    %222 = arith.divf %219, %221 : vector<64x64xf32>
    %223 = arith.mulf %213, %222 : vector<64x64xf32>
    %224 = arith.truncf %223 : vector<64x64xf32> to vector<64x64xbf16>
    %225 = arith.index_cast %c2_i32 : i32 to index
    %c0_69 = arith.constant 0 : index
    %c0_70 = arith.constant 0 : index
    %226 = vector.load %arg3[%225, %c0_69, %c0_70] : memref<3x64x64xbf16, #tpu.memory_space<vmem>>, vector<1x64x64xbf16>
    %227 = vector.shape_cast %226 : vector<1x64x64xbf16> to vector<64x64xbf16>
    %cst_71 = arith.constant dense<0.000000e+00> : vector<64x64xf32>
    %228 = tpu.matmul %224, %227, %cst_71 {dimension_numbers = #tpu.dot_dimension_numbers<[1], [0], [0], [1], [0, 0, 1, 1], [], []>} : vector<64x64xbf16>, vector<64x64xbf16>, vector<64x64xf32> -> vector<64x64xf32>
    %229 = vector.extract_strided_slice %186 {offsets = [3, 0], sizes = [1, 64], strides = [1, 1]} : vector<6x64xf32> to vector<1x64xf32>
    %230 = vector.broadcast %229 : vector<1x64xf32> to vector<64x64xf32>
    %231 = arith.addf %228, %230 : vector<64x64xf32>
    %232 = vector.extract_strided_slice %186 {offsets = [4, 0], sizes = [1, 64], strides = [1, 1]} : vector<6x64xf32> to vector<1x64xf32>
    %233 = vector.extract_strided_slice %186 {offsets = [5, 0], sizes = [1, 64], strides = [1, 1]} : vector<6x64xf32> to vector<1x64xf32>
    %cst_72 = arith.constant dense<0.000000e+00> : vector<64xf32>
    %234 = vector.multi_reduction <add>, %231, %cst_72 [1] : vector<64x64xf32> to vector<64xf32>
    %235 = vector.shape_cast %234 : vector<64xf32> to vector<64x1xf32>
    %cst_73 = arith.constant 6.400000e+01 : f32
    %236 = vector.broadcast %cst_73 : f32 to vector<64x1xf32>
    %237 = arith.divf %235, %236 : vector<64x1xf32>
    %238 = vector.broadcast %237 : vector<64x1xf32> to vector<64x64xf32>
    %239 = arith.subf %231, %238 : vector<64x64xf32>
    %240 = arith.mulf %239, %239 : vector<64x64xf32>
    %cst_74 = arith.constant dense<0.000000e+00> : vector<64xf32>
    %241 = vector.multi_reduction <add>, %240, %cst_74 [1] : vector<64x64xf32> to vector<64xf32>
    %242 = vector.shape_cast %241 : vector<64xf32> to vector<64x1xf32>
    %cst_75 = arith.constant 6.400000e+01 : f32
    %243 = vector.broadcast %cst_75 : f32 to vector<64x1xf32>
    %244 = arith.divf %242, %243 : vector<64x1xf32>
    %cst_76 = arith.constant 9.99999974E-6 : f32
    %245 = vector.broadcast %cst_76 : f32 to vector<64x1xf32>
    %246 = arith.addf %244, %245 : vector<64x1xf32>
    %247 = math.rsqrt %246 : vector<64x1xf32>
    %248 = vector.broadcast %247 : vector<64x1xf32> to vector<64x64xf32>
    %249 = arith.mulf %239, %248 : vector<64x64xf32>
    %250 = vector.broadcast %232 : vector<1x64xf32> to vector<64x64xf32>
    %251 = arith.mulf %249, %250 : vector<64x64xf32>
    %252 = vector.broadcast %233 : vector<1x64xf32> to vector<64x64xf32>
    %253 = arith.addf %251, %252 : vector<64x64xf32>
    %cst_77 = arith.constant 2.000000e+01 : f32
    %254 = vector.broadcast %cst_77 : f32 to vector<64x64xf32>
    %255 = arith.minimumf %253, %254 : vector<64x64xf32>
    %256 = math.exp %255 : vector<64x64xf32>
    %cst_78 = arith.constant 2.000000e+00 : f32
    %257 = vector.broadcast %cst_78 : f32 to vector<64x64xf32>
    %258 = arith.addf %256, %257 : vector<64x64xf32>
    %259 = arith.mulf %256, %258 : vector<64x64xf32>
    %cst_79 = arith.constant 2.000000e+00 : f32
    %260 = vector.broadcast %cst_79 : f32 to vector<64x64xf32>
    %261 = arith.addf %259, %260 : vector<64x64xf32>
    %262 = arith.divf %259, %261 : vector<64x64xf32>
    %263 = arith.mulf %253, %262 : vector<64x64xf32>
    %264 = arith.truncf %263 : vector<64x64xf32> to vector<64x64xbf16>
    %265 = arith.index_cast %c2_i32 : i32 to index
    %c0_80 = arith.constant 0 : index
    %c0_81 = arith.constant 0 : index
    %266 = vector.load %arg4[%265, %c0_80, %c0_81] : memref<3x64x128xbf16, #tpu.memory_space<vmem>>, vector<1x64x128xbf16>
    %267 = vector.shape_cast %266 : vector<1x64x128xbf16> to vector<64x128xbf16>
    %cst_82 = arith.constant dense<0.000000e+00> : vector<64x128xf32>
    %268 = tpu.matmul %264, %267, %cst_82 {dimension_numbers = #tpu.dot_dimension_numbers<[1], [0], [0], [1], [0, 0, 1, 1], [], []>} : vector<64x64xbf16>, vector<64x128xbf16>, vector<64x128xf32> -> vector<64x128xf32>
    %269 = arith.addf %181, %268 : vector<64x128xf32>
    %c3_i32 = arith.constant 3 : i32
    %c0_83 = arith.constant 0 : index
    %c0_84 = arith.constant 0 : index
    %270 = vector.load %arg6[%c0_83, %c0_84] : memref<1x128xf32, #tpu.memory_space<vmem>>, vector<1x128xf32>
    %271 = vector.broadcast %270 : vector<1x128xf32> to vector<64x128xf32>
    %272 = arith.addf %269, %271 : vector<64x128xf32>
    %c0_85 = arith.constant 0 : index
    %c0_86 = arith.constant 0 : index
    %273 = vector.load %arg7[%c0_85, %c0_86] : memref<64x128xf32, #tpu.memory_space<vmem>>, vector<64x128xf32>
    tpu.vector_store %arg7[%c0_85, %c0_86], %272 {strides = array<i32>} : memref<64x128xf32, #tpu.memory_space<vmem>>, vector<64x128xf32>,
    return
  }
  func.func @transform_0(%arg0: i32) -> (i32, i32) {
    %c0_i32 = arith.constant 0 : i32
    %c0_i32_0 = arith.constant 0 : i32
    return %arg0, %c0_i32 : i32, i32
  }
  func.func @transform_1(%arg0: i32) -> (i32, i32) {
    %c0_i32 = arith.constant 0 : i32
    %c0_i32_0 = arith.constant 0 : i32
    %c0_i32_1 = arith.constant 0 : i32
    return %c0_i32, %c0_i32_0 : i32, i32
  }
  func.func @transform_2(%arg0: i32) -> (i32, i32, i32) {
    %c0_i32 = arith.constant 0 : i32
    %c0_i32_0 = arith.constant 0 : i32
    %c0_i32_1 = arith.constant 0 : i32
    %c0_i32_2 = arith.constant 0 : i32
    return %c0_i32, %c0_i32_0, %c0_i32_1 : i32, i32, i32
  }
  func.func @transform_3(%arg0: i32) -> (i32, i32, i32) {
    %c0_i32 = arith.constant 0 : i32
    %c0_i32_0 = arith.constant 0 : i32
    %c0_i32_1 = arith.constant 0 : i32
    %c0_i32_2 = arith.constant 0 : i32
    return %c0_i32, %c0_i32_0, %c0_i32_1 : i32, i32, i32
  }
  func.func @transform_4(%arg0: i32) -> (i32, i32, i32) {
    %c0_i32 = arith.constant 0 : i32
    %c0_i32_0 = arith.constant 0 : i32
    %c0_i32_1 = arith.constant 0 : i32
    %c0_i32_2 = arith.constant 0 : i32
    return %c0_i32, %c0_i32_0, %c0_i32_1 : i32, i32, i32
  }
  func.func @transform_5(%arg0: i32) -> (i32, i32) {
    %c0_i32 = arith.constant 0 : i32
    %c0_i32_0 = arith.constant 0 : i32
    %c0_i32_1 = arith.constant 0 : i32
    return %c0_i32, %c0_i32_0 : i32, i32
  }
  func.func @transform_6(%arg0: i32) -> (i32, i32) {
    %c0_i32 = arith.constant 0 : i32
    %c0_i32_0 = arith.constant 0 : i32
    return %arg0, %c0_i32 : i32, i32
  }
}

module attributes {stable_mosaic.version = 11 : i64} {
  func.func @ensemble_mlp_kernel(%arg0: i32, %arg1: memref<64x32xf32, #tpu.memory_space<vmem>>, %arg2: memref<32x384xbf16, #tpu.memory_space<vmem>>, %arg3: memref<3x64x64xbf16, #tpu.memory_space<vmem>>, %arg4: memref<3x64x128xbf16, #tpu.memory_space<vmem>>, %arg5: memref<3x6x64xf32, #tpu.memory_space<vmem>>, %arg6: memref<1x128xf32, #tpu.memory_space<vmem>>, %arg7: memref<64x128xf32, #tpu.memory_space<vmem>>, %arg8: memref<64x384xf32, #tpu.memory_space<vmem>>) attributes {dimension_semantics = [#tpu.dimension_semantics<parallel>], iteration_bounds = array<i64: 4>, scalar_prefetch = 0 : i64, scratch_operands = 1 : i64, tpu.core_type = #tpu.core_type<tc>, window_params = [{transform_indices = @transform_0, window_bounds = array<i64: 64, 32>}, {pipeline_mode = #tpu.pipeline_mode<synchronous>, transform_indices = @transform_1, window_bounds = array<i64: 32, 384>}, {pipeline_mode = #tpu.pipeline_mode<synchronous>, transform_indices = @transform_2, window_bounds = array<i64: 3, 64, 64>}, {pipeline_mode = #tpu.pipeline_mode<synchronous>, transform_indices = @transform_3, window_bounds = array<i64: 3, 64, 128>}, {pipeline_mode = #tpu.pipeline_mode<synchronous>, transform_indices = @transform_4, window_bounds = array<i64: 3, 6, 64>}, {pipeline_mode = #tpu.pipeline_mode<synchronous>, transform_indices = @transform_5, window_bounds = array<i64: 1, 128>}, {transform_indices = @transform_6, window_bounds = array<i64: 64, 128>}]} {
    %c0 = arith.constant 0 : index
    %c0_0 = arith.constant 0 : index
    %0 = vector.load %arg1[%c0, %c0_0] : memref<64x32xf32, #tpu.memory_space<vmem>>, vector<64x32xf32>
    %1 = arith.truncf %0 : vector<64x32xf32> to vector<64x32xbf16>
    %c0_1 = arith.constant 0 : index
    %c0_2 = arith.constant 0 : index
    %2 = vector.load %arg2[%c0_1, %c0_2] : memref<32x384xbf16, #tpu.memory_space<vmem>>, vector<32x384xbf16>
    %cst = arith.constant dense<0.000000e+00> : vector<64x384xf32>
    %3 = tpu.matmul %1, %2, %cst {dimension_numbers = #tpu.dot_dimension_numbers<[1], [0], [0], [1], [0, 0, 1, 1], [], []>} : vector<64x32xbf16>, vector<32x384xbf16>, vector<64x384xf32> -> vector<64x384xf32>
    %c0_3 = arith.constant 0 : index
    %c0_4 = arith.constant 0 : index
    %4 = vector.load %arg8[%c0_3, %c0_4] : memref<64x384xf32, #tpu.memory_space<vmem>>, vector<64x384xf32>
    tpu.vector_store %arg8[%c0_3, %c0_4], %3 {strides = array<i32>} : memref<64x384xf32, #tpu.memory_space<vmem>>, vector<64x384xf32>,
    %cst_5 = arith.constant 0.000000e+00 : f32
    %5 = vector.broadcast %cst_5 : f32 to vector<64x128xf32>
    %c0_i32 = arith.constant 0 : i32
    %c128_i32 = arith.constant 128 : i32
    %6 = arith.muli %c0_i32, %c128_i32 : i32
    %7 = tpu.assume_multiple %6, 128 : i32
    %8 = arith.index_cast %c0_i32 : i32 to index
    %c0_6 = arith.constant 0 : index
    %c0_7 = arith.constant 0 : index
    %9 = vector.load %arg5[%8, %c0_6, %c0_7] : memref<3x6x64xf32, #tpu.memory_space<vmem>>, vector<1x6x64xf32>
    %10 = vector.shape_cast %9 : vector<1x6x64xf32> to vector<6x64xf32>
    %c0_8 = arith.constant 0 : index
    %11 = arith.index_cast %7 : i32 to index
    %12 = vector.load %arg8[%c0_8, %11] : memref<64x384xf32, #tpu.memory_space<vmem>>, vector<64x64xf32>
    %13 = vector.extract_strided_slice %10 {offsets = [0, 0], sizes = [1, 64], strides = [1, 1]} : vector<6x64xf32> to vector<1x64xf32>
    %14 = vector.broadcast %13 : vector<1x64xf32> to vector<64x64xf32>
    %15 = arith.addf %12, %14 : vector<64x64xf32>
    %16 = vector.extract_strided_slice %10 {offsets = [1, 0], sizes = [1, 64], strides = [1, 1]} : vector<6x64xf32> to vector<1x64xf32>
    %17 = vector.extract_strided_slice %10 {offsets = [2, 0], sizes = [1, 64], strides = [1, 1]} : vector<6x64xf32> to vector<1x64xf32>
    %cst_9 = arith.constant dense<0.000000e+00> : vector<64xf32>
    %18 = vector.multi_reduction <add>, %15, %cst_9 [1] : vector<64x64xf32> to vector<64xf32>
    %19 = vector.shape_cast %18 : vector<64xf32> to vector<64x1xf32>
    %cst_10 = arith.constant 6.400000e+01 : f32
    %20 = vector.broadcast %cst_10 : f32 to vector<64x1xf32>
    %21 = arith.divf %19, %20 : vector<64x1xf32>
    %22 = vector.broadcast %21 : vector<64x1xf32> to vector<64x64xf32>
    %23 = arith.subf %15, %22 : vector<64x64xf32>
    %24 = arith.mulf %23, %23 : vector<64x64xf32>
    %cst_11 = arith.constant dense<0.000000e+00> : vector<64xf32>
    %25 = vector.multi_reduction <add>, %24, %cst_11 [1] : vector<64x64xf32> to vector<64xf32>
    %26 = vector.shape_cast %25 : vector<64xf32> to vector<64x1xf32>
    %cst_12 = arith.constant 6.400000e+01 : f32
    %27 = vector.broadcast %cst_12 : f32 to vector<64x1xf32>
    %28 = arith.divf %26, %27 : vector<64x1xf32>
    %cst_13 = arith.constant 9.99999974E-6 : f32
    %29 = vector.broadcast %cst_13 : f32 to vector<64x1xf32>
    %30 = arith.addf %28, %29 : vector<64x1xf32>
    %31 = math.rsqrt %30 : vector<64x1xf32>
    %32 = vector.broadcast %31 : vector<64x1xf32> to vector<64x64xf32>
    %33 = arith.mulf %23, %32 : vector<64x64xf32>
    %34 = vector.broadcast %16 : vector<1x64xf32> to vector<64x64xf32>
    %35 = arith.mulf %33, %34 : vector<64x64xf32>
    %36 = vector.broadcast %17 : vector<1x64xf32> to vector<64x64xf32>
    %37 = arith.addf %35, %36 : vector<64x64xf32>
    %cst_14 = arith.constant 2.000000e+01 : f32
    %38 = vector.broadcast %cst_14 : f32 to vector<64x64xf32>
    %39 = arith.minimumf %37, %38 : vector<64x64xf32>
    %40 = math.exp %39 : vector<64x64xf32>
    %cst_15 = arith.constant 2.000000e+00 : f32
    %41 = vector.broadcast %cst_15 : f32 to vector<64x64xf32>
    %42 = arith.addf %40, %41 : vector<64x64xf32>
    %43 = arith.mulf %40, %42 : vector<64x64xf32>
    %cst_16 = arith.constant 2.000000e+00 : f32
    %44 = vector.broadcast %cst_16 : f32 to vector<64x64xf32>
    %45 = arith.addf %43, %44 : vector<64x64xf32>
    %46 = arith.divf %43, %45 : vector<64x64xf32>
    %47 = arith.mulf %37, %46 : vector<64x64xf32>
    %48 = arith.truncf %47 : vector<64x64xf32> to vector<64x64xbf16>
    %49 = arith.index_cast %c0_i32 : i32 to index
    %c0_17 = arith.constant 0 : index
    %c0_18 = arith.constant 0 : index
    %50 = vector.load %arg3[%49, %c0_17, %c0_18] : memref<3x64x64xbf16, #tpu.memory_space<vmem>>, vector<1x64x64xbf16>
    %51 = vector.shape_cast %50 : vector<1x64x64xbf16> to vector<64x64xbf16>
    %cst_19 = arith.constant dense<0.000000e+00> : vector<64x64xf32>
    %52 = tpu.matmul %48, %51, %cst_19 {dimension_numbers = #tpu.dot_dimension_numbers<[1], [0], [0], [1], [0, 0, 1, 1], [], []>} : vector<64x64xbf16>, vector<64x64xbf16>, vector<64x64xf32> -> vector<64x64xf32>
    %53 = vector.extract_strided_slice %10 {offsets = [3, 0], sizes = [1, 64], strides = [1, 1]} : vector<6x64xf32> to vector<1x64xf32>
    %54 = vector.broadcast %53 : vector<1x64xf32> to vector<64x64xf32>
    %55 = arith.addf %52, %54 : vector<64x64xf32>
    %56 = vector.extract_strided_slice %10 {offsets = [4, 0], sizes = [1, 64], strides = [1, 1]} : vector<6x64xf32> to vector<1x64xf32>
    %57 = vector.extract_strided_slice %10 {offsets = [5, 0], sizes = [1, 64], strides = [1, 1]} : vector<6x64xf32> to vector<1x64xf32>
    %cst_20 = arith.constant dense<0.000000e+00> : vector<64xf32>
    %58 = vector.multi_reduction <add>, %55, %cst_20 [1] : vector<64x64xf32> to vector<64xf32>
    %59 = vector.shape_cast %58 : vector<64xf32> to vector<64x1xf32>
    %cst_21 = arith.constant 6.400000e+01 : f32
    %60 = vector.broadcast %cst_21 : f32 to vector<64x1xf32>
    %61 = arith.divf %59, %60 : vector<64x1xf32>
    %62 = vector.broadcast %61 : vector<64x1xf32> to vector<64x64xf32>
    %63 = arith.subf %55, %62 : vector<64x64xf32>
    %64 = arith.mulf %63, %63 : vector<64x64xf32>
    %cst_22 = arith.constant dense<0.000000e+00> : vector<64xf32>
    %65 = vector.multi_reduction <add>, %64, %cst_22 [1] : vector<64x64xf32> to vector<64xf32>
    %66 = vector.shape_cast %65 : vector<64xf32> to vector<64x1xf32>
    %cst_23 = arith.constant 6.400000e+01 : f32
    %67 = vector.broadcast %cst_23 : f32 to vector<64x1xf32>
    %68 = arith.divf %66, %67 : vector<64x1xf32>
    %cst_24 = arith.constant 9.99999974E-6 : f32
    %69 = vector.broadcast %cst_24 : f32 to vector<64x1xf32>
    %70 = arith.addf %68, %69 : vector<64x1xf32>
    %71 = math.rsqrt %70 : vector<64x1xf32>
    %72 = vector.broadcast %71 : vector<64x1xf32> to vector<64x64xf32>
    %73 = arith.mulf %63, %72 : vector<64x64xf32>
    %74 = vector.broadcast %56 : vector<1x64xf32> to vector<64x64xf32>
    %75 = arith.mulf %73, %74 : vector<64x64xf32>
    %76 = vector.broadcast %57 : vector<1x64xf32> to vector<64x64xf32>
    %77 = arith.addf %75, %76 : vector<64x64xf32>
    %cst_25 = arith.constant 2.000000e+01 : f32
    %78 = vector.broadcast %cst_25 : f32 to vector<64x64xf32>
    %79 = arith.minimumf %77, %78 : vector<64x64xf32>
    %80 = math.exp %79 : vector<64x64xf32>
    %cst_26 = arith.constant 2.000000e+00 : f32
    %81 = vector.broadcast %cst_26 : f32 to vector<64x64xf32>
    %82 = arith.addf %80, %81 : vector<64x64xf32>
    %83 = arith.mulf %80, %82 : vector<64x64xf32>
    %cst_27 = arith.constant 2.000000e+00 : f32
    %84 = vector.broadcast %cst_27 : f32 to vector<64x64xf32>
    %85 = arith.addf %83, %84 : vector<64x64xf32>
    %86 = arith.divf %83, %85 : vector<64x64xf32>
    %87 = arith.mulf %77, %86 : vector<64x64xf32>
    %88 = arith.truncf %87 : vector<64x64xf32> to vector<64x64xbf16>
    %89 = arith.index_cast %c0_i32 : i32 to index
    %c0_28 = arith.constant 0 : index
    %c0_29 = arith.constant 0 : index
    %90 = vector.load %arg4[%89, %c0_28, %c0_29] : memref<3x64x128xbf16, #tpu.memory_space<vmem>>, vector<1x64x128xbf16>
    %91 = vector.shape_cast %90 : vector<1x64x128xbf16> to vector<64x128xbf16>
    %cst_30 = arith.constant dense<0.000000e+00> : vector<64x128xf32>
    %92 = tpu.matmul %88, %91, %cst_30 {dimension_numbers = #tpu.dot_dimension_numbers<[1], [0], [0], [1], [0, 0, 1, 1], [], []>} : vector<64x64xbf16>, vector<64x128xbf16>, vector<64x128xf32> -> vector<64x128xf32>
    %93 = arith.addf %5, %92 : vector<64x128xf32>
    %c1_i32 = arith.constant 1 : i32
    %c128_i32_31 = arith.constant 128 : i32
    %94 = arith.muli %c1_i32, %c128_i32_31 : i32
    %95 = tpu.assume_multiple %94, 128 : i32
    %96 = arith.index_cast %c1_i32 : i32 to index
    %c0_32 = arith.constant 0 : index
    %c0_33 = arith.constant 0 : index
    %97 = vector.load %arg5[%96, %c0_32, %c0_33] : memref<3x6x64xf32, #tpu.memory_space<vmem>>, vector<1x6x64xf32>
    %98 = vector.shape_cast %97 : vector<1x6x64xf32> to vector<6x64xf32>
    %c0_34 = arith.constant 0 : index
    %99 = arith.index_cast %95 : i32 to index
    %100 = vector.load %arg8[%c0_34, %99] : memref<64x384xf32, #tpu.memory_space<vmem>>, vector<64x64xf32>
    %101 = vector.extract_strided_slice %98 {offsets = [0, 0], sizes = [1, 64], strides = [1, 1]} : vector<6x64xf32> to vector<1x64xf32>
    %102 = vector.broadcast %101 : vector<1x64xf32> to vector<64x64xf32>
    %103 = arith.addf %100, %102 : vector<64x64xf32>
    %104 = vector.extract_strided_slice %98 {offsets = [1, 0], sizes = [1, 64], strides = [1, 1]} : vector<6x64xf32> to vector<1x64xf32>
    %105 = vector.extract_strided_slice %98 {offsets = [2, 0], sizes = [1, 64], strides = [1, 1]} : vector<6x64xf32> to vector<1x64xf32>
    %cst_35 = arith.constant dense<0.000000e+00> : vector<64xf32>
    %106 = vector.multi_reduction <add>, %103, %cst_35 [1] : vector<64x64xf32> to vector<64xf32>
    %107 = vector.shape_cast %106 : vector<64xf32> to vector<64x1xf32>
    %cst_36 = arith.constant 6.400000e+01 : f32
    %108 = vector.broadcast %cst_36 : f32 to vector<64x1xf32>
    %109 = arith.divf %107, %108 : vector<64x1xf32>
    %110 = vector.broadcast %109 : vector<64x1xf32> to vector<64x64xf32>
    %111 = arith.subf %103, %110 : vector<64x64xf32>
    %112 = arith.mulf %111, %111 : vector<64x64xf32>
    %cst_37 = arith.constant dense<0.000000e+00> : vector<64xf32>
    %113 = vector.multi_reduction <add>, %112, %cst_37 [1] : vector<64x64xf32> to vector<64xf32>
    %114 = vector.shape_cast %113 : vector<64xf32> to vector<64x1xf32>
    %cst_38 = arith.constant 6.400000e+01 : f32
    %115 = vector.broadcast %cst_38 : f32 to vector<64x1xf32>
    %116 = arith.divf %114, %115 : vector<64x1xf32>
    %cst_39 = arith.constant 9.99999974E-6 : f32
    %117 = vector.broadcast %cst_39 : f32 to vector<64x1xf32>
    %118 = arith.addf %116, %117 : vector<64x1xf32>
    %119 = math.rsqrt %118 : vector<64x1xf32>
    %120 = vector.broadcast %119 : vector<64x1xf32> to vector<64x64xf32>
    %121 = arith.mulf %111, %120 : vector<64x64xf32>
    %122 = vector.broadcast %104 : vector<1x64xf32> to vector<64x64xf32>
    %123 = arith.mulf %121, %122 : vector<64x64xf32>
    %124 = vector.broadcast %105 : vector<1x64xf32> to vector<64x64xf32>
    %125 = arith.addf %123, %124 : vector<64x64xf32>
    %cst_40 = arith.constant 2.000000e+01 : f32
    %126 = vector.broadcast %cst_40 : f32 to vector<64x64xf32>
    %127 = arith.minimumf %125, %126 : vector<64x64xf32>
    %128 = math.exp %127 : vector<64x64xf32>
    %cst_41 = arith.constant 2.000000e+00 : f32
    %129 = vector.broadcast %cst_41 : f32 to vector<64x64xf32>
    %130 = arith.addf %128, %129 : vector<64x64xf32>
    %131 = arith.mulf %128, %130 : vector<64x64xf32>
    %cst_42 = arith.constant 2.000000e+00 : f32
    %132 = vector.broadcast %cst_42 : f32 to vector<64x64xf32>
    %133 = arith.addf %131, %132 : vector<64x64xf32>
    %134 = arith.divf %131, %133 : vector<64x64xf32>
    %135 = arith.mulf %125, %134 : vector<64x64xf32>
    %136 = arith.truncf %135 : vector<64x64xf32> to vector<64x64xbf16>
    %137 = arith.index_cast %c1_i32 : i32 to index
    %c0_43 = arith.constant 0 : index
    %c0_44 = arith.constant 0 : index
    %138 = vector.load %arg3[%137, %c0_43, %c0_44] : memref<3x64x64xbf16, #tpu.memory_space<vmem>>, vector<1x64x64xbf16>
    %139 = vector.shape_cast %138 : vector<1x64x64xbf16> to vector<64x64xbf16>
    %cst_45 = arith.constant dense<0.000000e+00> : vector<64x64xf32>
    %140 = tpu.matmul %136, %139, %cst_45 {dimension_numbers = #tpu.dot_dimension_numbers<[1], [0], [0], [1], [0, 0, 1, 1], [], []>} : vector<64x64xbf16>, vector<64x64xbf16>, vector<64x64xf32> -> vector<64x64xf32>
    %141 = vector.extract_strided_slice %98 {offsets = [3, 0], sizes = [1, 64], strides = [1, 1]} : vector<6x64xf32> to vector<1x64xf32>
    %142 = vector.broadcast %141 : vector<1x64xf32> to vector<64x64xf32>
    %143 = arith.addf %140, %142 : vector<64x64xf32>
    %144 = vector.extract_strided_slice %98 {offsets = [4, 0], sizes = [1, 64], strides = [1, 1]} : vector<6x64xf32> to vector<1x64xf32>
    %145 = vector.extract_strided_slice %98 {offsets = [5, 0], sizes = [1, 64], strides = [1, 1]} : vector<6x64xf32> to vector<1x64xf32>
    %cst_46 = arith.constant dense<0.000000e+00> : vector<64xf32>
    %146 = vector.multi_reduction <add>, %143, %cst_46 [1] : vector<64x64xf32> to vector<64xf32>
    %147 = vector.shape_cast %146 : vector<64xf32> to vector<64x1xf32>
    %cst_47 = arith.constant 6.400000e+01 : f32
    %148 = vector.broadcast %cst_47 : f32 to vector<64x1xf32>
    %149 = arith.divf %147, %148 : vector<64x1xf32>
    %150 = vector.broadcast %149 : vector<64x1xf32> to vector<64x64xf32>
    %151 = arith.subf %143, %150 : vector<64x64xf32>
    %152 = arith.mulf %151, %151 : vector<64x64xf32>
    %cst_48 = arith.constant dense<0.000000e+00> : vector<64xf32>
    %153 = vector.multi_reduction <add>, %152, %cst_48 [1] : vector<64x64xf32> to vector<64xf32>
    %154 = vector.shape_cast %153 : vector<64xf32> to vector<64x1xf32>
    %cst_49 = arith.constant 6.400000e+01 : f32
    %155 = vector.broadcast %cst_49 : f32 to vector<64x1xf32>
    %156 = arith.divf %154, %155 : vector<64x1xf32>
    %cst_50 = arith.constant 9.99999974E-6 : f32
    %157 = vector.broadcast %cst_50 : f32 to vector<64x1xf32>
    %158 = arith.addf %156, %157 : vector<64x1xf32>
    %159 = math.rsqrt %158 : vector<64x1xf32>
    %160 = vector.broadcast %159 : vector<64x1xf32> to vector<64x64xf32>
    %161 = arith.mulf %151, %160 : vector<64x64xf32>
    %162 = vector.broadcast %144 : vector<1x64xf32> to vector<64x64xf32>
    %163 = arith.mulf %161, %162 : vector<64x64xf32>
    %164 = vector.broadcast %145 : vector<1x64xf32> to vector<64x64xf32>
    %165 = arith.addf %163, %164 : vector<64x64xf32>
    %cst_51 = arith.constant 2.000000e+01 : f32
    %166 = vector.broadcast %cst_51 : f32 to vector<64x64xf32>
    %167 = arith.minimumf %165, %166 : vector<64x64xf32>
    %168 = math.exp %167 : vector<64x64xf32>
    %cst_52 = arith.constant 2.000000e+00 : f32
    %169 = vector.broadcast %cst_52 : f32 to vector<64x64xf32>
    %170 = arith.addf %168, %169 : vector<64x64xf32>
    %171 = arith.mulf %168, %170 : vector<64x64xf32>
    %cst_53 = arith.constant 2.000000e+00 : f32
    %172 = vector.broadcast %cst_53 : f32 to vector<64x64xf32>
    %173 = arith.addf %171, %172 : vector<64x64xf32>
    %174 = arith.divf %171, %173 : vector<64x64xf32>
    %175 = arith.mulf %165, %174 : vector<64x64xf32>
    %176 = arith.truncf %175 : vector<64x64xf32> to vector<64x64xbf16>
    %177 = arith.index_cast %c1_i32 : i32 to index
    %c0_54 = arith.constant 0 : index
    %c0_55 = arith.constant 0 : index
    %178 = vector.load %arg4[%177, %c0_54, %c0_55] : memref<3x64x128xbf16, #tpu.memory_space<vmem>>, vector<1x64x128xbf16>
    %179 = vector.shape_cast %178 : vector<1x64x128xbf16> to vector<64x128xbf16>
    %cst_56 = arith.constant dense<0.000000e+00> : vector<64x128xf32>
    %180 = tpu.matmul %176, %179, %cst_56 {dimension_numbers = #tpu.dot_dimension_numbers<[1], [0], [0], [1], [0, 0, 1, 1], [], []>} : vector<64x64xbf16>, vector<64x128xbf16>, vector<64x128xf32> -> vector<64x128xf32>
    %181 = arith.addf %93, %180 : vector<64x128xf32>
    %c2_i32 = arith.constant 2 : i32
    %c128_i32_57 = arith.constant 128 : i32
    %182 = arith.muli %c2_i32, %c128_i32_57 : i32
    %183 = tpu.assume_multiple %182, 128 : i32
    %184 = arith.index_cast %c2_i32 : i32 to index
    %c0_58 = arith.constant 0 : index
    %c0_59 = arith.constant 0 : index
    %185 = vector.load %arg5[%184, %c0_58, %c0_59] : memref<3x6x64xf32, #tpu.memory_space<vmem>>, vector<1x6x64xf32>
    %186 = vector.shape_cast %185 : vector<1x6x64xf32> to vector<6x64xf32>
    %c0_60 = arith.constant 0 : index
    %187 = arith.index_cast %183 : i32 to index
    %188 = vector.load %arg8[%c0_60, %187] : memref<64x384xf32, #tpu.memory_space<vmem>>, vector<64x64xf32>
    %189 = vector.extract_strided_slice %186 {offsets = [0, 0], sizes = [1, 64], strides = [1, 1]} : vector<6x64xf32> to vector<1x64xf32>
    %190 = vector.broadcast %189 : vector<1x64xf32> to vector<64x64xf32>
    %191 = arith.addf %188, %190 : vector<64x64xf32>
    %192 = vector.extract_strided_slice %186 {offsets = [1, 0], sizes = [1, 64], strides = [1, 1]} : vector<6x64xf32> to vector<1x64xf32>
    %193 = vector.extract_strided_slice %186 {offsets = [2, 0], sizes = [1, 64], strides = [1, 1]} : vector<6x64xf32> to vector<1x64xf32>
    %cst_61 = arith.constant dense<0.000000e+00> : vector<64xf32>
    %194 = vector.multi_reduction <add>, %191, %cst_61 [1] : vector<64x64xf32> to vector<64xf32>
    %195 = vector.shape_cast %194 : vector<64xf32> to vector<64x1xf32>
    %cst_62 = arith.constant 6.400000e+01 : f32
    %196 = vector.broadcast %cst_62 : f32 to vector<64x1xf32>
    %197 = arith.divf %195, %196 : vector<64x1xf32>
    %198 = vector.broadcast %197 : vector<64x1xf32> to vector<64x64xf32>
    %199 = arith.subf %191, %198 : vector<64x64xf32>
    %200 = arith.mulf %199, %199 : vector<64x64xf32>
    %cst_63 = arith.constant dense<0.000000e+00> : vector<64xf32>
    %201 = vector.multi_reduction <add>, %200, %cst_63 [1] : vector<64x64xf32> to vector<64xf32>
    %202 = vector.shape_cast %201 : vector<64xf32> to vector<64x1xf32>
    %cst_64 = arith.constant 6.400000e+01 : f32
    %203 = vector.broadcast %cst_64 : f32 to vector<64x1xf32>
    %204 = arith.divf %202, %203 : vector<64x1xf32>
    %cst_65 = arith.constant 9.99999974E-6 : f32
    %205 = vector.broadcast %cst_65 : f32 to vector<64x1xf32>
    %206 = arith.addf %204, %205 : vector<64x1xf32>
    %207 = math.rsqrt %206 : vector<64x1xf32>
    %208 = vector.broadcast %207 : vector<64x1xf32> to vector<64x64xf32>
    %209 = arith.mulf %199, %208 : vector<64x64xf32>
    %210 = vector.broadcast %192 : vector<1x64xf32> to vector<64x64xf32>
    %211 = arith.mulf %209, %210 : vector<64x64xf32>
    %212 = vector.broadcast %193 : vector<1x64xf32> to vector<64x64xf32>
    %213 = arith.addf %211, %212 : vector<64x64xf32>
    %cst_66 = arith.constant 2.000000e+01 : f32
    %214 = vector.broadcast %cst_66 : f32 to vector<64x64xf32>
    %215 = arith.minimumf %213, %214 : vector<64x64xf32>
    %216 = math.exp %215 : vector<64x64xf32>
    %cst_67 = arith.constant 2.000000e+00 : f32
    %217 = vector.broadcast %cst_67 : f32 to vector<64x64xf32>
    %218 = arith.addf %216, %217 : vector<64x64xf32>
    %219 = arith.mulf %216, %218 : vector<64x64xf32>
    %cst_68 = arith.constant 2.000000e+00 : f32
    %220 = vector.broadcast %cst_68 : f32 to vector<64x64xf32>
    %221 = arith.addf %219, %220 : vector<64x64xf32>
    %222 = arith.divf %219, %221 : vector<64x64xf32>
    %223 = arith.mulf %213, %222 : vector<64x64xf32>
    %224 = arith.truncf %223 : vector<64x64xf32> to vector<64x64xbf16>
    %225 = arith.index_cast %c2_i32 : i32 to index
    %c0_69 = arith.constant 0 : index
    %c0_70 = arith.constant 0 : index
    %226 = vector.load %arg3[%225, %c0_69, %c0_70] : memref<3x64x64xbf16, #tpu.memory_space<vmem>>, vector<1x64x64xbf16>
    %227 = vector.shape_cast %226 : vector<1x64x64xbf16> to vector<64x64xbf16>
    %cst_71 = arith.constant dense<0.000000e+00> : vector<64x64xf32>
    %228 = tpu.matmul %224, %227, %cst_71 {dimension_numbers = #tpu.dot_dimension_numbers<[1], [0], [0], [1], [0, 0, 1, 1], [], []>} : vector<64x64xbf16>, vector<64x64xbf16>, vector<64x64xf32> -> vector<64x64xf32>
    %229 = vector.extract_strided_slice %186 {offsets = [3, 0], sizes = [1, 64], strides = [1, 1]} : vector<6x64xf32> to vector<1x64xf32>
    %230 = vector.broadcast %229 : vector<1x64xf32> to vector<64x64xf32>
    %231 = arith.addf %228, %230 : vector<64x64xf32>
    %232 = vector.extract_strided_slice %186 {offsets = [4, 0], sizes = [1, 64], strides = [1, 1]} : vector<6x64xf32> to vector<1x64xf32>
    %233 = vector.extract_strided_slice %186 {offsets = [5, 0], sizes = [1, 64], strides = [1, 1]} : vector<6x64xf32> to vector<1x64xf32>
    %cst_72 = arith.constant dense<0.000000e+00> : vector<64xf32>
    %234 = vector.multi_reduction <add>, %231, %cst_72 [1] : vector<64x64xf32> to vector<64xf32>
    %235 = vector.shape_cast %234 : vector<64xf32> to vector<64x1xf32>
    %cst_73 = arith.constant 6.400000e+01 : f32
    %236 = vector.broadcast %cst_73 : f32 to vector<64x1xf32>
    %237 = arith.divf %235, %236 : vector<64x1xf32>
    %238 = vector.broadcast %237 : vector<64x1xf32> to vector<64x64xf32>
    %239 = arith.subf %231, %238 : vector<64x64xf32>
    %240 = arith.mulf %239, %239 : vector<64x64xf32>
    %cst_74 = arith.constant dense<0.000000e+00> : vector<64xf32>
    %241 = vector.multi_reduction <add>, %240, %cst_74 [1] : vector<64x64xf32> to vector<64xf32>
    %242 = vector.shape_cast %241 : vector<64xf32> to vector<64x1xf32>
    %cst_75 = arith.constant 6.400000e+01 : f32
    %243 = vector.broadcast %cst_75 : f32 to vector<64x1xf32>
    %244 = arith.divf %242, %243 : vector<64x1xf32>
    %cst_76 = arith.constant 9.99999974E-6 : f32
    %245 = vector.broadcast %cst_76 : f32 to vector<64x1xf32>
    %246 = arith.addf %244, %245 : vector<64x1xf32>
    %247 = math.rsqrt %246 : vector<64x1xf32>
    %248 = vector.broadcast %247 : vector<64x1xf32> to vector<64x64xf32>
    %249 = arith.mulf %239, %248 : vector<64x64xf32>
    %250 = vector.broadcast %232 : vector<1x64xf32> to vector<64x64xf32>
    %251 = arith.mulf %249, %250 : vector<64x64xf32>
    %252 = vector.broadcast %233 : vector<1x64xf32> to vector<64x64xf32>
    %253 = arith.addf %251, %252 : vector<64x64xf32>
    %cst_77 = arith.constant 2.000000e+01 : f32
    %254 = vector.broadcast %cst_77 : f32 to vector<64x64xf32>
    %255 = arith.minimumf %253, %254 : vector<64x64xf32>
    %256 = math.exp %255 : vector<64x64xf32>
    %cst_78 = arith.constant 2.000000e+00 : f32
    %257 = vector.broadcast %cst_78 : f32 to vector<64x64xf32>
    %258 = arith.addf %256, %257 : vector<64x64xf32>
    %259 = arith.mulf %256, %258 : vector<64x64xf32>
    %cst_79 = arith.constant 2.000000e+00 : f32
    %260 = vector.broadcast %cst_79 : f32 to vector<64x64xf32>
    %261 = arith.addf %259, %260 : vector<64x64xf32>
    %262 = arith.divf %259, %261 : vector<64x64xf32>
    %263 = arith.mulf %253, %262 : vector<64x64xf32>
    %264 = arith.truncf %263 : vector<64x64xf32> to vector<64x64xbf16>
    %265 = arith.index_cast %c2_i32 : i32 to index
    %c0_80 = arith.constant 0 : index
    %c0_81 = arith.constant 0 : index
    %266 = vector.load %arg4[%265, %c0_80, %c0_81] : memref<3x64x128xbf16, #tpu.memory_space<vmem>>, vector<1x64x128xbf16>
    %267 = vector.shape_cast %266 : vector<1x64x128xbf16> to vector<64x128xbf16>
    %cst_82 = arith.constant dense<0.000000e+00> : vector<64x128xf32>
    %268 = tpu.matmul %264, %267, %cst_82 {dimension_numbers = #tpu.dot_dimension_numbers<[1], [0], [0], [1], [0, 0, 1, 1], [], []>} : vector<64x64xbf16>, vector<64x128xbf16>, vector<64x128xf32> -> vector<64x128xf32>
    %269 = arith.addf %181, %268 : vector<64x128xf32>
    %c3_i32 = arith.constant 3 : i32
    %c0_83 = arith.constant 0 : index
    %c0_84 = arith.constant 0 : index
    %270 = vector.load %arg6[%c0_83, %c0_84] : memref<1x128xf32, #tpu.memory_space<vmem>>, vector<1x128xf32>
    %271 = vector.broadcast %270 : vector<1x128xf32> to vector<64x128xf32>
    %272 = arith.addf %269, %271 : vector<64x128xf32>
    %c0_85 = arith.constant 0 : index
    %c0_86 = arith.constant 0 : index
    %273 = vector.load %arg7[%c0_85, %c0_86] : memref<64x128xf32, #tpu.memory_space<vmem>>, vector<64x128xf32>
    tpu.vector_store %arg7[%c0_85, %c0_86], %272 {strides = array<i32>} : memref<64x128xf32, #tpu.memory_space<vmem>>, vector<64x128xf32>,
    return
  }
  func.func @transform_0(%arg0: i32) -> (i32, i32) {
    %c0_i32 = arith.constant 0 : i32
    %c0_i32_0 = arith.constant 0 : i32
    return %arg0, %c0_i32 : i32, i32
  }
  func.func @transform_1(%arg0: i32) -> (i32, i32) {
    %c0_i32 = arith.constant 0 : i32
    %c0_i32_0 = arith.constant 0 : i32
    %c0_i32_1 = arith.constant 0 : i32
    return %c0_i32, %c0_i32_0 : i32, i32
  }
  func.func @transform_2(%arg0: i32) -> (i32, i32, i32) {
    %c0_i32 = arith.constant 0 : i32
    %c0_i32_0 = arith.constant 0 : i32
    %c0_i32_1 = arith.constant 0 : i32
    %c0_i32_2 = arith.constant 0 : i32
    return %c0_i32, %c0_i32_0, %c0_i32_1 : i32, i32, i32
  }
  func.func @transform_3(%arg0: i32) -> (i32, i32, i32) {
    %c0_i32 = arith.constant 0 : i32
    %c0_i32_0 = arith.constant 0 : i32
    %c0_i32_1 = arith.constant 0 : i32
    %c0_i32_2 = arith.constant 0 : i32
    return %c0_i32, %c0_i32_0, %c0_i32_1 : i32, i32, i32
  }
  func.func @transform_4(%arg0: i32) -> (i32, i32, i32) {
    %c0_i32 = arith.constant 0 : i32
    %c0_i32_0 = arith.constant 0 : i32
    %c0_i32_1 = arith.constant 0 : i32
    %c0_i32_2 = arith.constant 0 : i32
    return %c0_i32, %c0_i32_0, %c0_i32_1 : i32, i32, i32
  }
  func.func @transform_5(%arg0: i32) -> (i32, i32) {
    %c0_i32 = arith.constant 0 : i32
    %c0_i32_0 = arith.constant 0 : i32
    %c0_i32_1 = arith.constant 0 : i32
    return %c0_i32, %c0_i32_0 : i32, i32
  }
  func.func @transform_6(%arg0: i32) -> (i32, i32) {
    %c0_i32 = arith.constant 0 : i32
    %c0_i32_0 = arith.constant 0 : i32
    return %arg0, %c0_i32 : i32, i32
  }
}

</mosaic_0001>

<llo_original>
// kernel: tpu_custom_call.1
$region0: #{tpu_custom_call.1}
  #allocation0 [shape = 'u32[]', space=smem, size = 0x4, offset = 0x4, fixed_abs, tag = 'smem constant byte address 0x4 - core index']
  #allocation1 [shape = 'u32[144,128]{1,0:T(1,128)}', space=vmem, size = 0x12000, scoped, tag = 'internal scratch']
  #allocation2 [shape = 'f32[64,384]{1,0:T(8,128)}', space=vmem, size = 0x18000, scoped, tag = 'scratch operand']
  %s0 = inlined_call_operand.vmem [shape: f32[256,32], index: 0, kind: input, shape index: {}]
  %s1 = inlined_call_operand.vmem [shape: bf16[32,384], index: 1, kind: input, shape index: {}]
  %s2 = inlined_call_operand.vmem [shape: bf16[3,64,64], index: 2, kind: input, shape index: {}]
  %s3 = inlined_call_operand.vmem [shape: bf16[3,64,128], index: 3, kind: input, shape index: {}]
  %s4 = inlined_call_operand.vmem [shape: f32[3,6,64], index: 4, kind: input, shape index: {}]
  %s5 = inlined_call_operand.vmem [shape: f32[1,128], index: 5, kind: input, shape index: {}]
  %s6 = inlined_call_operand.hbm [shape: f32[256,128], index: 6, kind: output, shape index: {}]
  %s7 = sld [smem:[#allocation0]]
  $region57: #{tpu_custom_call.1} parent=0
    _
  %s9 = ssub.s32 1, %s7
  %s10 = scalar_select 0, %s9, %s7
  $region1: #{tpu_custom_call.1} parent=0
    #allocation3 [shape = 'u8[65536]{0}', space=vmem, size = 0x10000, scoped, tag = 'output window, operand 0']
    #allocation4 [shape = 's32[2]{0}', space=sflag, size = 0x8, scoped, tag = 'scoped memory for tpu_custom_call.1']
    %11 = vsyncpa [#allocation4], 0
    %s12 = scalar_lea.sflag [#allocation4], 1
    %13 = vsyncpa %s12, 0
    loop: start=0, step=1, limit=6
    $region2: #{tpu_custom_call.1} parent=1 // loop_pre_header
      _
    $region3: #{tpu_custom_call.1} parent=1 // loop_header
      %s15 = sphi 0, %s19
      %p16 = scmp.ge.s32.totalorder %s15, 6
      %s25 = sphi 0, %s27
      %s28 = sphi 0, %s25
      %s29 = sphi 0, %s28
      %s45 = sphi 0, %s29
      %s49 = sphi 0, %s49
      %s51 = sphi 0, %s49
      %s52 = sphi 0, %s51
      %s66 = sphi 0, %s52
      %s70 = sphi 0, %s70
      %s72 = sphi 0, %s70
      %s73 = sphi 0, %s72
      %s87 = sphi 0, %s73
      %s91 = sphi 0, %s91
      %s93 = sphi 0, %s91
      %s94 = sphi 0, %s93
      %s108 = sphi 0, %s94
      %s112 = sphi 0, %s112
      %s114 = sphi 0, %s112
      %s115 = sphi 0, %s114
      %s129 = sphi 0, %s115
      %s133 = sphi 0, %s133
      %s135 = sphi 0, %s133
      %s136 = sphi 0, %s135
      %s150 = sphi 0, %s136
      %s156 = sphi 0, %s158
      %s159 = sphi 0, %s156
      %s160 = sphi 0, %s159
      %s176 = sphi 0, %s160
    $region4: #{tpu_custom_call.1} parent=1 // loop_header_branch
      %18 = sbr.rel (%p16) target = $region8
    $region5: #{tpu_custom_call.1} parent=1 // loop_body
      %s20 = ssub.s32 %s15, 1
      %s21 = ssub.s32 %s15, 2
      %s22 = sadd.s32 %s15, 1
      %s23 = ssub.s32 %s15, %s22
      %p24 = scmp.eq.s32.totalorder %s23, 0
      %s26 = sadd.s32 %s25, 1
      %s27 = scalar_select %p24, %s25, %s26
      %p30 = pneg %p24
      %p31 = scmp.eq.s32.totalorder %s15, 3
      %p32 = por %p30, %p31
      %p33 = scmp.ne.s32.totalorder %s25, %s28
      %p34 = scmp.eq.s32.totalorder %s15, 0
      %p35 = por %p33, %p34
      %p36 = scmp.ne.s32.totalorder %s25, %s28
      %p37 = scmp.eq.s32.totalorder %s20, 3
      %p38 = por %p36, %p37
      %p39 = scmp.ne.s32.totalorder %s28, %s29
      %p40 = scmp.eq.s32.totalorder %s20, 0
      %p41 = por %p39, %p40
      %p42 = scmp.ne.s32.totalorder %s28, %s29
      %p43 = scmp.eq.s32.totalorder %s21, 3
      %p44 = por %p42, %p43
      %p46 = scmp.ne.s32.totalorder %s29, %s45
      %p47 = scmp.eq.s32.totalorder %s21, 0
      %p48 = por %p46, %p47
      %s50 = sadd.s32 %s49, 1
      %p53 = scmp.eq.s32.totalorder %s15, 3
      %p54 = scmp.ne.s32.totalorder %s49, %s51
      %p55 = scmp.eq.s32.totalorder %s15, 0
      %p56 = por %p54, %p55
      %p57 = scmp.ne.s32.totalorder %s49, %s51
      %p58 = scmp.eq.s32.totalorder %s20, 3
      %p59 = por %p57, %p58
      %p60 = scmp.ne.s32.totalorder %s51, %s52
      %p61 = scmp.eq.s32.totalorder %s20, 0
      %p62 = por %p60, %p61
      %p63 = scmp.ne.s32.totalorder %s51, %s52
      %p64 = scmp.eq.s32.totalorder %s21, 3
      %p65 = por %p63, %p64
      %p67 = scmp.ne.s32.totalorder %s52, %s66
      %p68 = scmp.eq.s32.totalorder %s21, 0
      %p69 = por %p67, %p68
      %s71 = sadd.s32 %s70, 1
      %p74 = scmp.eq.s32.totalorder %s15, 3
      %p75 = scmp.ne.s32.totalorder %s70, %s72
      %p76 = scmp.eq.s32.totalorder %s15, 0
      %p77 = por %p75, %p76
      %p78 = scmp.ne.s32.totalorder %s70, %s72
      %p79 = scmp.eq.s32.totalorder %s20, 3
      %p80 = por %p78, %p79
      %p81 = scmp.ne.s32.totalorder %s72, %s73
      %p82 = scmp.eq.s32.totalorder %s20, 0
      %p83 = por %p81, %p82
      %p84 = scmp.ne.s32.totalorder %s72, %s73
      %p85 = scmp.eq.s32.totalorder %s21, 3
      %p86 = por %p84, %p85
      %p88 = scmp.ne.s32.totalorder %s73, %s87
      %p89 = scmp.eq.s32.totalorder %s21, 0
      %p90 = por %p88, %p89
      %s92 = sadd.s32 %s91, 1
      %p95 = scmp.eq.s32.totalorder %s15, 3
      %p96 = scmp.ne.s32.totalorder %s91, %s93
      %p97 = scmp.eq.s32.totalorder %s15, 0
      %p98 = por %p96, %p97
      %p99 = scmp.ne.s32.totalorder %s91, %s93
      %p100 = scmp.eq.s32.totalorder %s20, 3
      %p101 = por %p99, %p100
      %p102 = scmp.ne.s32.totalorder %s93, %s94
      %p103 = scmp.eq.s32.totalorder %s20, 0
      %p104 = por %p102, %p103
      %p105 = scmp.ne.s32.totalorder %s93, %s94
      %p106 = scmp.eq.s32.totalorder %s21, 3
      %p107 = por %p105, %p106
      %p109 = scmp.ne.s32.totalorder %s94, %s108
      %p110 = scmp.eq.s32.totalorder %s21, 0
      %p111 = por %p109, %p110
      %s113 = sadd.s32 %s112, 1
      %p116 = scmp.eq.s32.totalorder %s15, 3
      %p117 = scmp.ne.s32.totalorder %s112, %s114
      %p118 = scmp.eq.s32.totalorder %s15, 0
      %p119 = por %p117, %p118
      %p120 = scmp.ne.s32.totalorder %s112, %s114
      %p121 = scmp.eq.s32.totalorder %s20, 3
      %p122 = por %p120, %p121
      %p123 = scmp.ne.s32.totalorder %s114, %s115
      %p124 = scmp.eq.s32.totalorder %s20, 0
      %p125 = por %p123, %p124
      %p126 = scmp.ne.s32.totalorder %s114, %s115
      %p127 = scmp.eq.s32.totalorder %s21, 3
      %p128 = por %p126, %p127
      %p130 = scmp.ne.s32.totalorder %s115, %s129
      %p131 = scmp.eq.s32.totalorder %s21, 0
      %p132 = por %p130, %p131
      %s134 = sadd.s32 %s133, 1
      %p137 = scmp.eq.s32.totalorder %s15, 3
      %p138 = scmp.ne.s32.totalorder %s133, %s135
      %p139 = scmp.eq.s32.totalorder %s15, 0
      %p140 = por %p138, %p139
      %p141 = scmp.ne.s32.totalorder %s133, %s135
      %p142 = scmp.eq.s32.totalorder %s20, 3
      %p143 = por %p141, %p142
      %p144 = scmp.ne.s32.totalorder %s135, %s136
      %p145 = scmp.eq.s32.totalorder %s20, 0
      %p146 = por %p144, %p145
      %p147 = scmp.ne.s32.totalorder %s135, %s136
      %p148 = scmp.eq.s32.totalorder %s21, 3
      %p149 = por %p147, %p148
      %p151 = scmp.ne.s32.totalorder %s136, %s150
      %p152 = scmp.eq.s32.totalorder %s21, 0
      %p153 = por %p151, %p152
      %s154 = ssub.s32 %s15, %s22
      %p155 = scmp.eq.s32.totalorder %s154, 0
      %s157 = sadd.s32 %s156, 1
      %s158 = scalar_select %p155, %s156, %s157
      %p161 = pneg %p155
      %p162 = scmp.eq.s32.totalorder %s15, 3
      %p163 = por %p161, %p162
      %p164 = scmp.ne.s32.totalorder %s156, %s159
      %p165 = scmp.eq.s32.totalorder %s15, 0
      %p166 = por %p164, %p165
      %p167 = scmp.ne.s32.totalorder %s156, %s159
      %p168 = scmp.eq.s32.totalorder %s20, 3
      %p169 = por %p167, %p168
      %p170 = scmp.ne.s32.totalorder %s159, %s160
      %p171 = scmp.eq.s32.totalorder %s20, 0
      %p172 = por %p170, %p171
      %p173 = scmp.ne.s32.totalorder %s159, %s160
      %p174 = scmp.eq.s32.totalorder %s21, 3
      %p175 = por %p173, %p174
      %p177 = scmp.ne.s32.totalorder %s160, %s176
      %p178 = scmp.eq.s32.totalorder %s21, 0
      %p179 = por %p177, %p178
      %p180 = scmp.le.s32.totalorder 1, %s15
      %p181 = scmp.lt.s32.totalorder %s15, 5
      %p182 = pnand %p180, %p181
      %p183 = pneg %p182
      // Predicated region
      $region9: #{tpu_custom_call.1} parent=5 // pred_check
        _
      $region10: #{tpu_custom_call.1} parent=5 // pred_check_branch
        %185 = sbr.rel (%p182) target = $region12
      $region11: #{tpu_custom_call.1} parent=5 // pred_region
        %s186 = ssub.s32 %s15, 1
        // Predicated region
        $region13: #{tpu_custom_call.1} parent=11 // pred_check
          %p187 = pneg %p62
        $region14: #{tpu_custom_call.1} parent=11 // pred_check_branch
          %189 = sbr.rel (%p187) target = $region16
        $region15: #{tpu_custom_call.1} parent=11 // pred_region
          _
        $region16: #{tpu_custom_call.1} parent=11 // pred_fallthru
          _
        // Predicated region
        $region17: #{tpu_custom_call.1} parent=11 // pred_check
          %p190 = pneg %p83
        $region18: #{tpu_custom_call.1} parent=11 // pred_check_branch
          %192 = sbr.rel (%p190) target = $region20
        $region19: #{tpu_custom_call.1} parent=11 // pred_region
          _
        $region20: #{tpu_custom_call.1} parent=11 // pred_fallthru
          _
        // Predicated region
        $region21: #{tpu_custom_call.1} parent=11 // pred_check
          %p193 = pneg %p104
        $region22: #{tpu_custom_call.1} parent=11 // pred_check_branch
          %195 = sbr.rel (%p193) target = $region24
        $region23: #{tpu_custom_call.1} parent=11 // pred_region
          _
        $region24: #{tpu_custom_call.1} parent=11 // pred_fallthru
          _
        // Predicated region
        $region25: #{tpu_custom_call.1} parent=11 // pred_check
          %p196 = pneg %p125
        $region26: #{tpu_custom_call.1} parent=11 // pred_check_branch
          %198 = sbr.rel (%p196) target = $region28
        $region27: #{tpu_custom_call.1} parent=11 // pred_region
          _
        $region28: #{tpu_custom_call.1} parent=11 // pred_fallthru
          _
        // Predicated region
        $region29: #{tpu_custom_call.1} parent=11 // pred_check
          %p199 = pneg %p146
        $region30: #{tpu_custom_call.1} parent=11 // pred_check_branch
          %201 = sbr.rel (%p199) target = $region32
        $region31: #{tpu_custom_call.1} parent=11 // pred_region
          _
        $region32: #{tpu_custom_call.1} parent=11 // pred_fallthru
          _
      $region12: #{tpu_custom_call.1} parent=5 // pred_fallthru
        _
      %p202 = scmp.lt.s32.totalorder %s15, 4
      // Predicated region
      $region33: #{tpu_custom_call.1} parent=5 // pred_check
        %p203 = pneg %p202
      $region34: #{tpu_custom_call.1} parent=5 // pred_check_branch
        %205 = sbr.rel (%p203) target = $region36
      $region35: #{tpu_custom_call.1} parent=5 // pred_region
        // Predicated region
        $region37: #{tpu_custom_call.1} parent=35 // pred_check
          %p206 = pneg %p35
        $region38: #{tpu_custom_call.1} parent=35 // pred_check_branch
          %208 = sbr.rel (%p206) target = $region40
        $region39: #{tpu_custom_call.1} parent=35 // pred_region
          %s209 = smul.u32 8, %s15
          %p210 = scmp.lt.s32.totalorder %s209, 31
          %s211 = scalar_select %p210, %s209, 31
          %s212 = smul.addr %s211, 8
          %s213 = scalar_lea.vmem %s0, %s212
          %s214 = smul.u32 8, %s15
        $region40: #{tpu_custom_call.1} parent=35 // pred_fallthru
          _
      $region36: #{tpu_custom_call.1} parent=5 // pred_fallthru
        _
      %p215 = scmp.le.s32.totalorder 1, %s15
      %p216 = scmp.lt.s32.totalorder %s15, 5
      %p217 = pnand %p215, %p216
      %p218 = pneg %p217
      // Predicated region
      $region41: #{tpu_custom_call.1} parent=5 // pred_check
        _
      $region42: #{tpu_custom_call.1} parent=5 // pred_check_branch
        %220 = sbr.rel (%p217) target = $region44
      $region43: #{tpu_custom_call.1} parent=5 // pred_region
        %s221 = ssub.s32 %s15, 1
        %s222 = smul.u32 8, %s20
        %p223 = scmp.lt.s32.totalorder %s222, 31
        %s224 = scalar_select %p223, %s222, 31
        %s225 = smul.addr %s224, 8
        %s226 = scalar_lea.vmem %s0, %s225
        %p227 = pneg %p41
        %p228 = pneg %p38
        %p229 = pneg %p62
        %p230 = pneg %p59
        %p231 = pneg %p83
        %p232 = pneg %p80
        %p233 = pneg %p104
        %p234 = pneg %p101
        %p235 = pneg %p125
        %p236 = pneg %p122
        %p237 = pneg %p146
        %p238 = pneg %p143
        %p239 = pneg %p172
        %p240 = pneg %p169
        %s241 = sand.u32 %s159, 1
        %s242 = scalar_lea.sflag [#allocation4], %s241
        %s243 = sand.u32 %s159, 1
        %s244 = smul.addr %s243, 64
        %s245 = scalar_lea.vmem [#allocation3], %s244
        %s246 = smul.u32 8, %s20
        %p247 = scmp.lt.s32.totalorder %s246, 31
        %s248 = scalar_select %p247, %s246, 31
        %s249 = smul.addr %s248, 8
        %s250 = scalar_lea.vmem %s0, %s249
        %s251 = smul.u32 8, %s20
        %s252 = smul.u32 8, %s20
        %v254 = vld [vmem:[%s250] sm:$0xff]
        %v255 = vld [vmem:[%s250 + $0x8] sm:$0xff]
        %v256 = vld [vmem:[%s250 + $0x10] sm:$0xff]
        %v257 = vld [vmem:[%s250 + $0x18] sm:$0xff]
        %v258 = vld [vmem:[%s250 + $0x20] sm:$0xff]
        %v259 = vld [vmem:[%s250 + $0x28] sm:$0xff]
        %v260 = vld [vmem:[%s250 + $0x30] sm:$0xff]
        %v261 = vld [vmem:[%s250 + $0x38] sm:$0xff]
        %v262 = vpack.c.bf16 %v255, %v254
        %v263 = vpack.c.bf16 %v257, %v256
        %v264 = vpack.c.bf16 %v259, %v258
        %v265 = vpack.c.bf16 %v261, %v260
        %v266 = vld [vmem:[%s1] sm:$0xff]
        %v267 = vld [vmem:[%s1 + $0x8] sm:$0xf]
        %v268 = vld [vmem:[%s1 + $0xc] sm:$0xff]
        %v269 = vld [vmem:[%s1 + $0x14] sm:$0xf]
        %v270 = vld [vmem:[%s1 + $0x18] sm:$0xff]
        %v271 = vld [vmem:[%s1 + $0x20] sm:$0xf]
        %v272 = vld [vmem:[%s1 + $0x24] sm:$0xff]
        %v273 = vld [vmem:[%s1 + $0x2c] sm:$0xf]
        %v282 = vunpack.c.l.b16 %v266
        %v283 = vunpack.c.h.b16 %v266
        %v284 = vunpack.c.l.b16 %v267
        %v285 = vunpack.c.l.b16 %v268
        %v286 = vunpack.c.h.b16 %v268
        %v287 = vunpack.c.l.b16 %v269
        %v288 = vunpack.c.l.b16 %v270
        %v289 = vunpack.c.h.b16 %v270
        %v290 = vunpack.c.l.b16 %v271
        %v291 = vunpack.c.l.b16 %v272
        %v292 = vunpack.c.h.b16 %v272
        %v293 = vunpack.c.l.b16 %v273
        %v294 = vpack.c.b16 %v285, %v282
        %v295 = vpack.c.b16 %v286, %v283
        %v296 = vpack.c.b16 %v287, %v284
        %v297 = vpack.c.b16 %v291, %v288
        %v298 = vpack.c.b16 %v292, %v289
        %v299 = vpack.c.b16 %v293, %v290
        %vm306 = vcmask 261120
        %v308 = vsel %vm306, %v262, 0
        %v311 = vsel %vm306, %v263, 0
        %v314 = vsel %vm306, %v264, 0
        %v317 = vsel %vm306, %v265, 0
        %319 = vmatprep.subr.bf16.mxu0 %v295
        %320 = vmatpush1.bf16.msra.mxu0 %v294
        %321 = vmatprep.subr.bf16.mxu0 %v298
        %322 = vmatpush1.bf16.msra.mxu0 %v297
        %323 = vmatprep.subr.bf16.mxu0 0
        %324 = vmatpush1.bf16.msra.mxu0 0
        %325 = vmatprep.subr.bf16.mxu0 0
        %326 = vmatpush1.bf16.msra.mxu0 0
        %327 = vmatprep.subr.bf16.mxu0 0
        %328 = vmatpush1.bf16.msra.mxu0 0
        %329 = vmatprep.subr.bf16.mxu0 0
        %330 = vmatpush1.bf16.msra.mxu0 0
        %331 = vmatprep.subr.bf16.mxu0 0
        %332 = vmatpush1.bf16.msra.mxu0 0
        %333 = vmatprep.subr.bf16.mxu0 0
        %334 = vmatpush1.bf16.msra.mxu0 0
        %335 = vmatprep.subr.bf16.mxu0 0
        %336 = vmatpush1.bf16.msra.mxu0 0
        %337 = vmatprep.subr.bf16.mxu0 0
        %338 = vmatpush1.bf16.msra.mxu0 0
        %339 = vmatprep.subr.bf16.mxu0 0
        %340 = vmatpush1.bf16.msra.mxu0 0
        %341 = vmatprep.subr.bf16.mxu0 0
        %342 = vmatpush1.bf16.msra.mxu0 0
        %343 = vmatprep.subr.bf16.mxu0 0
        %344 = vmatpush1.bf16.msra.mxu0 0
        %345 = vmatprep.subr.bf16.mxu0 0
        %346 = vmatpush1.bf16.msra.mxu0 0
        %347 = vmatprep.subr.bf16.mxu0 0
        %348 = vmatpush1.bf16.msra.mxu0 0
        %349 = vmatprep.subr.bf16.mxu0 0
        %350 = vmatpush1.bf16.msra.mxu0 0
        %351 = vmatprep.mubr.bf16.mxu0 0
        %352 = vmatmul.mubr.bf16.gmra.mrb[0].mxu0 %v308
        %v353 = vpop.f32.mrb[0].mxu0
        %v354 = vadd.f32 0.0, %v353
        %v355 = vpop.f32.mrb[0].mxu0
        %v356 = vadd.f32 0.0, %v355
        %v357 = vpop.f32.mrb[0].mxu0
        %v358 = vadd.f32 0.0, %v357
        %v359 = vpop.f32.mrb[0].mxu0
        %v360 = vadd.f32 0.0, %v359
        %361 = vmatprep.mubr.bf16.mxu0 0
        %362 = vmatmul.mubr.bf16.gmra.mrb[0].mxu0 %v311
        %v363 = vpop.f32.mrb[0].mxu0
        %v364 = vadd.f32 0.0, %v363
        %v365 = vpop.f32.mrb[0].mxu0
        %v366 = vadd.f32 0.0, %v365
        %v367 = vpop.f32.mrb[0].mxu0
        %v368 = vadd.f32 0.0, %v367
        %v369 = vpop.f32.mrb[0].mxu0
        %v370 = vadd.f32 0.0, %v369
        %371 = vmatprep.mubr.bf16.mxu0 0
        %372 = vmatmul.mubr.bf16.gmra.mrb[0].mxu0 %v314
        %v373 = vpop.f32.mrb[0].mxu0
        %v374 = vadd.f32 0.0, %v373
        %v375 = vpop.f32.mrb[0].mxu0
        %v376 = vadd.f32 0.0, %v375
        %v377 = vpop.f32.mrb[0].mxu0
        %v378 = vadd.f32 0.0, %v377
        %v379 = vpop.f32.mrb[0].mxu0
        %v380 = vadd.f32 0.0, %v379
        %381 = vmatprep.mubr.bf16.mxu0 0
        %382 = vmatmul.mubr.bf16.gmra.mrb[0].mxu0 %v317
        %v383 = vpop.f32.mrb[0].mxu0
        %v384 = vadd.f32 0.0, %v383
        %v385 = vpop.f32.mrb[0].mxu0
        %v386 = vadd.f32 0.0, %v385
        %v387 = vpop.f32.mrb[0].mxu0
        %v388 = vadd.f32 0.0, %v387
        %v389 = vpop.f32.mrb[0].mxu0
        %v390 = vadd.f32 0.0, %v389
        %391 = vdwg.mxu0
        %392 = vmatprep.subr.bf16.mxu0 0
        %393 = vmatpush1.bf16.msra.mxu0 %v296
        %394 = vmatprep.subr.bf16.mxu0 0
        %395 = vmatpush1.bf16.msra.mxu0 %v299
        %396 = vmatprep.subr.bf16.mxu0 0
        %397 = vmatpush1.bf16.msra.mxu0 0
        %398 = vmatprep.subr.bf16.mxu0 0
        %399 = vmatpush1.bf16.msra.mxu0 0
        %400 = vmatprep.subr.bf16.mxu0 0
        %401 = vmatpush1.bf16.msra.mxu0 0
        %402 = vmatprep.subr.bf16.mxu0 0
        %403 = vmatpush1.bf16.msra.mxu0 0
        %404 = vmatprep.subr.bf16.mxu0 0
        %405 = vmatpush1.bf16.msra.mxu0 0
        %406 = vmatprep.subr.bf16.mxu0 0
        %407 = vmatpush1.bf16.msra.mxu0 0
        %408 = vmatprep.subr.bf16.mxu0 0
        %409 = vmatpush1.bf16.msra.mxu0 0
        %410 = vmatprep.subr.bf16.mxu0 0
        %411 = vmatpush1.bf16.msra.mxu0 0
        %412 = vmatprep.subr.bf16.mxu0 0
        %413 = vmatpush1.bf16.msra.mxu0 0
        %414 = vmatprep.subr.bf16.mxu0 0
        %415 = vmatpush1.bf16.msra.mxu0 0
        %416 = vmatprep.subr.bf16.mxu0 0
        %417 = vmatpush1.bf16.msra.mxu0 0
        %418 = vmatprep.subr.bf16.mxu0 0
        %419 = vmatpush1.bf16.msra.mxu0 0
        %420 = vmatprep.subr.bf16.mxu0 0
        %421 = vmatpush1.bf16.msra.mxu0 0
        %422 = vmatprep.subr.bf16.mxu0 0
        %423 = vmatpush1.bf16.msra.mxu0 0
        %424 = vmatprep.mubr.bf16.mxu0 0
        %425 = vmatmul.mubr.bf16.gmra.mrb[0].mxu0 %v308
        %v426 = vpop.f32.mrb[0].mxu0
        %v427 = vadd.f32 0.0, %v426
        %v428 = vpop.f32.mrb[0].mxu0
        %v429 = vpop.f32.mrb[0].mxu0
        %v430 = vadd.f32 0.0, %v429
        %v431 = vpop.f32.mrb[0].mxu0
        %432 = vmatprep.mubr.bf16.mxu0 0
        %433 = vmatmul.mubr.bf16.gmra.mrb[0].mxu0 %v311
        %v434 = vpop.f32.mrb[0].mxu0
        %v435 = vadd.f32 0.0, %v434
        %v436 = vpop.f32.mrb[0].mxu0
        %v437 = vpop.f32.mrb[0].mxu0
        %v438 = vadd.f32 0.0, %v437
        %v439 = vpop.f32.mrb[0].mxu0
        %440 = vmatprep.mubr.bf16.mxu0 0
        %441 = vmatmul.mubr.bf16.gmra.mrb[0].mxu0 %v314
        %v442 = vpop.f32.mrb[0].mxu0
        %v443 = vadd.f32 0.0, %v442
        %v444 = vpop.f32.mrb[0].mxu0
        %v445 = vpop.f32.mrb[0].mxu0
        %v446 = vadd.f32 0.0, %v445
        %v447 = vpop.f32.mrb[0].mxu0
        %448 = vmatprep.mubr.bf16.mxu0 0
        %449 = vmatmul.mubr.bf16.gmra.mrb[0].mxu0 %v317
        %v450 = vpop.f32.mrb[0].mxu0
        %v451 = vadd.f32 0.0, %v450
        %v452 = vpop.f32.mrb[0].mxu0
        %v453 = vpop.f32.mrb[0].mxu0
        %v454 = vadd.f32 0.0, %v453
        %v455 = vpop.f32.mrb[0].mxu0
        %456 = vdwg.mxu0
        %457 = vst [vmem:[#allocation2] sm:$0xff] %v354
        %458 = vst [vmem:[#allocation2 + $0x8] sm:$0xff] %v356
        %459 = vst [vmem:[#allocation2 + $0x10] sm:$0xff] %v427
        %460 = vst [vmem:[#allocation2 + $0x18] sm:$0xff] %v358
        %461 = vst [vmem:[#allocation2 + $0x20] sm:$0xff] %v360
        %462 = vst [vmem:[#allocation2 + $0x28] sm:$0xff] %v430
        %463 = vst [vmem:[#allocation2 + $0x30] sm:$0xff] %v364
        %464 = vst [vmem:[#allocation2 + $0x38] sm:$0xff] %v366
        %465 = vst [vmem:[#allocation2 + $0x40] sm:$0xff] %v435
        %466 = vst [vmem:[#allocation2 + $0x48] sm:$0xff] %v368
        %467 = vst [vmem:[#allocation2 + $0x50] sm:$0xff] %v370
        %468 = vst [vmem:[#allocation2 + $0x58] sm:$0xff] %v438
        %469 = vst [vmem:[#allocation2 + $0x60] sm:$0xff] %v374
        %470 = vst [vmem:[#allocation2 + $0x68] sm:$0xff] %v376
        %471 = vst [vmem:[#allocation2 + $0x70] sm:$0xff] %v443
        %472 = vst [vmem:[#allocation2 + $0x78] sm:$0xff] %v378
        %473 = vst [vmem:[#allocation2 + $0x80] sm:$0xff] %v380
        %474 = vst [vmem:[#allocation2 + $0x88] sm:$0xff] %v446
        %475 = vst [vmem:[#allocation2 + $0x90] sm:$0xff] %v384
        %476 = vst [vmem:[#allocation2 + $0x98] sm:$0xff] %v386
        %477 = vst [vmem:[#allocation2 + $0xa0] sm:$0xff] %v451
        %478 = vst [vmem:[#allocation2 + $0xa8] sm:$0xff] %v388
        %479 = vst [vmem:[#allocation2 + $0xb0] sm:$0xff] %v390
        %480 = vst [vmem:[#allocation2 + $0xb8] sm:$0xff] %v454
        %v481 = vld [vmem:[%s4] sm:$0x3f]
        %v482 = vld [vmem:[#allocation2] sm:$0xff]
        %v483 = vld [vmem:[#allocation2 + $0x18] sm:$0xff]
        %v484 = vld [vmem:[#allocation2 + $0x30] sm:$0xff]
        %v485 = vld [vmem:[#allocation2 + $0x48] sm:$0xff]
        %v486 = vld [vmem:[#allocation2 + $0x60] sm:$0xff]
        %v487 = vld [vmem:[#allocation2 + $0x78] sm:$0xff]
        %v488 = vld [vmem:[#allocation2 + $0x90] sm:$0xff]
        %v489 = vld [vmem:[#allocation2 + $0xa8] sm:$0xff]
        %v490 = vlaneseq
        %v491 = vshrl.u32 %v490, 7
        %v492 = vsub.s32 0, %v491
        %v493 = vrot.slane %v481, %v492
        %v494 = vadd.f32 %v482, %v493
        %v495 = vadd.f32 %v483, %v493
        %v496 = vadd.f32 %v484, %v493
        %v497 = vadd.f32 %v485, %v493
        %v498 = vadd.f32 %v486, %v493
        %v499 = vadd.f32 %v487, %v493
        %v500 = vadd.f32 %v488, %v493
        %v501 = vadd.f32 %v489, %v493
        %vm502 = vcmask 523264
        %v503 = vsel %vm502, %v494, 0.0
        %504 = vadd.xlane.f32.xlu0 %v503
        %v505 = vpop.xlane.xlu0 %504
        %v506 = vsel %vm502, %v495, 0.0
        %507 = vadd.xlane.f32.xlu0 %v506
        %v508 = vpop.xlane.xlu0 %507
        %v509 = vsel %vm502, %v496, 0.0
        %510 = vadd.xlane.f32.xlu0 %v509
        %v511 = vpop.xlane.xlu0 %510
        %v512 = vsel %vm502, %v497, 0.0
        %513 = vadd.xlane.f32.xlu0 %v512
        %v514 = vpop.xlane.xlu0 %513
        %v515 = vsel %vm502, %v498, 0.0
        %516 = vadd.xlane.f32.xlu0 %v515
        %v517 = vpop.xlane.xlu0 %516
        %v518 = vsel %vm502, %v499, 0.0
        %519 = vadd.xlane.f32.xlu0 %v518
        %v520 = vpop.xlane.xlu0 %519
        %v521 = vsel %vm502, %v500, 0.0
        %522 = vadd.xlane.f32.xlu0 %v521
        %v523 = vpop.xlane.xlu0 %522
        %v524 = vsel %vm502, %v501, 0.0
        %525 = vadd.xlane.f32.xlu0 %v524
        %v526 = vpop.xlane.xlu0 %525
        %v527 = vrcp.pop 64.0
        %v528 = vmul.f32 %v505, %v527
        %v529 = vmul.f32 %v508, %v527
        %v530 = vmul.f32 %v511, %v527
        %v531 = vmul.f32 %v514, %v527
        %v532 = vmul.f32 %v517, %v527
        %v533 = vmul.f32 %v520, %v527
        %v534 = vmul.f32 %v523, %v527
        %v535 = vmul.f32 %v526, %v527
        %v536 = vsub.f32 %v494, %v528
        %v537 = vsub.f32 %v495, %v529
        %v538 = vsub.f32 %v496, %v530
        %v539 = vsub.f32 %v497, %v531
        %v540 = vsub.f32 %v498, %v532
        %v541 = vsub.f32 %v499, %v533
        %v542 = vsub.f32 %v500, %v534
        %v543 = vsub.f32 %v501, %v535
        %v544 = vmul.f32 %v536, %v536
        %v545 = vmul.f32 %v537, %v537
        %v546 = vmul.f32 %v538, %v538
        %v547 = vmul.f32 %v539, %v539
        %v548 = vmul.f32 %v540, %v540
        %v549 = vmul.f32 %v541, %v541
        %v550 = vmul.f32 %v542, %v542
        %v551 = vmul.f32 %v543, %v543
        %v552 = vsel %vm502, %v544, 0.0
        %553 = vadd.xlane.f32.xlu0 %v552
        %v554 = vpop.xlane.xlu0 %553
        %v555 = vsel %vm502, %v545, 0.0
        %556 = vadd.xlane.f32.xlu0 %v555
        %v557 = vpop.xlane.xlu0 %556
        %v558 = vsel %vm502, %v546, 0.0
        %559 = vadd.xlane.f32.xlu0 %v558
        %v560 = vpop.xlane.xlu0 %559
        %v561 = vsel %vm502, %v547, 0.0
        %562 = vadd.xlane.f32.xlu0 %v561
        %v563 = vpop.xlane.xlu0 %562
        %v564 = vsel %vm502, %v548, 0.0
        %565 = vadd.xlane.f32.xlu0 %v564
        %v566 = vpop.xlane.xlu0 %565
        %v567 = vsel %vm502, %v549, 0.0
        %568 = vadd.xlane.f32.xlu0 %v567
        %v569 = vpop.xlane.xlu0 %568
        %v570 = vsel %vm502, %v550, 0.0
        %571 = vadd.xlane.f32.xlu0 %v570
        %v572 = vpop.xlane.xlu0 %571
        %v573 = vsel %vm502, %v551, 0.0
        %574 = vadd.xlane.f32.xlu0 %v573
        %v575 = vpop.xlane.xlu0 %574
        %v576 = vmul.f32 %v554, %v527
        %v577 = vmul.f32 %v557, %v527
        %v578 = vmul.f32 %v560, %v527
        %v579 = vmul.f32 %v563, %v527
        %v580 = vmul.f32 %v566, %v527
        %v581 = vmul.f32 %v569, %v527
        %v582 = vmul.f32 %v572, %v527
        %v583 = vmul.f32 %v575, %v527
        %v584 = vadd.f32 %v576, 1e-05
        %v585 = vadd.f32 %v577, 1e-05
        %v586 = vadd.f32 %v578, 1e-05
        %v587 = vadd.f32 %v579, 1e-05
        %v588 = vadd.f32 %v580, 1e-05
        %v589 = vadd.f32 %v581, 1e-05
        %v590 = vadd.f32 %v582, 1e-05
        %v591 = vadd.f32 %v583, 1e-05
        %v592 = vrsqrt.pop %v584
        %v593 = vrsqrt.pop %v585
        %v594 = vrsqrt.pop %v586
        %v595 = vrsqrt.pop %v587
        %v596 = vrsqrt.pop %v588
        %v597 = vrsqrt.pop %v589
        %v598 = vrsqrt.pop %v590
        %v599 = vrsqrt.pop %v591
        %v600 = vmul.f32 %v536, %v592
        %v601 = vmul.f32 %v537, %v593
        %v602 = vmul.f32 %v538, %v594
        %v603 = vmul.f32 %v539, %v595
        %v604 = vmul.f32 %v540, %v596
        %v605 = vmul.f32 %v541, %v597
        %v606 = vmul.f32 %v542, %v598
        %v607 = vmul.f32 %v543, %v599
        %v608 = vlaneseq
        %v609 = vshrl.u32 %v608, 7
        %v610 = vsub.s32 1, %v609
        %v611 = vrot.slane %v481, %v610
        %v612 = vmul.f32 %v600, %v611
        %v613 = vmul.f32 %v601, %v611
        %v614 = vmul.f32 %v602, %v611
        %v615 = vmul.f32 %v603, %v611
        %v616 = vmul.f32 %v604, %v611
        %v617 = vmul.f32 %v605, %v611
        %v618 = vmul.f32 %v606, %v611
        %v619 = vmul.f32 %v607, %v611
        %v620 = vlaneseq
        %v621 = vshrl.u32 %v620, 7
        %v622 = vsub.s32 2, %v621
        %v623 = vrot.slane %v481, %v622
        %v624 = vadd.f32 %v612, %v623
        %v625 = vadd.f32 %v613, %v623
        %v626 = vadd.f32 %v614, %v623
        %v627 = vadd.f32 %v615, %v623
        %v628 = vadd.f32 %v616, %v623
        %v629 = vadd.f32 %v617, %v623
        %v630 = vadd.f32 %v618, %v623
        %v631 = vadd.f32 %v619, %v623
        %v632 = vmin.f32 %v624, 20.0
        %v633 = vmin.f32 %v625, 20.0
        %v634 = vmin.f32 %v626, 20.0
        %v635 = vmin.f32 %v627, 20.0
        %v636 = vmin.f32 %v628, 20.0
        %v637 = vmin.f32 %v629, 20.0
        %v638 = vmin.f32 %v630, 20.0
        %v639 = vmin.f32 %v631, 20.0
        %v640 = vmul.f32 %v632, 1.442695
        %v641 = vpow.pop %v640
        %v642 = vmul.f32 %v633, 1.442695
        %v643 = vpow.pop %v642
        %v644 = vmul.f32 %v634, 1.442695
        %v645 = vpow.pop %v644
        %v646 = vmul.f32 %v635, 1.442695
        %v647 = vpow.pop %v646
        %v648 = vmul.f32 %v636, 1.442695
        %v649 = vpow.pop %v648
        %v650 = vmul.f32 %v637, 1.442695
        %v651 = vpow.pop %v650
        %v652 = vmul.f32 %v638, 1.442695
        %v653 = vpow.pop %v652
        %v654 = vmul.f32 %v639, 1.442695
        %v655 = vpow.pop %v654
        %v656 = vadd.f32 %v641, 2.0
        %v657 = vadd.f32 %v643, 2.0
        %v658 = vadd.f32 %v645, 2.0
        %v659 = vadd.f32 %v647, 2.0
        %v660 = vadd.f32 %v649, 2.0
        %v661 = vadd.f32 %v651, 2.0
        %v662 = vadd.f32 %v653, 2.0
        %v663 = vadd.f32 %v655, 2.0
        %v664 = vmul.f32 %v641, %v656
        %v665 = vmul.f32 %v643, %v657
        %v666 = vmul.f32 %v645, %v658
        %v667 = vmul.f32 %v647, %v659
        %v668 = vmul.f32 %v649, %v660
        %v669 = vmul.f32 %v651, %v661
        %v670 = vmul.f32 %v653, %v662
        %v671 = vmul.f32 %v655, %v663
        %v672 = vadd.f32 %v664, 2.0
        %v673 = vadd.f32 %v665, 2.0
        %v674 = vadd.f32 %v666, 2.0
        %v675 = vadd.f32 %v667, 2.0
        %v676 = vadd.f32 %v668, 2.0
        %v677 = vadd.f32 %v669, 2.0
        %v678 = vadd.f32 %v670, 2.0
        %v679 = vadd.f32 %v671, 2.0
        %v680 = vrcp.pop %v672
        %v681 = vmul.f32 %v664, %v680
        %v682 = vrcp.pop %v673
        %v683 = vmul.f32 %v665, %v682
        %v684 = vrcp.pop %v674
        %v685 = vmul.f32 %v666, %v684
        %v686 = vrcp.pop %v675
        %v687 = vmul.f32 %v667, %v686
        %v688 = vrcp.pop %v676
        %v689 = vmul.f32 %v668, %v688
        %v690 = vrcp.pop %v677
        %v691 = vmul.f32 %v669, %v690
        %v692 = vrcp.pop %v678
        %v693 = vmul.f32 %v670, %v692
        %v694 = vrcp.pop %v679
        %v695 = vmul.f32 %v671, %v694
        %v696 = vmul.f32 %v624, %v681
        %v697 = vmul.f32 %v625, %v683
        %v698 = vmul.f32 %v626, %v685
        %v699 = vmul.f32 %v627, %v687
        %v700 = vmul.f32 %v628, %v689
        %v701 = vmul.f32 %v629, %v691
        %v702 = vmul.f32 %v630, %v693
        %v703 = vmul.f32 %v631, %v695
        %v704 = vpack.c.bf16 %v697, %v696
        %v705 = vpack.c.bf16 %v699, %v698
        %v706 = vpack.c.bf16 %v701, %v700
        %v707 = vpack.c.bf16 %v703, %v702
        %v708 = vld [vmem:[%s2] sm:$0xf]
        %v709 = vld [vmem:[%s2 + $0x4] sm:$0xf]
        %v710 = vld [vmem:[%s2 + $0x8] sm:$0xf]
        %v711 = vld [vmem:[%s2 + $0xc] sm:$0xf]
        %v712 = vld [vmem:[%s2 + $0x10] sm:$0xf]
        %v713 = vld [vmem:[%s2 + $0x14] sm:$0xf]
        %v714 = vld [vmem:[%s2 + $0x18] sm:$0xf]
        %v715 = vld [vmem:[%s2 + $0x1c] sm:$0xf]
        %v716 = vlaneseq
        %v717 = vshrl.u32 %v716, 7
        %v718 = vsub.s32 3, %v717
        %v719 = vrot.slane %v481, %v718
        %v728 = vunpack.c.l.b16 %v708
        %v729 = vunpack.c.l.b16 %v709
        %v730 = vunpack.c.l.b16 %v710
        %v731 = vunpack.c.l.b16 %v711
        %v732 = vunpack.c.l.b16 %v712
        %v733 = vunpack.c.l.b16 %v713
        %v734 = vunpack.c.l.b16 %v714
        %v735 = vunpack.c.l.b16 %v715
        %v736 = vpack.c.b16 %v729, %v728
        %v737 = vpack.c.b16 %v731, %v730
        %v738 = vpack.c.b16 %v733, %v732
        %v739 = vpack.c.b16 %v735, %v734
        %v745 = vsel %vm502, %v704, 0
        %v748 = vsel %vm502, %v705, 0
        %v751 = vsel %vm502, %v706, 0
        %v754 = vsel %vm502, %v707, 0
        %756 = vmatprep.subr.bf16.mxu0 0
        %757 = vmatpush1.bf16.msra.mxu0 %v736
        %758 = vmatprep.subr.bf16.mxu0 0
        %759 = vmatpush1.bf16.msra.mxu0 %v737
        %760 = vmatprep.subr.bf16.mxu0 0
        %761 = vmatpush1.bf16.msra.mxu0 %v738
        %762 = vmatprep.subr.bf16.mxu0 0
        %763 = vmatpush1.bf16.msra.mxu0 %v739
        %764 = vmatprep.subr.bf16.mxu0 0
        %765 = vmatpush1.bf16.msra.mxu0 0
        %766 = vmatprep.subr.bf16.mxu0 0
        %767 = vmatpush1.bf16.msra.mxu0 0
        %768 = vmatprep.subr.bf16.mxu0 0
        %769 = vmatpush1.bf16.msra.mxu0 0
        %770 = vmatprep.subr.bf16.mxu0 0
        %771 = vmatpush1.bf16.msra.mxu0 0
        %772 = vmatprep.subr.bf16.mxu0 0
        %773 = vmatpush1.bf16.msra.mxu0 0
        %774 = vmatprep.subr.bf16.mxu0 0
        %775 = vmatpush1.bf16.msra.mxu0 0
        %776 = vmatprep.subr.bf16.mxu0 0
        %777 = vmatpush1.bf16.msra.mxu0 0
        %778 = vmatprep.subr.bf16.mxu0 0
        %779 = vmatpush1.bf16.msra.mxu0 0
        %780 = vmatprep.subr.bf16.mxu0 0
        %781 = vmatpush1.bf16.msra.mxu0 0
        %782 = vmatprep.subr.bf16.mxu0 0
        %783 = vmatpush1.bf16.msra.mxu0 0
        %784 = vmatprep.subr.bf16.mxu0 0
        %785 = vmatpush1.bf16.msra.mxu0 0
        %786 = vmatprep.subr.bf16.mxu0 0
        %787 = vmatpush1.bf16.msra.mxu0 0
        %788 = vmatprep.mubr.bf16.mxu0 0
        %789 = vmatmul.mubr.bf16.gmra.mrb[0].mxu0 %v745
        %v790 = vpop.f32.mrb[0].mxu0
        %v791 = vadd.f32 %v719, %v790
        %v792 = vpop.f32.mrb[0].mxu0
        %v793 = vpop.f32.mrb[0].mxu0
        %v794 = vadd.f32 %v719, %v793
        %v795 = vpop.f32.mrb[0].mxu0
        %796 = vmatprep.mubr.bf16.mxu0 0
        %797 = vmatmul.mubr.bf16.gmra.mrb[0].mxu0 %v748
        %v798 = vpop.f32.mrb[0].mxu0
        %v799 = vadd.f32 %v719, %v798
        %v800 = vpop.f32.mrb[0].mxu0
        %v801 = vpop.f32.mrb[0].mxu0
        %v802 = vadd.f32 %v719, %v801
        %v803 = vpop.f32.mrb[0].mxu0
        %804 = vmatprep.mubr.bf16.mxu0 0
        %805 = vmatmul.mubr.bf16.gmra.mrb[0].mxu0 %v751
        %v806 = vpop.f32.mrb[0].mxu0
        %v807 = vadd.f32 %v719, %v806
        %v808 = vpop.f32.mrb[0].mxu0
        %v809 = vpop.f32.mrb[0].mxu0
        %v810 = vadd.f32 %v719, %v809
        %v811 = vpop.f32.mrb[0].mxu0
        %812 = vmatprep.mubr.bf16.mxu0 0
        %813 = vmatmul.mubr.bf16.gmra.mrb[0].mxu0 %v754
        %v814 = vpop.f32.mrb[0].mxu0
        %v815 = vadd.f32 %v719, %v814
        %v816 = vpop.f32.mrb[0].mxu0
        %v817 = vpop.f32.mrb[0].mxu0
        %v818 = vadd.f32 %v719, %v817
        %v819 = vpop.f32.mrb[0].mxu0
        %820 = vdwg.mxu0
        %v821 = vsel %vm502, %v791, 0.0
        %822 = vadd.xlane.f32.xlu0 %v821
        %v823 = vpop.xlane.xlu0 %822
        %v824 = vsel %vm502, %v794, 0.0
        %825 = vadd.xlane.f32.xlu0 %v824
        %v826 = vpop.xlane.xlu0 %825
        %v827 = vsel %vm502, %v799, 0.0
        %828 = vadd.xlane.f32.xlu0 %v827
        %v829 = vpop.xlane.xlu0 %828
        %v830 = vsel %vm502, %v802, 0.0
        %831 = vadd.xlane.f32.xlu0 %v830
        %v832 = vpop.xlane.xlu0 %831
        %v833 = vsel %vm502, %v807, 0.0
        %834 = vadd.xlane.f32.xlu0 %v833
        %v835 = vpop.xlane.xlu0 %834
        %v836 = vsel %vm502, %v810, 0.0
        %837 = vadd.xlane.f32.xlu0 %v836
        %v838 = vpop.xlane.xlu0 %837
        %v839 = vsel %vm502, %v815, 0.0
        %840 = vadd.xlane.f32.xlu0 %v839
        %v841 = vpop.xlane.xlu0 %840
        %v842 = vsel %vm502, %v818, 0.0
        %843 = vadd.xlane.f32.xlu0 %v842
        %v844 = vpop.xlane.xlu0 %843
        %v845 = vmul.f32 %v823, %v527
        %v846 = vmul.f32 %v826, %v527
        %v847 = vmul.f32 %v829, %v527
        %v848 = vmul.f32 %v832, %v527
        %v849 = vmul.f32 %v835, %v527
        %v850 = vmul.f32 %v838, %v527
        %v851 = vmul.f32 %v841, %v527
        %v852 = vmul.f32 %v844, %v527
        %v853 = vsub.f32 %v791, %v845
        %v854 = vsub.f32 %v794, %v846
        %v855 = vsub.f32 %v799, %v847
        %v856 = vsub.f32 %v802, %v848
        %v857 = vsub.f32 %v807, %v849
        %v858 = vsub.f32 %v810, %v850
        %v859 = vsub.f32 %v815, %v851
        %v860 = vsub.f32 %v818, %v852
        %v861 = vmul.f32 %v853, %v853
        %v862 = vmul.f32 %v854, %v854
        %v863 = vmul.f32 %v855, %v855
        %v864 = vmul.f32 %v856, %v856
        %v865 = vmul.f32 %v857, %v857
        %v866 = vmul.f32 %v858, %v858
        %v867 = vmul.f32 %v859, %v859
        %v868 = vmul.f32 %v860, %v860
        %v869 = vsel %vm502, %v861, 0.0
        %870 = vadd.xlane.f32.xlu0 %v869
        %v871 = vpop.xlane.xlu0 %870
        %v872 = vsel %vm502, %v862, 0.0
        %873 = vadd.xlane.f32.xlu0 %v872
        %v874 = vpop.xlane.xlu0 %873
        %v875 = vsel %vm502, %v863, 0.0
        %876 = vadd.xlane.f32.xlu0 %v875
        %v877 = vpop.xlane.xlu0 %876
        %v878 = vsel %vm502, %v864, 0.0
        %879 = vadd.xlane.f32.xlu0 %v878
        %v880 = vpop.xlane.xlu0 %879
        %v881 = vsel %vm502, %v865, 0.0
        %882 = vadd.xlane.f32.xlu0 %v881
        %v883 = vpop.xlane.xlu0 %882
        %v884 = vsel %vm502, %v866, 0.0
        %885 = vadd.xlane.f32.xlu0 %v884
        %v886 = vpop.xlane.xlu0 %885
        %v887 = vsel %vm502, %v867, 0.0
        %888 = vadd.xlane.f32.xlu0 %v887
        %v889 = vpop.xlane.xlu0 %888
        %v890 = vsel %vm502, %v868, 0.0
        %891 = vadd.xlane.f32.xlu0 %v890
        %v892 = vpop.xlane.xlu0 %891
        %v893 = vmul.f32 %v871, %v527
        %v894 = vmul.f32 %v874, %v527
        %v895 = vmul.f32 %v877, %v527
        %v896 = vmul.f32 %v880, %v527
        %v897 = vmul.f32 %v883, %v527
        %v898 = vmul.f32 %v886, %v527
        %v899 = vmul.f32 %v889, %v527
        %v900 = vmul.f32 %v892, %v527
        %v901 = vadd.f32 %v893, 1e-05
        %v902 = vadd.f32 %v894, 1e-05
        %v903 = vadd.f32 %v895, 1e-05
        %v904 = vadd.f32 %v896, 1e-05
        %v905 = vadd.f32 %v897, 1e-05
        %v906 = vadd.f32 %v898, 1e-05
        %v907 = vadd.f32 %v899, 1e-05
        %v908 = vadd.f32 %v900, 1e-05
        %v909 = vrsqrt.pop %v901
        %v910 = vrsqrt.pop %v902
        %v911 = vrsqrt.pop %v903
        %v912 = vrsqrt.pop %v904
        %v913 = vrsqrt.pop %v905
        %v914 = vrsqrt.pop %v906
        %v915 = vrsqrt.pop %v907
        %v916 = vrsqrt.pop %v908
        %v917 = vmul.f32 %v853, %v909
        %v918 = vmul.f32 %v854, %v910
        %v919 = vmul.f32 %v855, %v911
        %v920 = vmul.f32 %v856, %v912
        %v921 = vmul.f32 %v857, %v913
        %v922 = vmul.f32 %v858, %v914
        %v923 = vmul.f32 %v859, %v915
        %v924 = vmul.f32 %v860, %v916
        %v925 = vlaneseq
        %v926 = vshrl.u32 %v925, 7
        %v927 = vsub.s32 4, %v926
        %v928 = vrot.slane %v481, %v927
        %v929 = vmul.f32 %v917, %v928
        %v930 = vmul.f32 %v918, %v928
        %v931 = vmul.f32 %v919, %v928
        %v932 = vmul.f32 %v920, %v928
        %v933 = vmul.f32 %v921, %v928
        %v934 = vmul.f32 %v922, %v928
        %v935 = vmul.f32 %v923, %v928
        %v936 = vmul.f32 %v924, %v928
        %v937 = vlaneseq
        %v938 = vshrl.u32 %v937, 7
        %v939 = vsub.s32 5, %v938
        %v940 = vrot.slane %v481, %v939
        %v941 = vadd.f32 %v929, %v940
        %v942 = vadd.f32 %v930, %v940
        %v943 = vadd.f32 %v931, %v940
        %v944 = vadd.f32 %v932, %v940
        %v945 = vadd.f32 %v933, %v940
        %v946 = vadd.f32 %v934, %v940
        %v947 = vadd.f32 %v935, %v940
        %v948 = vadd.f32 %v936, %v940
        %v949 = vmin.f32 %v941, 20.0
        %v950 = vmin.f32 %v942, 20.0
        %v951 = vmin.f32 %v943, 20.0
        %v952 = vmin.f32 %v944, 20.0
        %v953 = vmin.f32 %v945, 20.0
        %v954 = vmin.f32 %v946, 20.0
        %v955 = vmin.f32 %v947, 20.0
        %v956 = vmin.f32 %v948, 20.0
        %v957 = vmul.f32 %v949, 1.442695
        %v958 = vpow.pop %v957
        %v959 = vmul.f32 %v950, 1.442695
        %v960 = vpow.pop %v959
        %v961 = vmul.f32 %v951, 1.442695
        %v962 = vpow.pop %v961
        %v963 = vmul.f32 %v952, 1.442695
        %v964 = vpow.pop %v963
        %v965 = vmul.f32 %v953, 1.442695
        %v966 = vpow.pop %v965
        %v967 = vmul.f32 %v954, 1.442695
        %v968 = vpow.pop %v967
        %v969 = vmul.f32 %v955, 1.442695
        %v970 = vpow.pop %v969
        %v971 = vmul.f32 %v956, 1.442695
        %v972 = vpow.pop %v971
        %v973 = vadd.f32 %v958, 2.0
        %v974 = vadd.f32 %v960, 2.0
        %v975 = vadd.f32 %v962, 2.0
        %v976 = vadd.f32 %v964, 2.0
        %v977 = vadd.f32 %v966, 2.0
        %v978 = vadd.f32 %v968, 2.0
        %v979 = vadd.f32 %v970, 2.0
        %v980 = vadd.f32 %v972, 2.0
        %v981 = vmul.f32 %v958, %v973
        %v982 = vmul.f32 %v960, %v974
        %v983 = vmul.f32 %v962, %v975
        %v984 = vmul.f32 %v964, %v976
        %v985 = vmul.f32 %v966, %v977
        %v986 = vmul.f32 %v968, %v978
        %v987 = vmul.f32 %v970, %v979
        %v988 = vmul.f32 %v972, %v980
        %v989 = vadd.f32 %v981, 2.0
        %v990 = vadd.f32 %v982, 2.0
        %v991 = vadd.f32 %v983, 2.0
        %v992 = vadd.f32 %v984, 2.0
        %v993 = vadd.f32 %v985, 2.0
        %v994 = vadd.f32 %v986, 2.0
        %v995 = vadd.f32 %v987, 2.0
        %v996 = vadd.f32 %v988, 2.0
        %v997 = vrcp.pop %v989
        %v998 = vmul.f32 %v981, %v997
        %v999 = vrcp.pop %v990
        %v1000 = vmul.f32 %v982, %v999
        %v1001 = vrcp.pop %v991
        %v1002 = vmul.f32 %v983, %v1001
        %v1003 = vrcp.pop %v992
        %v1004 = vmul.f32 %v984, %v1003
        %v1005 = vrcp.pop %v993
        %v1006 = vmul.f32 %v985, %v1005
        %v1007 = vrcp.pop %v994
        %v1008 = vmul.f32 %v986, %v1007
        %v1009 = vrcp.pop %v995
        %v1010 = vmul.f32 %v987, %v1009
        %v1011 = vrcp.pop %v996
        %v1012 = vmul.f32 %v988, %v1011
        %v1013 = vmul.f32 %v941, %v998
        %v1014 = vmul.f32 %v942, %v1000
        %v1015 = vmul.f32 %v943, %v1002
        %v1016 = vmul.f32 %v944, %v1004
        %v1017 = vmul.f32 %v945, %v1006
        %v1018 = vmul.f32 %v946, %v1008
        %v1019 = vmul.f32 %v947, %v1010
        %v1020 = vmul.f32 %v948, %v1012
        %v1021 = vpack.c.bf16 %v1014, %v1013
        %v1022 = vpack.c.bf16 %v1016, %v1015
        %v1023 = vpack.c.bf16 %v1018, %v1017
        %v1024 = vpack.c.bf16 %v1020, %v1019
        %v1025 = vld [vmem:[%s3] sm:$0xf]
        %v1026 = vld [vmem:[%s3 + $0x4] sm:$0xf]
        %v1027 = vld [vmem:[%s3 + $0x8] sm:$0xf]
        %v1028 = vld [vmem:[%s3 + $0xc] sm:$0xf]
        %v1029 = vld [vmem:[%s3 + $0x10] sm:$0xf]
        %v1030 = vld [vmem:[%s3 + $0x14] sm:$0xf]
        %v1031 = vld [vmem:[%s3 + $0x18] sm:$0xf]
        %v1032 = vld [vmem:[%s3 + $0x1c] sm:$0xf]
        %s1033 = scalar_lea.vmem %s4, 8
        %v1034 = vld [vmem:[%s1033] sm:$0x3f]
        %s1035 = scalar_lea.vmem [#allocation2], 8
        %v1036 = vld [vmem:[%s1035] sm:$0xff]
        %v1037 = vld [vmem:[%s1035 + $0x18] sm:$0xff]
        %v1038 = vld [vmem:[%s1035 + $0x30] sm:$0xff]
        %v1039 = vld [vmem:[%s1035 + $0x48] sm:$0xff]
        %v1040 = vld [vmem:[%s1035 + $0x60] sm:$0xff]
        %v1041 = vld [vmem:[%s1035 + $0x78] sm:$0xff]
        %v1042 = vld [vmem:[%s1035 + $0x90] sm:$0xff]
        %v1043 = vld [vmem:[%s1035 + $0xa8] sm:$0xff]
        %v1044 = vlaneseq
        %v1045 = vshrl.u32 %v1044, 7
        %v1046 = vsub.s32 0, %v1045
        %v1047 = vrot.slane %v1034, %v1046
        %v1048 = vadd.f32 %v1036, %v1047
        %v1049 = vadd.f32 %v1037, %v1047
        %v1050 = vadd.f32 %v1038, %v1047
        %v1051 = vadd.f32 %v1039, %v1047
        %v1052 = vadd.f32 %v1040, %v1047
        %v1053 = vadd.f32 %v1041, %v1047
        %v1054 = vadd.f32 %v1042, %v1047
        %v1055 = vadd.f32 %v1043, %v1047
        %v1056 = vsel %vm502, %v1048, 0.0
        %1057 = vadd.xlane.f32.xlu0 %v1056
        %v1058 = vpop.xlane.xlu0 %1057
        %v1059 = vsel %vm502, %v1049, 0.0
        %1060 = vadd.xlane.f32.xlu0 %v1059
        %v1061 = vpop.xlane.xlu0 %1060
        %v1062 = vsel %vm502, %v1050, 0.0
        %1063 = vadd.xlane.f32.xlu0 %v1062
        %v1064 = vpop.xlane.xlu0 %1063
        %v1065 = vsel %vm502, %v1051, 0.0
        %1066 = vadd.xlane.f32.xlu0 %v1065
        %v1067 = vpop.xlane.xlu0 %1066
        %v1068 = vsel %vm502, %v1052, 0.0
        %1069 = vadd.xlane.f32.xlu0 %v1068
        %v1070 = vpop.xlane.xlu0 %1069
        %v1071 = vsel %vm502, %v1053, 0.0
        %1072 = vadd.xlane.f32.xlu0 %v1071
        %v1073 = vpop.xlane.xlu0 %1072
        %v1074 = vsel %vm502, %v1054, 0.0
        %1075 = vadd.xlane.f32.xlu0 %v1074
        %v1076 = vpop.xlane.xlu0 %1075
        %v1077 = vsel %vm502, %v1055, 0.0
        %1078 = vadd.xlane.f32.xlu0 %v1077
        %v1079 = vpop.xlane.xlu0 %1078
        %v1080 = vmul.f32 %v1058, %v527
        %v1081 = vmul.f32 %v1061, %v527
        %v1082 = vmul.f32 %v1064, %v527
        %v1083 = vmul.f32 %v1067, %v527
        %v1084 = vmul.f32 %v1070, %v527
        %v1085 = vmul.f32 %v1073, %v527
        %v1086 = vmul.f32 %v1076, %v527
        %v1087 = vmul.f32 %v1079, %v527
        %v1088 = vsub.f32 %v1048, %v1080
        %v1089 = vsub.f32 %v1049, %v1081
        %v1090 = vsub.f32 %v1050, %v1082
        %v1091 = vsub.f32 %v1051, %v1083
        %v1092 = vsub.f32 %v1052, %v1084
        %v1093 = vsub.f32 %v1053, %v1085
        %v1094 = vsub.f32 %v1054, %v1086
        %v1095 = vsub.f32 %v1055, %v1087
        %v1096 = vmul.f32 %v1088, %v1088
        %v1097 = vmul.f32 %v1089, %v1089
        %v1098 = vmul.f32 %v1090, %v1090
        %v1099 = vmul.f32 %v1091, %v1091
        %v1100 = vmul.f32 %v1092, %v1092
        %v1101 = vmul.f32 %v1093, %v1093
        %v1102 = vmul.f32 %v1094, %v1094
        %v1103 = vmul.f32 %v1095, %v1095
        %v1104 = vsel %vm502, %v1096, 0.0
        %1105 = vadd.xlane.f32.xlu0 %v1104
        %v1106 = vpop.xlane.xlu0 %1105
        %v1107 = vsel %vm502, %v1097, 0.0
        %1108 = vadd.xlane.f32.xlu0 %v1107
        %v1109 = vpop.xlane.xlu0 %1108
        %v1110 = vsel %vm502, %v1098, 0.0
        %1111 = vadd.xlane.f32.xlu0 %v1110
        %v1112 = vpop.xlane.xlu0 %1111
        %v1113 = vsel %vm502, %v1099, 0.0
        %1114 = vadd.xlane.f32.xlu0 %v1113
        %v1115 = vpop.xlane.xlu0 %1114
        %v1116 = vsel %vm502, %v1100, 0.0
        %1117 = vadd.xlane.f32.xlu0 %v1116
        %v1118 = vpop.xlane.xlu0 %1117
        %v1119 = vsel %vm502, %v1101, 0.0
        %1120 = vadd.xlane.f32.xlu0 %v1119
        %v1121 = vpop.xlane.xlu0 %1120
        %v1122 = vsel %vm502, %v1102, 0.0
        %1123 = vadd.xlane.f32.xlu0 %v1122
        %v1124 = vpop.xlane.xlu0 %1123
        %v1125 = vsel %vm502, %v1103, 0.0
        %1126 = vadd.xlane.f32.xlu0 %v1125
        %v1127 = vpop.xlane.xlu0 %1126
        %v1128 = vmul.f32 %v1106, %v527
        %v1129 = vmul.f32 %v1109, %v527
        %v1130 = vmul.f32 %v1112, %v527
        %v1131 = vmul.f32 %v1115, %v527
        %v1132 = vmul.f32 %v1118, %v527
        %v1133 = vmul.f32 %v1121, %v527
        %v1134 = vmul.f32 %v1124, %v527
        %v1135 = vmul.f32 %v1127, %v527
        %v1136 = vadd.f32 %v1128, 1e-05
        %v1137 = vadd.f32 %v1129, 1e-05
        %v1138 = vadd.f32 %v1130, 1e-05
        %v1139 = vadd.f32 %v1131, 1e-05
        %v1140 = vadd.f32 %v1132, 1e-05
        %v1141 = vadd.f32 %v1133, 1e-05
        %v1142 = vadd.f32 %v1134, 1e-05
        %v1143 = vadd.f32 %v1135, 1e-05
        %v1144 = vrsqrt.pop %v1136
        %v1145 = vrsqrt.pop %v1137
        %v1146 = vrsqrt.pop %v1138
        %v1147 = vrsqrt.pop %v1139
        %v1148 = vrsqrt.pop %v1140
        %v1149 = vrsqrt.pop %v1141
        %v1150 = vrsqrt.pop %v1142
        %v1151 = vrsqrt.pop %v1143
        %v1152 = vmul.f32 %v1088, %v1144
        %v1153 = vmul.f32 %v1089, %v1145
        %v1154 = vmul.f32 %v1090, %v1146
        %v1155 = vmul.f32 %v1091, %v1147
        %v1156 = vmul.f32 %v1092, %v1148
        %v1157 = vmul.f32 %v1093, %v1149
        %v1158 = vmul.f32 %v1094, %v1150
        %v1159 = vmul.f32 %v1095, %v1151
        %v1160 = vlaneseq
        %v1161 = vshrl.u32 %v1160, 7
        %v1162 = vsub.s32 1, %v1161
        %v1163 = vrot.slane %v1034, %v1162
        %v1164 = vmul.f32 %v1152, %v1163
        %v1165 = vmul.f32 %v1153, %v1163
        %v1166 = vmul.f32 %v1154, %v1163
        %v1167 = vmul.f32 %v1155, %v1163
        %v1168 = vmul.f32 %v1156, %v1163
        %v1169 = vmul.f32 %v1157, %v1163
        %v1170 = vmul.f32 %v1158, %v1163
        %v1171 = vmul.f32 %v1159, %v1163
        %v1172 = vlaneseq
        %v1173 = vshrl.u32 %v1172, 7
        %v1174 = vsub.s32 2, %v1173
        %v1175 = vrot.slane %v1034, %v1174
        %v1176 = vadd.f32 %v1164, %v1175
        %v1177 = vadd.f32 %v1165, %v1175
        %v1178 = vadd.f32 %v1166, %v1175
        %v1179 = vadd.f32 %v1167, %v1175
        %v1180 = vadd.f32 %v1168, %v1175
        %v1181 = vadd.f32 %v1169, %v1175
        %v1182 = vadd.f32 %v1170, %v1175
        %v1183 = vadd.f32 %v1171, %v1175
        %v1184 = vmin.f32 %v1176, 20.0
        %v1185 = vmin.f32 %v1177, 20.0
        %v1186 = vmin.f32 %v1178, 20.0
        %v1187 = vmin.f32 %v1179, 20.0
        %v1188 = vmin.f32 %v1180, 20.0
        %v1189 = vmin.f32 %v1181, 20.0
        %v1190 = vmin.f32 %v1182, 20.0
        %v1191 = vmin.f32 %v1183, 20.0
        %v1192 = vmul.f32 %v1184, 1.442695
        %v1193 = vpow.pop %v1192
        %v1194 = vmul.f32 %v1185, 1.442695
        %v1195 = vpow.pop %v1194
        %v1196 = vmul.f32 %v1186, 1.442695
        %v1197 = vpow.pop %v1196
        %v1198 = vmul.f32 %v1187, 1.442695
        %v1199 = vpow.pop %v1198
        %v1200 = vmul.f32 %v1188, 1.442695
        %v1201 = vpow.pop %v1200
        %v1202 = vmul.f32 %v1189, 1.442695
        %v1203 = vpow.pop %v1202
        %v1204 = vmul.f32 %v1190, 1.442695
        %v1205 = vpow.pop %v1204
        %v1206 = vmul.f32 %v1191, 1.442695
        %v1207 = vpow.pop %v1206
        %v1208 = vadd.f32 %v1193, 2.0
        %v1209 = vadd.f32 %v1195, 2.0
        %v1210 = vadd.f32 %v1197, 2.0
        %v1211 = vadd.f32 %v1199, 2.0
        %v1212 = vadd.f32 %v1201, 2.0
        %v1213 = vadd.f32 %v1203, 2.0
        %v1214 = vadd.f32 %v1205, 2.0
        %v1215 = vadd.f32 %v1207, 2.0
        %v1216 = vmul.f32 %v1193, %v1208
        %v1217 = vmul.f32 %v1195, %v1209
        %v1218 = vmul.f32 %v1197, %v1210
        %v1219 = vmul.f32 %v1199, %v1211
        %v1220 = vmul.f32 %v1201, %v1212
        %v1221 = vmul.f32 %v1203, %v1213
        %v1222 = vmul.f32 %v1205, %v1214
        %v1223 = vmul.f32 %v1207, %v1215
        %v1224 = vadd.f32 %v1216, 2.0
        %v1225 = vadd.f32 %v1217, 2.0
        %v1226 = vadd.f32 %v1218, 2.0
        %v1227 = vadd.f32 %v1219, 2.0
        %v1228 = vadd.f32 %v1220, 2.0
        %v1229 = vadd.f32 %v1221, 2.0
        %v1230 = vadd.f32 %v1222, 2.0
        %v1231 = vadd.f32 %v1223, 2.0
        %v1232 = vrcp.pop %v1224
        %v1233 = vmul.f32 %v1216, %v1232
        %v1234 = vrcp.pop %v1225
        %v1235 = vmul.f32 %v1217, %v1234
        %v1236 = vrcp.pop %v1226
        %v1237 = vmul.f32 %v1218, %v1236
        %v1238 = vrcp.pop %v1227
        %v1239 = vmul.f32 %v1219, %v1238
        %v1240 = vrcp.pop %v1228
        %v1241 = vmul.f32 %v1220, %v1240
        %v1242 = vrcp.pop %v1229
        %v1243 = vmul.f32 %v1221, %v1242
        %v1244 = vrcp.pop %v1230
        %v1245 = vmul.f32 %v1222, %v1244
        %v1246 = vrcp.pop %v1231
        %v1247 = vmul.f32 %v1223, %v1246
        %v1248 = vmul.f32 %v1176, %v1233
        %v1249 = vmul.f32 %v1177, %v1235
        %v1250 = vmul.f32 %v1178, %v1237
        %v1251 = vmul.f32 %v1179, %v1239
        %v1252 = vmul.f32 %v1180, %v1241
        %v1253 = vmul.f32 %v1181, %v1243
        %v1254 = vmul.f32 %v1182, %v1245
        %v1255 = vmul.f32 %v1183, %v1247
        %v1256 = vpack.c.bf16 %v1249, %v1248
        %v1257 = vpack.c.bf16 %v1251, %v1250
        %v1258 = vpack.c.bf16 %v1253, %v1252
        %v1259 = vpack.c.bf16 %v1255, %v1254
        %s1260 = scalar_lea.vmem %s2, 32
        %v1261 = vld [vmem:[%s1260] sm:$0xf]
        %v1262 = vld [vmem:[%s1260 + $0x4] sm:$0xf]
        %v1263 = vld [vmem:[%s1260 + $0x8] sm:$0xf]
        %v1264 = vld [vmem:[%s1260 + $0xc] sm:$0xf]
        %v1265 = vld [vmem:[%s1260 + $0x10] sm:$0xf]
        %v1266 = vld [vmem:[%s1260 + $0x14] sm:$0xf]
        %v1267 = vld [vmem:[%s1260 + $0x18] sm:$0xf]
        %v1268 = vld [vmem:[%s1260 + $0x1c] sm:$0xf]
        %v1269 = vlaneseq
        %v1270 = vshrl.u32 %v1269, 7
        %v1271 = vsub.s32 3, %v1270
        %v1272 = vrot.slane %v1034, %v1271
        %v1281 = vunpack.c.l.b16 %v1261
        %v1282 = vunpack.c.l.b16 %v1262
        %v1283 = vunpack.c.l.b16 %v1263
        %v1284 = vunpack.c.l.b16 %v1264
        %v1285 = vunpack.c.l.b16 %v1265
        %v1286 = vunpack.c.l.b16 %v1266
        %v1287 = vunpack.c.l.b16 %v1267
        %v1288 = vunpack.c.l.b16 %v1268
        %v1289 = vpack.c.b16 %v1282, %v1281
        %v1290 = vpack.c.b16 %v1284, %v1283
        %v1291 = vpack.c.b16 %v1286, %v1285
        %v1292 = vpack.c.b16 %v1288, %v1287
        %v1298 = vsel %vm502, %v1256, 0
        %v1301 = vsel %vm502, %v1257, 0
        %v1304 = vsel %vm502, %v1258, 0
        %v1307 = vsel %vm502, %v1259, 0
        %1309 = vmatprep.subr.bf16.mxu0 0
        %1310 = vmatpush1.bf16.msra.mxu0 %v1289
        %1311 = vmatprep.subr.bf16.mxu0 0
        %1312 = vmatpush1.bf16.msra.mxu0 %v1290
        %1313 = vmatprep.subr.bf16.mxu0 0
        %1314 = vmatpush1.bf16.msra.mxu0 %v1291
        %1315 = vmatprep.subr.bf16.mxu0 0
        %1316 = vmatpush1.bf16.msra.mxu0 %v1292
        %1317 = vmatprep.subr.bf16.mxu0 0
        %1318 = vmatpush1.bf16.msra.mxu0 0
        %1319 = vmatprep.subr.bf16.mxu0 0
        %1320 = vmatpush1.bf16.msra.mxu0 0
        %1321 = vmatprep.subr.bf16.mxu0 0
        %1322 = vmatpush1.bf16.msra.mxu0 0
        %1323 = vmatprep.subr.bf16.mxu0 0
        %1324 = vmatpush1.bf16.msra.mxu0 0
        %1325 = vmatprep.subr.bf16.mxu0 0
        %1326 = vmatpush1.bf16.msra.mxu0 0
        %1327 = vmatprep.subr.bf16.mxu0 0
        %1328 = vmatpush1.bf16.msra.mxu0 0
        %1329 = vmatprep.subr.bf16.mxu0 0
        %1330 = vmatpush1.bf16.msra.mxu0 0
        %1331 = vmatprep.subr.bf16.mxu0 0
        %1332 = vmatpush1.bf16.msra.mxu0 0
        %1333 = vmatprep.subr.bf16.mxu0 0
        %1334 = vmatpush1.bf16.msra.mxu0 0
        %1335 = vmatprep.subr.bf16.mxu0 0
        %1336 = vmatpush1.bf16.msra.mxu0 0
        %1337 = vmatprep.subr.bf16.mxu0 0
        %1338 = vmatpush1.bf16.msra.mxu0 0
        %1339 = vmatprep.subr.bf16.mxu0 0
        %1340 = vmatpush1.bf16.msra.mxu0 0
        %1341 = vmatprep.mubr.bf16.mxu0 0
        %1342 = vmatmul.mubr.bf16.gmra.mrb[0].mxu0 %v1298
        %v1343 = vpop.f32.mrb[0].mxu0
        %v1344 = vadd.f32 %v1272, %v1343
        %v1345 = vpop.f32.mrb[0].mxu0
        %v1346 = vpop.f32.mrb[0].mxu0
        %v1347 = vadd.f32 %v1272, %v1346
        %v1348 = vpop.f32.mrb[0].mxu0
        %1349 = vmatprep.mubr.bf16.mxu0 0
        %1350 = vmatmul.mubr.bf16.gmra.mrb[0].mxu0 %v1301
        %v1351 = vpop.f32.mrb[0].mxu0
        %v1352 = vadd.f32 %v1272, %v1351
        %v1353 = vpop.f32.mrb[0].mxu0
        %v1354 = vpop.f32.mrb[0].mxu0
        %v1355 = vadd.f32 %v1272, %v1354
        %v1356 = vpop.f32.mrb[0].mxu0
        %1357 = vmatprep.mubr.bf16.mxu0 0
        %1358 = vmatmul.mubr.bf16.gmra.mrb[0].mxu0 %v1304
        %v1359 = vpop.f32.mrb[0].mxu0
        %v1360 = vadd.f32 %v1272, %v1359
        %v1361 = vpop.f32.mrb[0].mxu0
        %v1362 = vpop.f32.mrb[0].mxu0
        %v1363 = vadd.f32 %v1272, %v1362
        %v1364 = vpop.f32.mrb[0].mxu0
        %1365 = vmatprep.mubr.bf16.mxu0 0
        %1366 = vmatmul.mubr.bf16.gmra.mrb[0].mxu0 %v1307
        %v1367 = vpop.f32.mrb[0].mxu0
        %v1368 = vadd.f32 %v1272, %v1367
        %v1369 = vpop.f32.mrb[0].mxu0
        %v1370 = vpop.f32.mrb[0].mxu0
        %v1371 = vadd.f32 %v1272, %v1370
        %v1372 = vpop.f32.mrb[0].mxu0
        %1373 = vdwg.mxu0
        %v1374 = vsel %vm502, %v1344, 0.0
        %1375 = vadd.xlane.f32.xlu0 %v1374
        %v1376 = vpop.xlane.xlu0 %1375
        %v1377 = vsel %vm502, %v1347, 0.0
        %1378 = vadd.xlane.f32.xlu0 %v1377
        %v1379 = vpop.xlane.xlu0 %1378
        %v1380 = vsel %vm502, %v1352, 0.0
        %1381 = vadd.xlane.f32.xlu0 %v1380
        %v1382 = vpop.xlane.xlu0 %1381
        %v1383 = vsel %vm502, %v1355, 0.0
        %1384 = vadd.xlane.f32.xlu0 %v1383
        %v1385 = vpop.xlane.xlu0 %1384
        %v1386 = vsel %vm502, %v1360, 0.0
        %1387 = vadd.xlane.f32.xlu0 %v1386
        %v1388 = vpop.xlane.xlu0 %1387
        %v1389 = vsel %vm502, %v1363, 0.0
        %1390 = vadd.xlane.f32.xlu0 %v1389
        %v1391 = vpop.xlane.xlu0 %1390
        %v1392 = vsel %vm502, %v1368, 0.0
        %1393 = vadd.xlane.f32.xlu0 %v1392
        %v1394 = vpop.xlane.xlu0 %1393
        %v1395 = vsel %vm502, %v1371, 0.0
        %1396 = vadd.xlane.f32.xlu0 %v1395
        %v1397 = vpop.xlane.xlu0 %1396
        %v1398 = vmul.f32 %v1376, %v527
        %v1399 = vmul.f32 %v1379, %v527
        %v1400 = vmul.f32 %v1382, %v527
        %v1401 = vmul.f32 %v1385, %v527
        %v1402 = vmul.f32 %v1388, %v527
        %v1403 = vmul.f32 %v1391, %v527
        %v1404 = vmul.f32 %v1394, %v527
        %v1405 = vmul.f32 %v1397, %v527
        %v1406 = vsub.f32 %v1344, %v1398
        %v1407 = vsub.f32 %v1347, %v1399
        %v1408 = vsub.f32 %v1352, %v1400
        %v1409 = vsub.f32 %v1355, %v1401
        %v1410 = vsub.f32 %v1360, %v1402
        %v1411 = vsub.f32 %v1363, %v1403
        %v1412 = vsub.f32 %v1368, %v1404
        %v1413 = vsub.f32 %v1371, %v1405
        %v1414 = vmul.f32 %v1406, %v1406
        %v1415 = vmul.f32 %v1407, %v1407
        %v1416 = vmul.f32 %v1408, %v1408
        %v1417 = vmul.f32 %v1409, %v1409
        %v1418 = vmul.f32 %v1410, %v1410
        %v1419 = vmul.f32 %v1411, %v1411
        %v1420 = vmul.f32 %v1412, %v1412
        %v1421 = vmul.f32 %v1413, %v1413
        %v1422 = vsel %vm502, %v1414, 0.0
        %1423 = vadd.xlane.f32.xlu0 %v1422
        %v1424 = vpop.xlane.xlu0 %1423
        %v1425 = vsel %vm502, %v1415, 0.0
        %1426 = vadd.xlane.f32.xlu0 %v1425
        %v1427 = vpop.xlane.xlu0 %1426
        %v1428 = vsel %vm502, %v1416, 0.0
        %1429 = vadd.xlane.f32.xlu0 %v1428
        %v1430 = vpop.xlane.xlu0 %1429
        %v1431 = vsel %vm502, %v1417, 0.0
        %1432 = vadd.xlane.f32.xlu0 %v1431
        %v1433 = vpop.xlane.xlu0 %1432
        %v1434 = vsel %vm502, %v1418, 0.0
        %1435 = vadd.xlane.f32.xlu0 %v1434
        %v1436 = vpop.xlane.xlu0 %1435
        %v1437 = vsel %vm502, %v1419, 0.0
        %1438 = vadd.xlane.f32.xlu0 %v1437
        %v1439 = vpop.xlane.xlu0 %1438
        %v1440 = vsel %vm502, %v1420, 0.0
        %1441 = vadd.xlane.f32.xlu0 %v1440
        %v1442 = vpop.xlane.xlu0 %1441
        %v1443 = vsel %vm502, %v1421, 0.0
        %1444 = vadd.xlane.f32.xlu0 %v1443
        %v1445 = vpop.xlane.xlu0 %1444
        %v1446 = vmul.f32 %v1424, %v527
        %v1447 = vmul.f32 %v1427, %v527
        %v1448 = vmul.f32 %v1430, %v527
        %v1449 = vmul.f32 %v1433, %v527
        %v1450 = vmul.f32 %v1436, %v527
        %v1451 = vmul.f32 %v1439, %v527
        %v1452 = vmul.f32 %v1442, %v527
        %v1453 = vmul.f32 %v1445, %v527
        %v1454 = vadd.f32 %v1446, 1e-05
        %v1455 = vadd.f32 %v1447, 1e-05
        %v1456 = vadd.f32 %v1448, 1e-05
        %v1457 = vadd.f32 %v1449, 1e-05
        %v1458 = vadd.f32 %v1450, 1e-05
        %v1459 = vadd.f32 %v1451, 1e-05
        %v1460 = vadd.f32 %v1452, 1e-05
        %v1461 = vadd.f32 %v1453, 1e-05
        %v1462 = vrsqrt.pop %v1454
        %v1463 = vrsqrt.pop %v1455
        %v1464 = vrsqrt.pop %v1456
        %v1465 = vrsqrt.pop %v1457
        %v1466 = vrsqrt.pop %v1458
        %v1467 = vrsqrt.pop %v1459
        %v1468 = vrsqrt.pop %v1460
        %v1469 = vrsqrt.pop %v1461
        %v1470 = vmul.f32 %v1406, %v1462
        %v1471 = vmul.f32 %v1407, %v1463
        %v1472 = vmul.f32 %v1408, %v1464
        %v1473 = vmul.f32 %v1409, %v1465
        %v1474 = vmul.f32 %v1410, %v1466
        %v1475 = vmul.f32 %v1411, %v1467
        %v1476 = vmul.f32 %v1412, %v1468
        %v1477 = vmul.f32 %v1413, %v1469
        %v1478 = vlaneseq
        %v1479 = vshrl.u32 %v1478, 7
        %v1480 = vsub.s32 4, %v1479
        %v1481 = vrot.slane %v1034, %v1480
        %v1482 = vmul.f32 %v1470, %v1481
        %v1483 = vmul.f32 %v1471, %v1481
        %v1484 = vmul.f32 %v1472, %v1481
        %v1485 = vmul.f32 %v1473, %v1481
        %v1486 = vmul.f32 %v1474, %v1481
        %v1487 = vmul.f32 %v1475, %v1481
        %v1488 = vmul.f32 %v1476, %v1481
        %v1489 = vmul.f32 %v1477, %v1481
        %v1490 = vlaneseq
        %v1491 = vshrl.u32 %v1490, 7
        %v1492 = vsub.s32 5, %v1491
        %v1493 = vrot.slane %v1034, %v1492
        %v1494 = vadd.f32 %v1482, %v1493
        %v1495 = vadd.f32 %v1483, %v1493
        %v1496 = vadd.f32 %v1484, %v1493
        %v1497 = vadd.f32 %v1485, %v1493
        %v1498 = vadd.f32 %v1486, %v1493
        %v1499 = vadd.f32 %v1487, %v1493
        %v1500 = vadd.f32 %v1488, %v1493
        %v1501 = vadd.f32 %v1489, %v1493
        %v1502 = vmin.f32 %v1494, 20.0
        %v1503 = vmin.f32 %v1495, 20.0
        %v1504 = vmin.f32 %v1496, 20.0
        %v1505 = vmin.f32 %v1497, 20.0
        %v1506 = vmin.f32 %v1498, 20.0
        %v1507 = vmin.f32 %v1499, 20.0
        %v1508 = vmin.f32 %v1500, 20.0
        %v1509 = vmin.f32 %v1501, 20.0
        %v1510 = vmul.f32 %v1502, 1.442695
        %v1511 = vpow.pop %v1510
        %v1512 = vmul.f32 %v1503, 1.442695
        %v1513 = vpow.pop %v1512
        %v1514 = vmul.f32 %v1504, 1.442695
        %v1515 = vpow.pop %v1514
        %v1516 = vmul.f32 %v1505, 1.442695
        %v1517 = vpow.pop %v1516
        %v1518 = vmul.f32 %v1506, 1.442695
        %v1519 = vpow.pop %v1518
        %v1520 = vmul.f32 %v1507, 1.442695
        %v1521 = vpow.pop %v1520
        %v1522 = vmul.f32 %v1508, 1.442695
        %v1523 = vpow.pop %v1522
        %v1524 = vmul.f32 %v1509, 1.442695
        %v1525 = vpow.pop %v1524
        %v1526 = vadd.f32 %v1511, 2.0
        %v1527 = vadd.f32 %v1513, 2.0
        %v1528 = vadd.f32 %v1515, 2.0
        %v1529 = vadd.f32 %v1517, 2.0
        %v1530 = vadd.f32 %v1519, 2.0
        %v1531 = vadd.f32 %v1521, 2.0
        %v1532 = vadd.f32 %v1523, 2.0
        %v1533 = vadd.f32 %v1525, 2.0
        %v1534 = vmul.f32 %v1511, %v1526
        %v1535 = vmul.f32 %v1513, %v1527
        %v1536 = vmul.f32 %v1515, %v1528
        %v1537 = vmul.f32 %v1517, %v1529
        %v1538 = vmul.f32 %v1519, %v1530
        %v1539 = vmul.f32 %v1521, %v1531
        %v1540 = vmul.f32 %v1523, %v1532
        %v1541 = vmul.f32 %v1525, %v1533
        %v1542 = vadd.f32 %v1534, 2.0
        %v1543 = vadd.f32 %v1535, 2.0
        %v1544 = vadd.f32 %v1536, 2.0
        %v1545 = vadd.f32 %v1537, 2.0
        %v1546 = vadd.f32 %v1538, 2.0
        %v1547 = vadd.f32 %v1539, 2.0
        %v1548 = vadd.f32 %v1540, 2.0
        %v1549 = vadd.f32 %v1541, 2.0
        %v1550 = vrcp.pop %v1542
        %v1551 = vmul.f32 %v1534, %v1550
        %v1552 = vrcp.pop %v1543
        %v1553 = vmul.f32 %v1535, %v1552
        %v1554 = vrcp.pop %v1544
        %v1555 = vmul.f32 %v1536, %v1554
        %v1556 = vrcp.pop %v1545
        %v1557 = vmul.f32 %v1537, %v1556
        %v1558 = vrcp.pop %v1546
        %v1559 = vmul.f32 %v1538, %v1558
        %v1560 = vrcp.pop %v1547
        %v1561 = vmul.f32 %v1539, %v1560
        %v1562 = vrcp.pop %v1548
        %v1563 = vmul.f32 %v1540, %v1562
        %v1564 = vrcp.pop %v1549
        %v1565 = vmul.f32 %v1541, %v1564
        %v1566 = vmul.f32 %v1494, %v1551
        %v1567 = vmul.f32 %v1495, %v1553
        %v1568 = vmul.f32 %v1496, %v1555
        %v1569 = vmul.f32 %v1497, %v1557
        %v1570 = vmul.f32 %v1498, %v1559
        %v1571 = vmul.f32 %v1499, %v1561
        %v1572 = vmul.f32 %v1500, %v1563
        %v1573 = vmul.f32 %v1501, %v1565
        %v1574 = vpack.c.bf16 %v1567, %v1566
        %v1575 = vpack.c.bf16 %v1569, %v1568
        %v1576 = vpack.c.bf16 %v1571, %v1570
        %v1577 = vpack.c.bf16 %v1573, %v1572
        %s1578 = scalar_lea.vmem %s3, 32
        %v1579 = vld [vmem:[%s1578] sm:$0xf]
        %v1580 = vld [vmem:[%s1578 + $0x4] sm:$0xf]
        %v1581 = vld [vmem:[%s1578 + $0x8] sm:$0xf]
        %v1582 = vld [vmem:[%s1578 + $0xc] sm:$0xf]
        %v1583 = vld [vmem:[%s1578 + $0x10] sm:$0xf]
        %v1584 = vld [vmem:[%s1578 + $0x14] sm:$0xf]
        %v1585 = vld [vmem:[%s1578 + $0x18] sm:$0xf]
        %v1586 = vld [vmem:[%s1578 + $0x1c] sm:$0xf]
        %v1595 = vunpack.c.l.b16 %v1579
        %v1596 = vunpack.c.l.b16 %v1580
        %v1597 = vunpack.c.l.b16 %v1581
        %v1598 = vunpack.c.l.b16 %v1582
        %v1599 = vunpack.c.l.b16 %v1583
        %v1600 = vunpack.c.l.b16 %v1584
        %v1601 = vunpack.c.l.b16 %v1585
        %v1602 = vunpack.c.l.b16 %v1586
        %v1603 = vpack.c.b16 %v1596, %v1595
        %v1604 = vpack.c.b16 %v1598, %v1597
        %v1605 = vpack.c.b16 %v1600, %v1599
        %v1606 = vpack.c.b16 %v1602, %v1601
        %v1612 = vsel %vm502, %v1574, 0
        %v1615 = vsel %vm502, %v1575, 0
        %v1618 = vsel %vm502, %v1576, 0
        %v1621 = vsel %vm502, %v1577, 0
        %1623 = vmatprep.subr.bf16.mxu0 0
        %1624 = vmatpush1.bf16.msra.mxu0 %v1603
        %1625 = vmatprep.subr.bf16.mxu0 0
        %1626 = vmatpush1.bf16.msra.mxu0 %v1604
        %1627 = vmatprep.subr.bf16.mxu0 0
        %1628 = vmatpush1.bf16.msra.mxu0 %v1605
        %1629 = vmatprep.subr.bf16.mxu0 0
        %1630 = vmatpush1.bf16.msra.mxu0 %v1606
        %1631 = vmatprep.subr.bf16.mxu0 0
        %1632 = vmatpush1.bf16.msra.mxu0 0
        %1633 = vmatprep.subr.bf16.mxu0 0
        %1634 = vmatpush1.bf16.msra.mxu0 0
        %1635 = vmatprep.subr.bf16.mxu0 0
        %1636 = vmatpush1.bf16.msra.mxu0 0
        %1637 = vmatprep.subr.bf16.mxu0 0
        %1638 = vmatpush1.bf16.msra.mxu0 0
        %1639 = vmatprep.subr.bf16.mxu0 0
        %1640 = vmatpush1.bf16.msra.mxu0 0
        %1641 = vmatprep.subr.bf16.mxu0 0
        %1642 = vmatpush1.bf16.msra.mxu0 0
        %1643 = vmatprep.subr.bf16.mxu0 0
        %1644 = vmatpush1.bf16.msra.mxu0 0
        %1645 = vmatprep.subr.bf16.mxu0 0
        %1646 = vmatpush1.bf16.msra.mxu0 0
        %1647 = vmatprep.subr.bf16.mxu0 0
        %1648 = vmatpush1.bf16.msra.mxu0 0
        %1649 = vmatprep.subr.bf16.mxu0 0
        %1650 = vmatpush1.bf16.msra.mxu0 0
        %1651 = vmatprep.subr.bf16.mxu0 0
        %1652 = vmatpush1.bf16.msra.mxu0 0
        %1653 = vmatprep.subr.bf16.mxu0 0
        %1654 = vmatpush1.bf16.msra.mxu0 0
        %1655 = vmatprep.mubr.bf16.mxu0 0
        %1656 = vmatmul.mubr.bf16.gmra.mrb[0].mxu0 %v1612
        %v1657 = vpop.f32.mrb[0].mxu0
        %v1658 = vadd.f32 0.0, %v1657
        %v1659 = vpop.f32.mrb[0].mxu0
        %v1660 = vpop.f32.mrb[0].mxu0
        %v1661 = vadd.f32 0.0, %v1660
        %v1662 = vpop.f32.mrb[0].mxu0
        %1663 = vmatprep.mubr.bf16.mxu0 0
        %1664 = vmatmul.mubr.bf16.gmra.mrb[0].mxu0 %v1615
        %v1665 = vpop.f32.mrb[0].mxu0
        %v1666 = vadd.f32 0.0, %v1665
        %v1667 = vpop.f32.mrb[0].mxu0
        %v1668 = vpop.f32.mrb[0].mxu0
        %v1669 = vadd.f32 0.0, %v1668
        %v1670 = vpop.f32.mrb[0].mxu0
        %1671 = vmatprep.mubr.bf16.mxu0 0
        %1672 = vmatmul.mubr.bf16.gmra.mrb[0].mxu0 %v1618
        %v1673 = vpop.f32.mrb[0].mxu0
        %v1674 = vadd.f32 0.0, %v1673
        %v1675 = vpop.f32.mrb[0].mxu0
        %v1676 = vpop.f32.mrb[0].mxu0
        %v1677 = vadd.f32 0.0, %v1676
        %v1678 = vpop.f32.mrb[0].mxu0
        %1679 = vmatprep.mubr.bf16.mxu0 0
        %1680 = vmatmul.mubr.bf16.gmra.mrb[0].mxu0 %v1621
        %v1681 = vpop.f32.mrb[0].mxu0
        %v1682 = vadd.f32 0.0, %v1681
        %v1683 = vpop.f32.mrb[0].mxu0
        %v1684 = vpop.f32.mrb[0].mxu0
        %v1685 = vadd.f32 0.0, %v1684
        %v1686 = vpop.f32.mrb[0].mxu0
        %1687 = vdwg.mxu0
        %v1696 = vunpack.c.l.b16 %v1025
        %v1697 = vunpack.c.l.b16 %v1026
        %v1698 = vunpack.c.l.b16 %v1027
        %v1699 = vunpack.c.l.b16 %v1028
        %v1700 = vunpack.c.l.b16 %v1029
        %v1701 = vunpack.c.l.b16 %v1030
        %v1702 = vunpack.c.l.b16 %v1031
        %v1703 = vunpack.c.l.b16 %v1032
        %v1704 = vpack.c.b16 %v1697, %v1696
        %v1705 = vpack.c.b16 %v1699, %v1698
        %v1706 = vpack.c.b16 %v1701, %v1700
        %v1707 = vpack.c.b16 %v1703, %v1702
        %v1713 = vsel %vm502, %v1021, 0
        %v1716 = vsel %vm502, %v1022, 0
        %v1719 = vsel %vm502, %v1023, 0
        %v1722 = vsel %vm502, %v1024, 0
        %1724 = vmatprep.subr.bf16.mxu0 0
        %1725 = vmatpush1.bf16.msra.mxu0 %v1704
        %1726 = vmatprep.subr.bf16.mxu0 0
        %1727 = vmatpush1.bf16.msra.mxu0 %v1705
        %1728 = vmatprep.subr.bf16.mxu0 0
        %1729 = vmatpush1.bf16.msra.mxu0 %v1706
        %1730 = vmatprep.subr.bf16.mxu0 0
        %1731 = vmatpush1.bf16.msra.mxu0 %v1707
        %1732 = vmatprep.subr.bf16.mxu0 0
        %1733 = vmatpush1.bf16.msra.mxu0 0
        %1734 = vmatprep.subr.bf16.mxu0 0
        %1735 = vmatpush1.bf16.msra.mxu0 0
        %1736 = vmatprep.subr.bf16.mxu0 0
        %1737 = vmatpush1.bf16.msra.mxu0 0
        %1738 = vmatprep.subr.bf16.mxu0 0
        %1739 = vmatpush1.bf16.msra.mxu0 0
        %1740 = vmatprep.subr.bf16.mxu0 0
        %1741 = vmatpush1.bf16.msra.mxu0 0
        %1742 = vmatprep.subr.bf16.mxu0 0
        %1743 = vmatpush1.bf16.msra.mxu0 0
        %1744 = vmatprep.subr.bf16.mxu0 0
        %1745 = vmatpush1.bf16.msra.mxu0 0
        %1746 = vmatprep.subr.bf16.mxu0 0
        %1747 = vmatpush1.bf16.msra.mxu0 0
        %1748 = vmatprep.subr.bf16.mxu0 0
        %1749 = vmatpush1.bf16.msra.mxu0 0
        %1750 = vmatprep.subr.bf16.mxu0 0
        %1751 = vmatpush1.bf16.msra.mxu0 0
        %1752 = vmatprep.subr.bf16.mxu0 0
        %1753 = vmatpush1.bf16.msra.mxu0 0
        %1754 = vmatprep.subr.bf16.mxu0 0
        %1755 = vmatpush1.bf16.msra.mxu0 0
        %1756 = vmatprep.mubr.bf16.mxu0 0
        %1757 = vmatmul.mubr.bf16.gmra.mrb[0].mxu0 %v1713
        %v1758 = vpop.f32.mrb[0].mxu0
        %v1759 = vadd.f32 %v1658, %v1758
        %v1760 = vpop.f32.mrb[0].mxu0
        %v1761 = vpop.f32.mrb[0].mxu0
        %v1762 = vadd.f32 %v1661, %v1761
        %v1763 = vpop.f32.mrb[0].mxu0
        %1764 = vmatprep.mubr.bf16.mxu0 0
        %1765 = vmatmul.mubr.bf16.gmra.mrb[0].mxu0 %v1716
        %v1766 = vpop.f32.mrb[0].mxu0
        %v1767 = vadd.f32 %v1666, %v1766
        %v1768 = vpop.f32.mrb[0].mxu0
        %v1769 = vpop.f32.mrb[0].mxu0
        %v1770 = vadd.f32 %v1669, %v1769
        %v1771 = vpop.f32.mrb[0].mxu0
        %1772 = vmatprep.mubr.bf16.mxu0 0
        %1773 = vmatmul.mubr.bf16.gmra.mrb[0].mxu0 %v1719
        %v1774 = vpop.f32.mrb[0].mxu0
        %v1775 = vadd.f32 %v1674, %v1774
        %v1776 = vpop.f32.mrb[0].mxu0
        %v1777 = vpop.f32.mrb[0].mxu0
        %v1778 = vadd.f32 %v1677, %v1777
        %v1779 = vpop.f32.mrb[0].mxu0
        %1780 = vmatprep.mubr.bf16.mxu0 0
        %1781 = vmatmul.mubr.bf16.gmra.mrb[0].mxu0 %v1722
        %v1782 = vpop.f32.mrb[0].mxu0
        %v1783 = vadd.f32 %v1682, %v1782
        %v1784 = vpop.f32.mrb[0].mxu0
        %v1785 = vpop.f32.mrb[0].mxu0
        %v1786 = vadd.f32 %v1685, %v1785
        %v1787 = vpop.f32.mrb[0].mxu0
        %1788 = vdwg.mxu0
        %s1789 = scalar_lea.vmem %s4, 16
        %v1790 = vld [vmem:[%s1789] sm:$0x3f]
        %s1791 = scalar_lea.vmem [#allocation2], 16
        %v1792 = vld [vmem:[%s1791] sm:$0xff]
        %v1793 = vld [vmem:[%s1791 + $0x18] sm:$0xff]
        %v1794 = vld [vmem:[%s1791 + $0x30] sm:$0xff]
        %v1795 = vld [vmem:[%s1791 + $0x48] sm:$0xff]
        %v1796 = vld [vmem:[%s1791 + $0x60] sm:$0xff]
        %v1797 = vld [vmem:[%s1791 + $0x78] sm:$0xff]
        %v1798 = vld [vmem:[%s1791 + $0x90] sm:$0xff]
        %v1799 = vld [vmem:[%s1791 + $0xa8] sm:$0xff]
        %v1800 = vlaneseq
        %v1801 = vshrl.u32 %v1800, 7
        %v1802 = vsub.s32 0, %v1801
        %v1803 = vrot.slane %v1790, %v1802
        %v1804 = vadd.f32 %v1792, %v1803
        %v1805 = vadd.f32 %v1793, %v1803
        %v1806 = vadd.f32 %v1794, %v1803
        %v1807 = vadd.f32 %v1795, %v1803
        %v1808 = vadd.f32 %v1796, %v1803
        %v1809 = vadd.f32 %v1797, %v1803
        %v1810 = vadd.f32 %v1798, %v1803
        %v1811 = vadd.f32 %v1799, %v1803
        %v1812 = vsel %vm502, %v1804, 0.0
        %1813 = vadd.xlane.f32.xlu0 %v1812
        %v1814 = vpop.xlane.xlu0 %1813
        %v1815 = vsel %vm502, %v1805, 0.0
        %1816 = vadd.xlane.f32.xlu0 %v1815
        %v1817 = vpop.xlane.xlu0 %1816
        %v1818 = vsel %vm502, %v1806, 0.0
        %1819 = vadd.xlane.f32.xlu0 %v1818
        %v1820 = vpop.xlane.xlu0 %1819
        %v1821 = vsel %vm502, %v1807, 0.0
        %1822 = vadd.xlane.f32.xlu0 %v1821
        %v1823 = vpop.xlane.xlu0 %1822
        %v1824 = vsel %vm502, %v1808, 0.0
        %1825 = vadd.xlane.f32.xlu0 %v1824
        %v1826 = vpop.xlane.xlu0 %1825
        %v1827 = vsel %vm502, %v1809, 0.0
        %1828 = vadd.xlane.f32.xlu0 %v1827
        %v1829 = vpop.xlane.xlu0 %1828
        %v1830 = vsel %vm502, %v1810, 0.0
        %1831 = vadd.xlane.f32.xlu0 %v1830
        %v1832 = vpop.xlane.xlu0 %1831
        %v1833 = vsel %vm502, %v1811, 0.0
        %1834 = vadd.xlane.f32.xlu0 %v1833
        %v1835 = vpop.xlane.xlu0 %1834
        %v1836 = vmul.f32 %v1814, %v527
        %v1837 = vmul.f32 %v1817, %v527
        %v1838 = vmul.f32 %v1820, %v527
        %v1839 = vmul.f32 %v1823, %v527
        %v1840 = vmul.f32 %v1826, %v527
        %v1841 = vmul.f32 %v1829, %v527
        %v1842 = vmul.f32 %v1832, %v527
        %v1843 = vmul.f32 %v1835, %v527
        %v1844 = vsub.f32 %v1804, %v1836
        %v1845 = vsub.f32 %v1805, %v1837
        %v1846 = vsub.f32 %v1806, %v1838
        %v1847 = vsub.f32 %v1807, %v1839
        %v1848 = vsub.f32 %v1808, %v1840
        %v1849 = vsub.f32 %v1809, %v1841
        %v1850 = vsub.f32 %v1810, %v1842
        %v1851 = vsub.f32 %v1811, %v1843
        %v1852 = vmul.f32 %v1844, %v1844
        %v1853 = vmul.f32 %v1845, %v1845
        %v1854 = vmul.f32 %v1846, %v1846
        %v1855 = vmul.f32 %v1847, %v1847
        %v1856 = vmul.f32 %v1848, %v1848
        %v1857 = vmul.f32 %v1849, %v1849
        %v1858 = vmul.f32 %v1850, %v1850
        %v1859 = vmul.f32 %v1851, %v1851
        %v1860 = vsel %vm502, %v1852, 0.0
        %1861 = vadd.xlane.f32.xlu0 %v1860
        %v1862 = vpop.xlane.xlu0 %1861
        %v1863 = vsel %vm502, %v1853, 0.0
        %1864 = vadd.xlane.f32.xlu0 %v1863
        %v1865 = vpop.xlane.xlu0 %1864
        %v1866 = vsel %vm502, %v1854, 0.0
        %1867 = vadd.xlane.f32.xlu0 %v1866
        %v1868 = vpop.xlane.xlu0 %1867
        %v1869 = vsel %vm502, %v1855, 0.0
        %1870 = vadd.xlane.f32.xlu0 %v1869
        %v1871 = vpop.xlane.xlu0 %1870
        %v1872 = vsel %vm502, %v1856, 0.0
        %1873 = vadd.xlane.f32.xlu0 %v1872
        %v1874 = vpop.xlane.xlu0 %1873
        %v1875 = vsel %vm502, %v1857, 0.0
        %1876 = vadd.xlane.f32.xlu0 %v1875
        %v1877 = vpop.xlane.xlu0 %1876
        %v1878 = vsel %vm502, %v1858, 0.0
        %1879 = vadd.xlane.f32.xlu0 %v1878
        %v1880 = vpop.xlane.xlu0 %1879
        %v1881 = vsel %vm502, %v1859, 0.0
        %1882 = vadd.xlane.f32.xlu0 %v1881
        %v1883 = vpop.xlane.xlu0 %1882
        %v1884 = vmul.f32 %v1862, %v527
        %v1885 = vmul.f32 %v1865, %v527
        %v1886 = vmul.f32 %v1868, %v527
        %v1887 = vmul.f32 %v1871, %v527
        %v1888 = vmul.f32 %v1874, %v527
        %v1889 = vmul.f32 %v1877, %v527
        %v1890 = vmul.f32 %v1880, %v527
        %v1891 = vmul.f32 %v1883, %v527
        %v1892 = vadd.f32 %v1884, 1e-05
        %v1893 = vadd.f32 %v1885, 1e-05
        %v1894 = vadd.f32 %v1886, 1e-05
        %v1895 = vadd.f32 %v1887, 1e-05
        %v1896 = vadd.f32 %v1888, 1e-05
        %v1897 = vadd.f32 %v1889, 1e-05
        %v1898 = vadd.f32 %v1890, 1e-05
        %v1899 = vadd.f32 %v1891, 1e-05
        %v1900 = vrsqrt.pop %v1892
        %v1901 = vrsqrt.pop %v1893
        %v1902 = vrsqrt.pop %v1894
        %v1903 = vrsqrt.pop %v1895
        %v1904 = vrsqrt.pop %v1896
        %v1905 = vrsqrt.pop %v1897
        %v1906 = vrsqrt.pop %v1898
        %v1907 = vrsqrt.pop %v1899
        %v1908 = vmul.f32 %v1844, %v1900
        %v1909 = vmul.f32 %v1845, %v1901
        %v1910 = vmul.f32 %v1846, %v1902
        %v1911 = vmul.f32 %v1847, %v1903
        %v1912 = vmul.f32 %v1848, %v1904
        %v1913 = vmul.f32 %v1849, %v1905
        %v1914 = vmul.f32 %v1850, %v1906
        %v1915 = vmul.f32 %v1851, %v1907
        %v1916 = vlaneseq
        %v1917 = vshrl.u32 %v1916, 7
        %v1918 = vsub.s32 1, %v1917
        %v1919 = vrot.slane %v1790, %v1918
        %v1920 = vmul.f32 %v1908, %v1919
        %v1921 = vmul.f32 %v1909, %v1919
        %v1922 = vmul.f32 %v1910, %v1919
        %v1923 = vmul.f32 %v1911, %v1919
        %v1924 = vmul.f32 %v1912, %v1919
        %v1925 = vmul.f32 %v1913, %v1919
        %v1926 = vmul.f32 %v1914, %v1919
        %v1927 = vmul.f32 %v1915, %v1919
        %v1928 = vlaneseq
        %v1929 = vshrl.u32 %v1928, 7
        %v1930 = vsub.s32 2, %v1929
        %v1931 = vrot.slane %v1790, %v1930
        %v1932 = vadd.f32 %v1920, %v1931
        %v1933 = vadd.f32 %v1921, %v1931
        %v1934 = vadd.f32 %v1922, %v1931
        %v1935 = vadd.f32 %v1923, %v1931
        %v1936 = vadd.f32 %v1924, %v1931
        %v1937 = vadd.f32 %v1925, %v1931
        %v1938 = vadd.f32 %v1926, %v1931
        %v1939 = vadd.f32 %v1927, %v1931
        %v1940 = vmin.f32 %v1932, 20.0
        %v1941 = vmin.f32 %v1933, 20.0
        %v1942 = vmin.f32 %v1934, 20.0
        %v1943 = vmin.f32 %v1935, 20.0
        %v1944 = vmin.f32 %v1936, 20.0
        %v1945 = vmin.f32 %v1937, 20.0
        %v1946 = vmin.f32 %v1938, 20.0
        %v1947 = vmin.f32 %v1939, 20.0
        %v1948 = vmul.f32 %v1940, 1.442695
        %v1949 = vpow.pop %v1948
        %v1950 = vmul.f32 %v1941, 1.442695
        %v1951 = vpow.pop %v1950
        %v1952 = vmul.f32 %v1942, 1.442695
        %v1953 = vpow.pop %v1952
        %v1954 = vmul.f32 %v1943, 1.442695
        %v1955 = vpow.pop %v1954
        %v1956 = vmul.f32 %v1944, 1.442695
        %v1957 = vpow.pop %v1956
        %v1958 = vmul.f32 %v1945, 1.442695
        %v1959 = vpow.pop %v1958
        %v1960 = vmul.f32 %v1946, 1.442695
        %v1961 = vpow.pop %v1960
        %v1962 = vmul.f32 %v1947, 1.442695
        %v1963 = vpow.pop %v1962
        %v1964 = vadd.f32 %v1949, 2.0
        %v1965 = vadd.f32 %v1951, 2.0
        %v1966 = vadd.f32 %v1953, 2.0
        %v1967 = vadd.f32 %v1955, 2.0
        %v1968 = vadd.f32 %v1957, 2.0
        %v1969 = vadd.f32 %v1959, 2.0
        %v1970 = vadd.f32 %v1961, 2.0
        %v1971 = vadd.f32 %v1963, 2.0
        %v1972 = vmul.f32 %v1949, %v1964
        %v1973 = vmul.f32 %v1951, %v1965
        %v1974 = vmul.f32 %v1953, %v1966
        %v1975 = vmul.f32 %v1955, %v1967
        %v1976 = vmul.f32 %v1957, %v1968
        %v1977 = vmul.f32 %v1959, %v1969
        %v1978 = vmul.f32 %v1961, %v1970
        %v1979 = vmul.f32 %v1963, %v1971
        %v1980 = vadd.f32 %v1972, 2.0
        %v1981 = vadd.f32 %v1973, 2.0
        %v1982 = vadd.f32 %v1974, 2.0
        %v1983 = vadd.f32 %v1975, 2.0
        %v1984 = vadd.f32 %v1976, 2.0
        %v1985 = vadd.f32 %v1977, 2.0
        %v1986 = vadd.f32 %v1978, 2.0
        %v1987 = vadd.f32 %v1979, 2.0
        %v1988 = vrcp.pop %v1980
        %v1989 = vmul.f32 %v1972, %v1988
        %v1990 = vrcp.pop %v1981
        %v1991 = vmul.f32 %v1973, %v1990
        %v1992 = vrcp.pop %v1982
        %v1993 = vmul.f32 %v1974, %v1992
        %v1994 = vrcp.pop %v1983
        %v1995 = vmul.f32 %v1975, %v1994
        %v1996 = vrcp.pop %v1984
        %v1997 = vmul.f32 %v1976, %v1996
        %v1998 = vrcp.pop %v1985
        %v1999 = vmul.f32 %v1977, %v1998
        %v2000 = vrcp.pop %v1986
        %v2001 = vmul.f32 %v1978, %v2000
        %v2002 = vrcp.pop %v1987
        %v2003 = vmul.f32 %v1979, %v2002
        %v2004 = vmul.f32 %v1932, %v1989
        %v2005 = vmul.f32 %v1933, %v1991
        %v2006 = vmul.f32 %v1934, %v1993
        %v2007 = vmul.f32 %v1935, %v1995
        %v2008 = vmul.f32 %v1936, %v1997
        %v2009 = vmul.f32 %v1937, %v1999
        %v2010 = vmul.f32 %v1938, %v2001
        %v2011 = vmul.f32 %v1939, %v2003
        %v2012 = vpack.c.bf16 %v2005, %v2004
        %v2013 = vpack.c.bf16 %v2007, %v2006
        %v2014 = vpack.c.bf16 %v2009, %v2008
        %v2015 = vpack.c.bf16 %v2011, %v2010
        %s2016 = scalar_lea.vmem %s2, 64
        %v2017 = vld [vmem:[%s2016] sm:$0xf]
        %v2018 = vld [vmem:[%s2016 + $0x4] sm:$0xf]
        %v2019 = vld [vmem:[%s2016 + $0x8] sm:$0xf]
        %v2020 = vld [vmem:[%s2016 + $0xc] sm:$0xf]
        %v2021 = vld [vmem:[%s2016 + $0x10] sm:$0xf]
        %v2022 = vld [vmem:[%s2016 + $0x14] sm:$0xf]
        %v2023 = vld [vmem:[%s2016 + $0x18] sm:$0xf]
        %v2024 = vld [vmem:[%s2016 + $0x1c] sm:$0xf]
        %v2025 = vlaneseq
        %v2026 = vshrl.u32 %v2025, 7
        %v2027 = vsub.s32 3, %v2026
        %v2028 = vrot.slane %v1790, %v2027
        %v2037 = vunpack.c.l.b16 %v2017
        %v2038 = vunpack.c.l.b16 %v2018
        %v2039 = vunpack.c.l.b16 %v2019
        %v2040 = vunpack.c.l.b16 %v2020
        %v2041 = vunpack.c.l.b16 %v2021
        %v2042 = vunpack.c.l.b16 %v2022
        %v2043 = vunpack.c.l.b16 %v2023
        %v2044 = vunpack.c.l.b16 %v2024
        %v2045 = vpack.c.b16 %v2038, %v2037
        %v2046 = vpack.c.b16 %v2040, %v2039
        %v2047 = vpack.c.b16 %v2042, %v2041
        %v2048 = vpack.c.b16 %v2044, %v2043
        %v2054 = vsel %vm502, %v2012, 0
        %v2057 = vsel %vm502, %v2013, 0
        %v2060 = vsel %vm502, %v2014, 0
        %v2063 = vsel %vm502, %v2015, 0
        %2065 = vmatprep.subr.bf16.mxu0 0
        %2066 = vmatpush1.bf16.msra.mxu0 %v2045
        %2067 = vmatprep.subr.bf16.mxu0 0
        %2068 = vmatpush1.bf16.msra.mxu0 %v2046
        %2069 = vmatprep.subr.bf16.mxu0 0
        %2070 = vmatpush1.bf16.msra.mxu0 %v2047
        %2071 = vmatprep.subr.bf16.mxu0 0
        %2072 = vmatpush1.bf16.msra.mxu0 %v2048
        %2073 = vmatprep.subr.bf16.mxu0 0
        %2074 = vmatpush1.bf16.msra.mxu0 0
        %2075 = vmatprep.subr.bf16.mxu0 0
        %2076 = vmatpush1.bf16.msra.mxu0 0
        %2077 = vmatprep.subr.bf16.mxu0 0
        %2078 = vmatpush1.bf16.msra.mxu0 0
        %2079 = vmatprep.subr.bf16.mxu0 0
        %2080 = vmatpush1.bf16.msra.mxu0 0
        %2081 = vmatprep.subr.bf16.mxu0 0
        %2082 = vmatpush1.bf16.msra.mxu0 0
        %2083 = vmatprep.subr.bf16.mxu0 0
        %2084 = vmatpush1.bf16.msra.mxu0 0
        %2085 = vmatprep.subr.bf16.mxu0 0
        %2086 = vmatpush1.bf16.msra.mxu0 0
        %2087 = vmatprep.subr.bf16.mxu0 0
        %2088 = vmatpush1.bf16.msra.mxu0 0
        %2089 = vmatprep.subr.bf16.mxu0 0
        %2090 = vmatpush1.bf16.msra.mxu0 0
        %2091 = vmatprep.subr.bf16.mxu0 0
        %2092 = vmatpush1.bf16.msra.mxu0 0
        %2093 = vmatprep.subr.bf16.mxu0 0
        %2094 = vmatpush1.bf16.msra.mxu0 0
        %2095 = vmatprep.subr.bf16.mxu0 0
        %2096 = vmatpush1.bf16.msra.mxu0 0
        %2097 = vmatprep.mubr.bf16.mxu0 0
        %2098 = vmatmul.mubr.bf16.gmra.mrb[0].mxu0 %v2054
        %v2099 = vpop.f32.mrb[0].mxu0
        %v2100 = vadd.f32 %v2028, %v2099
        %v2101 = vpop.f32.mrb[0].mxu0
        %v2102 = vpop.f32.mrb[0].mxu0
        %v2103 = vadd.f32 %v2028, %v2102
        %v2104 = vpop.f32.mrb[0].mxu0
        %2105 = vmatprep.mubr.bf16.mxu0 0
        %2106 = vmatmul.mubr.bf16.gmra.mrb[0].mxu0 %v2057
        %v2107 = vpop.f32.mrb[0].mxu0
        %v2108 = vadd.f32 %v2028, %v2107
        %v2109 = vpop.f32.mrb[0].mxu0
        %v2110 = vpop.f32.mrb[0].mxu0
        %v2111 = vadd.f32 %v2028, %v2110
        %v2112 = vpop.f32.mrb[0].mxu0
        %2113 = vmatprep.mubr.bf16.mxu0 0
        %2114 = vmatmul.mubr.bf16.gmra.mrb[0].mxu0 %v2060
        %v2115 = vpop.f32.mrb[0].mxu0
        %v2116 = vadd.f32 %v2028, %v2115
        %v2117 = vpop.f32.mrb[0].mxu0
        %v2118 = vpop.f32.mrb[0].mxu0
        %v2119 = vadd.f32 %v2028, %v2118
        %v2120 = vpop.f32.mrb[0].mxu0
        %2121 = vmatprep.mubr.bf16.mxu0 0
        %2122 = vmatmul.mubr.bf16.gmra.mrb[0].mxu0 %v2063
        %v2123 = vpop.f32.mrb[0].mxu0
        %v2124 = vadd.f32 %v2028, %v2123
        %v2125 = vpop.f32.mrb[0].mxu0
        %v2126 = vpop.f32.mrb[0].mxu0
        %v2127 = vadd.f32 %v2028, %v2126
        %v2128 = vpop.f32.mrb[0].mxu0
        %2129 = vdwg.mxu0
        %v2130 = vsel %vm502, %v2100, 0.0
        %2131 = vadd.xlane.f32.xlu0 %v2130
        %v2132 = vpop.xlane.xlu0 %2131
        %v2133 = vsel %vm502, %v2103, 0.0
        %2134 = vadd.xlane.f32.xlu0 %v2133
        %v2135 = vpop.xlane.xlu0 %2134
        %v2136 = vsel %vm502, %v2108, 0.0
        %2137 = vadd.xlane.f32.xlu0 %v2136
        %v2138 = vpop.xlane.xlu0 %2137
        %v2139 = vsel %vm502, %v2111, 0.0
        %2140 = vadd.xlane.f32.xlu0 %v2139
        %v2141 = vpop.xlane.xlu0 %2140
        %v2142 = vsel %vm502, %v2116, 0.0
        %2143 = vadd.xlane.f32.xlu0 %v2142
        %v2144 = vpop.xlane.xlu0 %2143
        %v2145 = vsel %vm502, %v2119, 0.0
        %2146 = vadd.xlane.f32.xlu0 %v2145
        %v2147 = vpop.xlane.xlu0 %2146
        %v2148 = vsel %vm502, %v2124, 0.0
        %2149 = vadd.xlane.f32.xlu0 %v2148
        %v2150 = vpop.xlane.xlu0 %2149
        %v2151 = vsel %vm502, %v2127, 0.0
        %2152 = vadd.xlane.f32.xlu0 %v2151
        %v2153 = vpop.xlane.xlu0 %2152
        %v2154 = vmul.f32 %v2132, %v527
        %v2155 = vmul.f32 %v2135, %v527
        %v2156 = vmul.f32 %v2138, %v527
        %v2157 = vmul.f32 %v2141, %v527
        %v2158 = vmul.f32 %v2144, %v527
        %v2159 = vmul.f32 %v2147, %v527
        %v2160 = vmul.f32 %v2150, %v527
        %v2161 = vmul.f32 %v2153, %v527
        %v2162 = vsub.f32 %v2100, %v2154
        %v2163 = vsub.f32 %v2103, %v2155
        %v2164 = vsub.f32 %v2108, %v2156
        %v2165 = vsub.f32 %v2111, %v2157
        %v2166 = vsub.f32 %v2116, %v2158
        %v2167 = vsub.f32 %v2119, %v2159
        %v2168 = vsub.f32 %v2124, %v2160
        %v2169 = vsub.f32 %v2127, %v2161
        %v2170 = vmul.f32 %v2162, %v2162
        %v2171 = vmul.f32 %v2163, %v2163
        %v2172 = vmul.f32 %v2164, %v2164
        %v2173 = vmul.f32 %v2165, %v2165
        %v2174 = vmul.f32 %v2166, %v2166
        %v2175 = vmul.f32 %v2167, %v2167
        %v2176 = vmul.f32 %v2168, %v2168
        %v2177 = vmul.f32 %v2169, %v2169
        %v2178 = vsel %vm502, %v2170, 0.0
        %2179 = vadd.xlane.f32.xlu0 %v2178
        %v2180 = vpop.xlane.xlu0 %2179
        %v2181 = vsel %vm502, %v2171, 0.0
        %2182 = vadd.xlane.f32.xlu0 %v2181
        %v2183 = vpop.xlane.xlu0 %2182
        %v2184 = vsel %vm502, %v2172, 0.0
        %2185 = vadd.xlane.f32.xlu0 %v2184
        %v2186 = vpop.xlane.xlu0 %2185
        %v2187 = vsel %vm502, %v2173, 0.0
        %2188 = vadd.xlane.f32.xlu0 %v2187
        %v2189 = vpop.xlane.xlu0 %2188
        %v2190 = vsel %vm502, %v2174, 0.0
        %2191 = vadd.xlane.f32.xlu0 %v2190
        %v2192 = vpop.xlane.xlu0 %2191
        %v2193 = vsel %vm502, %v2175, 0.0
        %2194 = vadd.xlane.f32.xlu0 %v2193
        %v2195 = vpop.xlane.xlu0 %2194
        %v2196 = vsel %vm502, %v2176, 0.0
        %2197 = vadd.xlane.f32.xlu0 %v2196
        %v2198 = vpop.xlane.xlu0 %2197
        %v2199 = vsel %vm502, %v2177, 0.0
        %2200 = vadd.xlane.f32.xlu0 %v2199
        %v2201 = vpop.xlane.xlu0 %2200
        %v2202 = vmul.f32 %v2180, %v527
        %v2203 = vmul.f32 %v2183, %v527
        %v2204 = vmul.f32 %v2186, %v527
        %v2205 = vmul.f32 %v2189, %v527
        %v2206 = vmul.f32 %v2192, %v527
        %v2207 = vmul.f32 %v2195, %v527
        %v2208 = vmul.f32 %v2198, %v527
        %v2209 = vmul.f32 %v2201, %v527
        %v2210 = vadd.f32 %v2202, 1e-05
        %v2211 = vadd.f32 %v2203, 1e-05
        %v2212 = vadd.f32 %v2204, 1e-05
        %v2213 = vadd.f32 %v2205, 1e-05
        %v2214 = vadd.f32 %v2206, 1e-05
        %v2215 = vadd.f32 %v2207, 1e-05
        %v2216 = vadd.f32 %v2208, 1e-05
        %v2217 = vadd.f32 %v2209, 1e-05
        %v2218 = vrsqrt.pop %v2210
        %v2219 = vrsqrt.pop %v2211
        %v2220 = vrsqrt.pop %v2212
        %v2221 = vrsqrt.pop %v2213
        %v2222 = vrsqrt.pop %v2214
        %v2223 = vrsqrt.pop %v2215
        %v2224 = vrsqrt.pop %v2216
        %v2225 = vrsqrt.pop %v2217
        %v2226 = vmul.f32 %v2162, %v2218
        %v2227 = vmul.f32 %v2163, %v2219
        %v2228 = vmul.f32 %v2164, %v2220
        %v2229 = vmul.f32 %v2165, %v2221
        %v2230 = vmul.f32 %v2166, %v2222
        %v2231 = vmul.f32 %v2167, %v2223
        %v2232 = vmul.f32 %v2168, %v2224
        %v2233 = vmul.f32 %v2169, %v2225
        %v2234 = vlaneseq
        %v2235 = vshrl.u32 %v2234, 7
        %v2236 = vsub.s32 4, %v2235
        %v2237 = vrot.slane %v1790, %v2236
        %v2238 = vmul.f32 %v2226, %v2237
        %v2239 = vmul.f32 %v2227, %v2237
        %v2240 = vmul.f32 %v2228, %v2237
        %v2241 = vmul.f32 %v2229, %v2237
        %v2242 = vmul.f32 %v2230, %v2237
        %v2243 = vmul.f32 %v2231, %v2237
        %v2244 = vmul.f32 %v2232, %v2237
        %v2245 = vmul.f32 %v2233, %v2237
        %v2246 = vlaneseq
        %v2247 = vshrl.u32 %v2246, 7
        %v2248 = vsub.s32 5, %v2247
        %v2249 = vrot.slane %v1790, %v2248
        %v2250 = vadd.f32 %v2238, %v2249
        %v2251 = vadd.f32 %v2239, %v2249
        %v2252 = vadd.f32 %v2240, %v2249
        %v2253 = vadd.f32 %v2241, %v2249
        %v2254 = vadd.f32 %v2242, %v2249
        %v2255 = vadd.f32 %v2243, %v2249
        %v2256 = vadd.f32 %v2244, %v2249
        %v2257 = vadd.f32 %v2245, %v2249
        %v2258 = vmin.f32 %v2250, 20.0
        %v2259 = vmin.f32 %v2251, 20.0
        %v2260 = vmin.f32 %v2252, 20.0
        %v2261 = vmin.f32 %v2253, 20.0
        %v2262 = vmin.f32 %v2254, 20.0
        %v2263 = vmin.f32 %v2255, 20.0
        %v2264 = vmin.f32 %v2256, 20.0
        %v2265 = vmin.f32 %v2257, 20.0
        %v2266 = vmul.f32 %v2258, 1.442695
        %v2267 = vpow.pop %v2266
        %v2268 = vmul.f32 %v2259, 1.442695
        %v2269 = vpow.pop %v2268
        %v2270 = vmul.f32 %v2260, 1.442695
        %v2271 = vpow.pop %v2270
        %v2272 = vmul.f32 %v2261, 1.442695
        %v2273 = vpow.pop %v2272
        %v2274 = vmul.f32 %v2262, 1.442695
        %v2275 = vpow.pop %v2274
        %v2276 = vmul.f32 %v2263, 1.442695
        %v2277 = vpow.pop %v2276
        %v2278 = vmul.f32 %v2264, 1.442695
        %v2279 = vpow.pop %v2278
        %v2280 = vmul.f32 %v2265, 1.442695
        %v2281 = vpow.pop %v2280
        %v2282 = vadd.f32 %v2267, 2.0
        %v2283 = vadd.f32 %v2269, 2.0
        %v2284 = vadd.f32 %v2271, 2.0
        %v2285 = vadd.f32 %v2273, 2.0
        %v2286 = vadd.f32 %v2275, 2.0
        %v2287 = vadd.f32 %v2277, 2.0
        %v2288 = vadd.f32 %v2279, 2.0
        %v2289 = vadd.f32 %v2281, 2.0
        %v2290 = vmul.f32 %v2267, %v2282
        %v2291 = vmul.f32 %v2269, %v2283
        %v2292 = vmul.f32 %v2271, %v2284
        %v2293 = vmul.f32 %v2273, %v2285
        %v2294 = vmul.f32 %v2275, %v2286
        %v2295 = vmul.f32 %v2277, %v2287
        %v2296 = vmul.f32 %v2279, %v2288
        %v2297 = vmul.f32 %v2281, %v2289
        %v2298 = vadd.f32 %v2290, 2.0
        %v2299 = vadd.f32 %v2291, 2.0
        %v2300 = vadd.f32 %v2292, 2.0
        %v2301 = vadd.f32 %v2293, 2.0
        %v2302 = vadd.f32 %v2294, 2.0
        %v2303 = vadd.f32 %v2295, 2.0
        %v2304 = vadd.f32 %v2296, 2.0
        %v2305 = vadd.f32 %v2297, 2.0
        %v2306 = vrcp.pop %v2298
        %v2307 = vmul.f32 %v2290, %v2306
        %v2308 = vrcp.pop %v2299
        %v2309 = vmul.f32 %v2291, %v2308
        %v2310 = vrcp.pop %v2300
        %v2311 = vmul.f32 %v2292, %v2310
        %v2312 = vrcp.pop %v2301
        %v2313 = vmul.f32 %v2293, %v2312
        %v2314 = vrcp.pop %v2302
        %v2315 = vmul.f32 %v2294, %v2314
        %v2316 = vrcp.pop %v2303
        %v2317 = vmul.f32 %v2295, %v2316
        %v2318 = vrcp.pop %v2304
        %v2319 = vmul.f32 %v2296, %v2318
        %v2320 = vrcp.pop %v2305
        %v2321 = vmul.f32 %v2297, %v2320
        %v2322 = vmul.f32 %v2250, %v2307
        %v2323 = vmul.f32 %v2251, %v2309
        %v2324 = vmul.f32 %v2252, %v2311
        %v2325 = vmul.f32 %v2253, %v2313
        %v2326 = vmul.f32 %v2254, %v2315
        %v2327 = vmul.f32 %v2255, %v2317
        %v2328 = vmul.f32 %v2256, %v2319
        %v2329 = vmul.f32 %v2257, %v2321
        %v2330 = vpack.c.bf16 %v2323, %v2322
        %v2331 = vpack.c.bf16 %v2325, %v2324
        %v2332 = vpack.c.bf16 %v2327, %v2326
        %v2333 = vpack.c.bf16 %v2329, %v2328
        %s2334 = scalar_lea.vmem %s3, 64
        %v2335 = vld [vmem:[%s2334] sm:$0xf]
        %v2336 = vld [vmem:[%s2334 + $0x4] sm:$0xf]
        %v2337 = vld [vmem:[%s2334 + $0x8] sm:$0xf]
        %v2338 = vld [vmem:[%s2334 + $0xc] sm:$0xf]
        %v2339 = vld [vmem:[%s2334 + $0x10] sm:$0xf]
        %v2340 = vld [vmem:[%s2334 + $0x14] sm:$0xf]
        %v2341 = vld [vmem:[%s2334 + $0x18] sm:$0xf]
        %v2342 = vld [vmem:[%s2334 + $0x1c] sm:$0xf]
        %v2351 = vunpack.c.l.b16 %v2335
        %v2352 = vunpack.c.l.b16 %v2336
        %v2353 = vunpack.c.l.b16 %v2337
        %v2354 = vunpack.c.l.b16 %v2338
        %v2355 = vunpack.c.l.b16 %v2339
        %v2356 = vunpack.c.l.b16 %v2340
        %v2357 = vunpack.c.l.b16 %v2341
        %v2358 = vunpack.c.l.b16 %v2342
        %v2359 = vpack.c.b16 %v2352, %v2351
        %v2360 = vpack.c.b16 %v2354, %v2353
        %v2361 = vpack.c.b16 %v2356, %v2355
        %v2362 = vpack.c.b16 %v2358, %v2357
        %v2368 = vsel %vm502, %v2330, 0
        %v2371 = vsel %vm502, %v2331, 0
        %v2374 = vsel %vm502, %v2332, 0
        %v2377 = vsel %vm502, %v2333, 0
        %2379 = vmatprep.subr.bf16.mxu0 0
        %2380 = vmatpush1.bf16.msra.mxu0 %v2359
        %2381 = vmatprep.subr.bf16.mxu0 0
        %2382 = vmatpush1.bf16.msra.mxu0 %v2360
        %2383 = vmatprep.subr.bf16.mxu0 0
        %2384 = vmatpush1.bf16.msra.mxu0 %v2361
        %2385 = vmatprep.subr.bf16.mxu0 0
        %2386 = vmatpush1.bf16.msra.mxu0 %v2362
        %2387 = vmatprep.subr.bf16.mxu0 0
        %2388 = vmatpush1.bf16.msra.mxu0 0
        %2389 = vmatprep.subr.bf16.mxu0 0
        %2390 = vmatpush1.bf16.msra.mxu0 0
        %2391 = vmatprep.subr.bf16.mxu0 0
        %2392 = vmatpush1.bf16.msra.mxu0 0
        %2393 = vmatprep.subr.bf16.mxu0 0
        %2394 = vmatpush1.bf16.msra.mxu0 0
        %2395 = vmatprep.subr.bf16.mxu0 0
        %2396 = vmatpush1.bf16.msra.mxu0 0
        %2397 = vmatprep.subr.bf16.mxu0 0
        %2398 = vmatpush1.bf16.msra.mxu0 0
        %2399 = vmatprep.subr.bf16.mxu0 0
        %2400 = vmatpush1.bf16.msra.mxu0 0
        %2401 = vmatprep.subr.bf16.mxu0 0
        %2402 = vmatpush1.bf16.msra.mxu0 0
        %2403 = vmatprep.subr.bf16.mxu0 0
        %2404 = vmatpush1.bf16.msra.mxu0 0
        %2405 = vmatprep.subr.bf16.mxu0 0
        %2406 = vmatpush1.bf16.msra.mxu0 0
        %2407 = vmatprep.subr.bf16.mxu0 0
        %2408 = vmatpush1.bf16.msra.mxu0 0
        %2409 = vmatprep.subr.bf16.mxu0 0
        %2410 = vmatpush1.bf16.msra.mxu0 0
        %2411 = vmatprep.mubr.bf16.mxu0 0
        %2412 = vmatmul.mubr.bf16.gmra.mrb[0].mxu0 %v2368
        %v2413 = vpop.f32.mrb[0].mxu0
        %v2414 = vadd.f32 0.0, %v2413
        %v2415 = vpop.f32.mrb[0].mxu0
        %v2416 = vpop.f32.mrb[0].mxu0
        %v2417 = vadd.f32 0.0, %v2416
        %v2418 = vpop.f32.mrb[0].mxu0
        %2419 = vmatprep.mubr.bf16.mxu0 0
        %2420 = vmatmul.mubr.bf16.gmra.mrb[0].mxu0 %v2371
        %v2421 = vpop.f32.mrb[0].mxu0
        %v2422 = vadd.f32 0.0, %v2421
        %v2423 = vpop.f32.mrb[0].mxu0
        %v2424 = vpop.f32.mrb[0].mxu0
        %v2425 = vadd.f32 0.0, %v2424
        %v2426 = vpop.f32.mrb[0].mxu0
        %2427 = vmatprep.mubr.bf16.mxu0 0
        %2428 = vmatmul.mubr.bf16.gmra.mrb[0].mxu0 %v2374
        %v2429 = vpop.f32.mrb[0].mxu0
        %v2430 = vadd.f32 0.0, %v2429
        %v2431 = vpop.f32.mrb[0].mxu0
        %v2432 = vpop.f32.mrb[0].mxu0
        %v2433 = vadd.f32 0.0, %v2432
        %v2434 = vpop.f32.mrb[0].mxu0
        %2435 = vmatprep.mubr.bf16.mxu0 0
        %2436 = vmatmul.mubr.bf16.gmra.mrb[0].mxu0 %v2377
        %v2437 = vpop.f32.mrb[0].mxu0
        %v2438 = vadd.f32 0.0, %v2437
        %v2439 = vpop.f32.mrb[0].mxu0
        %v2440 = vpop.f32.mrb[0].mxu0
        %v2441 = vadd.f32 0.0, %v2440
        %v2442 = vpop.f32.mrb[0].mxu0
        %2443 = vdwg.mxu0
        %v2444 = vadd.f32 %v1759, %v2414
        %v2445 = vadd.f32 %v1762, %v2417
        %v2446 = vadd.f32 %v1767, %v2422
        %v2447 = vadd.f32 %v1770, %v2425
        %v2448 = vadd.f32 %v1775, %v2430
        %v2449 = vadd.f32 %v1778, %v2433
        %v2450 = vadd.f32 %v1783, %v2438
        %v2451 = vadd.f32 %v1786, %v2441
        %v2452 = vld [vmem:[%s5] sm:$0x1]
        %v2454 = vlaneseq
        %v2455 = vshrl.u32 %v2454, 7
        %v2456 = vsub.s32 0, %v2455
        %v2457 = vrot.slane %v2452, %v2456
        %v2459 = vadd.f32 %v2444, %v2457
        %v2460 = vadd.f32 %v2445, %v2457
        %v2461 = vadd.f32 %v2446, %v2457
        %v2462 = vadd.f32 %v2447, %v2457
        %v2463 = vadd.f32 %v2448, %v2457
        %v2464 = vadd.f32 %v2449, %v2457
        %v2465 = vadd.f32 %v2450, %v2457
        %v2466 = vadd.f32 %v2451, %v2457
        %2467 = vst [vmem:[%s245] sm:$0xff] %v2459
        %2468 = vst [vmem:[%s245 + $0x8] sm:$0xff] %v2460
        %2469 = vst [vmem:[%s245 + $0x10] sm:$0xff] %v2461
        %2470 = vst [vmem:[%s245 + $0x18] sm:$0xff] %v2462
        %2471 = vst [vmem:[%s245 + $0x20] sm:$0xff] %v2463
        %2472 = vst [vmem:[%s245 + $0x28] sm:$0xff] %v2464
        %2473 = vst [vmem:[%s245 + $0x30] sm:$0xff] %v2465
        %2474 = vst [vmem:[%s245 + $0x38] sm:$0xff] %v2466
        %s2475 = sand.u32 %s159, 1
        %s2476 = scalar_lea.sflag [#allocation4], %s2475
        %s2477 = sand.u32 %s159, 1
        %s2478 = smul.addr %s2477, 64
        %s2479 = scalar_lea.vmem [#allocation3], %s2478
        // Predicated region
        $region45: #{tpu_custom_call.1} parent=43 // pred_check
          %p2480 = pneg %p169
        $region46: #{tpu_custom_call.1} parent=43 // pred_check_branch
          %2482 = sbr.rel (%p2480) target = $region48
        $region47: #{tpu_custom_call.1} parent=43 // pred_region
          %s2483 = smul.u32 8, %s20
          %s2485 = ssub.s32 1024, 1024
          %2486 = vsyncadd %s2476, %s2485
          %s2487 = smul.addr %s2483, 128
          %s2488 = scalar_lea.hbm %s6, %s2487
          %s2489 = sshll.u32 %s2479, 4
          %s2490 = int_to_ptr.vmem [resolvable:$true] %s2489
          %2495 = dma.vmem_to_hbm [thread:$0]  %s2490, 1024, %s2488, %s2476, 128, 128, 8
        $region48: #{tpu_custom_call.1} parent=43 // pred_fallthru
          _
      $region44: #{tpu_custom_call.1} parent=5 // pred_fallthru
        _
      %p2496 = scmp.le.s32.totalorder 2, %s15
      // Predicated region
      $region49: #{tpu_custom_call.1} parent=5 // pred_check
        %p2497 = pneg %p2496
      $region50: #{tpu_custom_call.1} parent=5 // pred_check_branch
        %2499 = sbr.rel (%p2497) target = $region52
      $region51: #{tpu_custom_call.1} parent=5 // pred_region
        %s2500 = ssub.s32 %s15, 2
        // Predicated region
        $region53: #{tpu_custom_call.1} parent=51 // pred_check
          %p2501 = pneg %p175
        $region54: #{tpu_custom_call.1} parent=51 // pred_check_branch
          %2503 = sbr.rel (%p2501) target = $region56
        $region55: #{tpu_custom_call.1} parent=51 // pred_region
          %s2504 = sand.u32 %s160, 1
          %s2505 = scalar_lea.sflag [#allocation4], %s2504
          %s2506 = sand.u32 %s160, 1
          %s2507 = smul.addr %s2506, 64
          %s2508 = scalar_lea.vmem [#allocation3], %s2507
          %2509 = dma.done %s2505, 1024
        $region56: #{tpu_custom_call.1} parent=51 // pred_fallthru
          _
      $region52: #{tpu_custom_call.1} parent=5 // pred_fallthru
        _
    $region6: #{tpu_custom_call.1} parent=1 // loop_footer
      %s19 = sadd.s32 1, %s15
    $region7: #{tpu_custom_call.1} parent=1 // loop_footer_branch
      %14 = sbr.rel target = $region3
    $region8: #{tpu_custom_call.1} parent=1 // loop_exit
      _
    %2510 = vsyncpa [#allocation4], 1
    %s2511 = scalar_lea.sflag [#allocation4], 1
    %2512 = vsyncpa %s2511, 1

// kernel: tpu_custom_call.1
$region0: #{tpu_custom_call.1}
  #allocation0 [shape = 'u32[]', space=smem, size = 0x4, offset = 0x4, fixed_abs, tag = 'smem constant byte address 0x4 - core index']
  #allocation1 [shape = 'u32[144,128]{1,0:T(1,128)}', space=vmem, size = 0x12000, scoped, tag = 'internal scratch']
  #allocation2 [shape = 'f32[64,384]{1,0:T(8,128)}', space=vmem, size = 0x18000, scoped, tag = 'scratch operand']
  %s0 = inlined_call_operand.vmem [shape: f32[256,32], index: 0, kind: input, shape index: {}]
  %s1 = inlined_call_operand.vmem [shape: bf16[32,384], index: 1, kind: input, shape index: {}]
  %s2 = inlined_call_operand.vmem [shape: bf16[3,64,64], index: 2, kind: input, shape index: {}]
  %s3 = inlined_call_operand.vmem [shape: bf16[3,64,128], index: 3, kind: input, shape index: {}]
  %s4 = inlined_call_operand.vmem [shape: f32[3,6,64], index: 4, kind: input, shape index: {}]
  %s5 = inlined_call_operand.vmem [shape: f32[1,128], index: 5, kind: input, shape index: {}]
  %s6 = inlined_call_operand.hbm [shape: f32[256,128], index: 6, kind: output, shape index: {}]
  %s7 = sld [smem:[#allocation0]]
  $region57: #{tpu_custom_call.1} parent=0
    _
  %s9 = ssub.s32 1, %s7
  %s10 = scalar_select 0, %s9, %s7
  $region1: #{tpu_custom_call.1} parent=0
    #allocation3 [shape = 'u8[65536]{0}', space=vmem, size = 0x10000, scoped, tag = 'output window, operand 0']
    #allocation4 [shape = 's32[2]{0}', space=sflag, size = 0x8, scoped, tag = 'scoped memory for tpu_custom_call.1']
    %11 = vsyncpa [#allocation4], 0
    %s12 = scalar_lea.sflag [#allocation4], 1
    %13 = vsyncpa %s12, 0
    loop: start=0, step=1, limit=6
    $region2: #{tpu_custom_call.1} parent=1 // loop_pre_header
      _
    $region3: #{tpu_custom_call.1} parent=1 // loop_header
      %s15 = sphi 0, %s19
      %p16 = scmp.ge.s32.totalorder %s15, 6
      %s25 = sphi 0, %s27
      %s28 = sphi 0, %s25
      %s29 = sphi 0, %s28
      %s45 = sphi 0, %s29
      %s49 = sphi 0, %s49
      %s51 = sphi 0, %s49
      %s52 = sphi 0, %s51
      %s66 = sphi 0, %s52
      %s70 = sphi 0, %s70
      %s72 = sphi 0, %s70
      %s73 = sphi 0, %s72
      %s87 = sphi 0, %s73
      %s91 = sphi 0, %s91
      %s93 = sphi 0, %s91
      %s94 = sphi 0, %s93
      %s108 = sphi 0, %s94
      %s112 = sphi 0, %s112
      %s114 = sphi 0, %s112
      %s115 = sphi 0, %s114
      %s129 = sphi 0, %s115
      %s133 = sphi 0, %s133
      %s135 = sphi 0, %s133
      %s136 = sphi 0, %s135
      %s150 = sphi 0, %s136
      %s156 = sphi 0, %s158
      %s159 = sphi 0, %s156
      %s160 = sphi 0, %s159
      %s176 = sphi 0, %s160
    $region4: #{tpu_custom_call.1} parent=1 // loop_header_branch
      %18 = sbr.rel (%p16) target = $region8
    $region5: #{tpu_custom_call.1} parent=1 // loop_body
      %s20 = ssub.s32 %s15, 1
      %s21 = ssub.s32 %s15, 2
      %s22 = sadd.s32 %s15, 1
      %s23 = ssub.s32 %s15, %s22
      %p24 = scmp.eq.s32.totalorder %s23, 0
      %s26 = sadd.s32 %s25, 1
      %s27 = scalar_select %p24, %s25, %s26
      %p30 = pneg %p24
      %p31 = scmp.eq.s32.totalorder %s15, 3
      %p32 = por %p30, %p31
      %p33 = scmp.ne.s32.totalorder %s25, %s28
      %p34 = scmp.eq.s32.totalorder %s15, 0
      %p35 = por %p33, %p34
      %p36 = scmp.ne.s32.totalorder %s25, %s28
      %p37 = scmp.eq.s32.totalorder %s20, 3
      %p38 = por %p36, %p37
      %p39 = scmp.ne.s32.totalorder %s28, %s29
      %p40 = scmp.eq.s32.totalorder %s20, 0
      %p41 = por %p39, %p40
      %p42 = scmp.ne.s32.totalorder %s28, %s29
      %p43 = scmp.eq.s32.totalorder %s21, 3
      %p44 = por %p42, %p43
      %p46 = scmp.ne.s32.totalorder %s29, %s45
      %p47 = scmp.eq.s32.totalorder %s21, 0
      %p48 = por %p46, %p47
      %s50 = sadd.s32 %s49, 1
      %p53 = scmp.eq.s32.totalorder %s15, 3
      %p54 = scmp.ne.s32.totalorder %s49, %s51
      %p55 = scmp.eq.s32.totalorder %s15, 0
      %p56 = por %p54, %p55
      %p57 = scmp.ne.s32.totalorder %s49, %s51
      %p58 = scmp.eq.s32.totalorder %s20, 3
      %p59 = por %p57, %p58
      %p60 = scmp.ne.s32.totalorder %s51, %s52
      %p61 = scmp.eq.s32.totalorder %s20, 0
      %p62 = por %p60, %p61
      %p63 = scmp.ne.s32.totalorder %s51, %s52
      %p64 = scmp.eq.s32.totalorder %s21, 3
      %p65 = por %p63, %p64
      %p67 = scmp.ne.s32.totalorder %s52, %s66
      %p68 = scmp.eq.s32.totalorder %s21, 0
      %p69 = por %p67, %p68
      %s71 = sadd.s32 %s70, 1
      %p74 = scmp.eq.s32.totalorder %s15, 3
      %p75 = scmp.ne.s32.totalorder %s70, %s72
      %p76 = scmp.eq.s32.totalorder %s15, 0
      %p77 = por %p75, %p76
      %p78 = scmp.ne.s32.totalorder %s70, %s72
      %p79 = scmp.eq.s32.totalorder %s20, 3
      %p80 = por %p78, %p79
      %p81 = scmp.ne.s32.totalorder %s72, %s73
      %p82 = scmp.eq.s32.totalorder %s20, 0
      %p83 = por %p81, %p82
      %p84 = scmp.ne.s32.totalorder %s72, %s73
      %p85 = scmp.eq.s32.totalorder %s21, 3
      %p86 = por %p84, %p85
      %p88 = scmp.ne.s32.totalorder %s73, %s87
      %p89 = scmp.eq.s32.totalorder %s21, 0
      %p90 = por %p88, %p89
      %s92 = sadd.s32 %s91, 1
      %p95 = scmp.eq.s32.totalorder %s15, 3
      %p96 = scmp.ne.s32.totalorder %s91, %s93
      %p97 = scmp.eq.s32.totalorder %s15, 0
      %p98 = por %p96, %p97
      %p99 = scmp.ne.s32.totalorder %s91, %s93
      %p100 = scmp.eq.s32.totalorder %s20, 3
      %p101 = por %p99, %p100
      %p102 = scmp.ne.s32.totalorder %s93, %s94
      %p103 = scmp.eq.s32.totalorder %s20, 0
      %p104 = por %p102, %p103
      %p105 = scmp.ne.s32.totalorder %s93, %s94
      %p106 = scmp.eq.s32.totalorder %s21, 3
      %p107 = por %p105, %p106
      %p109 = scmp.ne.s32.totalorder %s94, %s108
      %p110 = scmp.eq.s32.totalorder %s21, 0
      %p111 = por %p109, %p110
      %s113 = sadd.s32 %s112, 1
      %p116 = scmp.eq.s32.totalorder %s15, 3
      %p117 = scmp.ne.s32.totalorder %s112, %s114
      %p118 = scmp.eq.s32.totalorder %s15, 0
      %p119 = por %p117, %p118
      %p120 = scmp.ne.s32.totalorder %s112, %s114
      %p121 = scmp.eq.s32.totalorder %s20, 3
      %p122 = por %p120, %p121
      %p123 = scmp.ne.s32.totalorder %s114, %s115
      %p124 = scmp.eq.s32.totalorder %s20, 0
      %p125 = por %p123, %p124
      %p126 = scmp.ne.s32.totalorder %s114, %s115
      %p127 = scmp.eq.s32.totalorder %s21, 3
      %p128 = por %p126, %p127
      %p130 = scmp.ne.s32.totalorder %s115, %s129
      %p131 = scmp.eq.s32.totalorder %s21, 0
      %p132 = por %p130, %p131
      %s134 = sadd.s32 %s133, 1
      %p137 = scmp.eq.s32.totalorder %s15, 3
      %p138 = scmp.ne.s32.totalorder %s133, %s135
      %p139 = scmp.eq.s32.totalorder %s15, 0
      %p140 = por %p138, %p139
      %p141 = scmp.ne.s32.totalorder %s133, %s135
      %p142 = scmp.eq.s32.totalorder %s20, 3
      %p143 = por %p141, %p142
      %p144 = scmp.ne.s32.totalorder %s135, %s136
      %p145 = scmp.eq.s32.totalorder %s20, 0
      %p146 = por %p144, %p145
      %p147 = scmp.ne.s32.totalorder %s135, %s136
      %p148 = scmp.eq.s32.totalorder %s21, 3
      %p149 = por %p147, %p148
      %p151 = scmp.ne.s32.totalorder %s136, %s150
      %p152 = scmp.eq.s32.totalorder %s21, 0
      %p153 = por %p151, %p152
      %s154 = ssub.s32 %s15, %s22
      %p155 = scmp.eq.s32.totalorder %s154, 0
      %s157 = sadd.s32 %s156, 1
      %s158 = scalar_select %p155, %s156, %s157
      %p161 = pneg %p155
      %p162 = scmp.eq.s32.totalorder %s15, 3
      %p163 = por %p161, %p162
      %p164 = scmp.ne.s32.totalorder %s156, %s159
      %p165 = scmp.eq.s32.totalorder %s15, 0
      %p166 = por %p164, %p165
      %p167 = scmp.ne.s32.totalorder %s156, %s159
      %p168 = scmp.eq.s32.totalorder %s20, 3
      %p169 = por %p167, %p168
      %p170 = scmp.ne.s32.totalorder %s159, %s160
      %p171 = scmp.eq.s32.totalorder %s20, 0
      %p172 = por %p170, %p171
      %p173 = scmp.ne.s32.totalorder %s159, %s160
      %p174 = scmp.eq.s32.totalorder %s21, 3
      %p175 = por %p173, %p174
      %p177 = scmp.ne.s32.totalorder %s160, %s176
      %p178 = scmp.eq.s32.totalorder %s21, 0
      %p179 = por %p177, %p178
      %p180 = scmp.le.s32.totalorder 1, %s15
      %p181 = scmp.lt.s32.totalorder %s15, 5
      %p182 = pnand %p180, %p181
      %p183 = pneg %p182
      // Predicated region
      $region9: #{tpu_custom_call.1} parent=5 // pred_check
        _
      $region10: #{tpu_custom_call.1} parent=5 // pred_check_branch
        %185 = sbr.rel (%p182) target = $region12
      $region11: #{tpu_custom_call.1} parent=5 // pred_region
        %s186 = ssub.s32 %s15, 1
        // Predicated region
        $region13: #{tpu_custom_call.1} parent=11 // pred_check
          %p187 = pneg %p62
        $region14: #{tpu_custom_call.1} parent=11 // pred_check_branch
          %189 = sbr.rel (%p187) target = $region16
        $region15: #{tpu_custom_call.1} parent=11 // pred_region
          _
        $region16: #{tpu_custom_call.1} parent=11 // pred_fallthru
          _
        // Predicated region
        $region17: #{tpu_custom_call.1} parent=11 // pred_check
          %p190 = pneg %p83
        $region18: #{tpu_custom_call.1} parent=11 // pred_check_branch
          %192 = sbr.rel (%p190) target = $region20
        $region19: #{tpu_custom_call.1} parent=11 // pred_region
          _
        $region20: #{tpu_custom_call.1} parent=11 // pred_fallthru
          _
        // Predicated region
        $region21: #{tpu_custom_call.1} parent=11 // pred_check
          %p193 = pneg %p104
        $region22: #{tpu_custom_call.1} parent=11 // pred_check_branch
          %195 = sbr.rel (%p193) target = $region24
        $region23: #{tpu_custom_call.1} parent=11 // pred_region
          _
        $region24: #{tpu_custom_call.1} parent=11 // pred_fallthru
          _
        // Predicated region
        $region25: #{tpu_custom_call.1} parent=11 // pred_check
          %p196 = pneg %p125
        $region26: #{tpu_custom_call.1} parent=11 // pred_check_branch
          %198 = sbr.rel (%p196) target = $region28
        $region27: #{tpu_custom_call.1} parent=11 // pred_region
          _
        $region28: #{tpu_custom_call.1} parent=11 // pred_fallthru
          _
        // Predicated region
        $region29: #{tpu_custom_call.1} parent=11 // pred_check
          %p199 = pneg %p146
        $region30: #{tpu_custom_call.1} parent=11 // pred_check_branch
          %201 = sbr.rel (%p199) target = $region32
        $region31: #{tpu_custom_call.1} parent=11 // pred_region
          _
        $region32: #{tpu_custom_call.1} parent=11 // pred_fallthru
          _
      $region12: #{tpu_custom_call.1} parent=5 // pred_fallthru
        _
      %p202 = scmp.lt.s32.totalorder %s15, 4
      // Predicated region
      $region33: #{tpu_custom_call.1} parent=5 // pred_check
        %p203 = pneg %p202
      $region34: #{tpu_custom_call.1} parent=5 // pred_check_branch
        %205 = sbr.rel (%p203) target = $region36
      $region35: #{tpu_custom_call.1} parent=5 // pred_region
        // Predicated region
        $region37: #{tpu_custom_call.1} parent=35 // pred_check
          %p206 = pneg %p35
        $region38: #{tpu_custom_call.1} parent=35 // pred_check_branch
          %208 = sbr.rel (%p206) target = $region40
        $region39: #{tpu_custom_call.1} parent=35 // pred_region
          %s209 = smul.u32 8, %s15
          %p210 = scmp.lt.s32.totalorder %s209, 31
          %s211 = scalar_select %p210, %s209, 31
          %s212 = smul.addr %s211, 8
          %s213 = scalar_lea.vmem %s0, %s212
          %s214 = smul.u32 8, %s15
        $region40: #{tpu_custom_call.1} parent=35 // pred_fallthru
          _
      $region36: #{tpu_custom_call.1} parent=5 // pred_fallthru
        _
      %p215 = scmp.le.s32.totalorder 1, %s15
      %p216 = scmp.lt.s32.totalorder %s15, 5
      %p217 = pnand %p215, %p216
      %p218 = pneg %p217
      // Predicated region
      $region41: #{tpu_custom_call.1} parent=5 // pred_check
        _
      $region42: #{tpu_custom_call.1} parent=5 // pred_check_branch
        %220 = sbr.rel (%p217) target = $region44
      $region43: #{tpu_custom_call.1} parent=5 // pred_region
        %s221 = ssub.s32 %s15, 1
        %s222 = smul.u32 8, %s20
        %p223 = scmp.lt.s32.totalorder %s222, 31
        %s224 = scalar_select %p223, %s222, 31
        %s225 = smul.addr %s224, 8
        %s226 = scalar_lea.vmem %s0, %s225
        %p227 = pneg %p41
        %p228 = pneg %p38
        %p229 = pneg %p62
        %p230 = pneg %p59
        %p231 = pneg %p83
        %p232 = pneg %p80
        %p233 = pneg %p104
        %p234 = pneg %p101
        %p235 = pneg %p125
        %p236 = pneg %p122
        %p237 = pneg %p146
        %p238 = pneg %p143
        %p239 = pneg %p172
        %p240 = pneg %p169
        %s241 = sand.u32 %s159, 1
        %s242 = scalar_lea.sflag [#allocation4], %s241
        %s243 = sand.u32 %s159, 1
        %s244 = smul.addr %s243, 64
        %s245 = scalar_lea.vmem [#allocation3], %s244
        %s246 = smul.u32 8, %s20
        %p247 = scmp.lt.s32.totalorder %s246, 31
        %s248 = scalar_select %p247, %s246, 31
        %s249 = smul.addr %s248, 8
        %s250 = scalar_lea.vmem %s0, %s249
        %s251 = smul.u32 8, %s20
        %s252 = smul.u32 8, %s20
        %v254 = vld [vmem:[%s250] sm:$0xff]
        %v255 = vld [vmem:[%s250 + $0x8] sm:$0xff]
        %v256 = vld [vmem:[%s250 + $0x10] sm:$0xff]
        %v257 = vld [vmem:[%s250 + $0x18] sm:$0xff]
        %v258 = vld [vmem:[%s250 + $0x20] sm:$0xff]
        %v259 = vld [vmem:[%s250 + $0x28] sm:$0xff]
        %v260 = vld [vmem:[%s250 + $0x30] sm:$0xff]
        %v261 = vld [vmem:[%s250 + $0x38] sm:$0xff]
        %v262 = vpack.c.bf16 %v255, %v254
        %v263 = vpack.c.bf16 %v257, %v256
        %v264 = vpack.c.bf16 %v259, %v258
        %v265 = vpack.c.bf16 %v261, %v260
        %v266 = vld [vmem:[%s1] sm:$0xff]
        %v267 = vld [vmem:[%s1 + $0x8] sm:$0xf]
        %v268 = vld [vmem:[%s1 + $0xc] sm:$0xff]
        %v269 = vld [vmem:[%s1 + $0x14] sm:$0xf]
        %v270 = vld [vmem:[%s1 + $0x18] sm:$0xff]
        %v271 = vld [vmem:[%s1 + $0x20] sm:$0xf]
        %v272 = vld [vmem:[%s1 + $0x24] sm:$0xff]
        %v273 = vld [vmem:[%s1 + $0x2c] sm:$0xf]
        %v282 = vunpack.c.l.b16 %v266
        %v283 = vunpack.c.h.b16 %v266
        %v284 = vunpack.c.l.b16 %v267
        %v285 = vunpack.c.l.b16 %v268
        %v286 = vunpack.c.h.b16 %v268
        %v287 = vunpack.c.l.b16 %v269
        %v288 = vunpack.c.l.b16 %v270
        %v289 = vunpack.c.h.b16 %v270
        %v290 = vunpack.c.l.b16 %v271
        %v291 = vunpack.c.l.b16 %v272
        %v292 = vunpack.c.h.b16 %v272
        %v293 = vunpack.c.l.b16 %v273
        %v294 = vpack.c.b16 %v285, %v282
        %v295 = vpack.c.b16 %v286, %v283
        %v296 = vpack.c.b16 %v287, %v284
        %v297 = vpack.c.b16 %v291, %v288
        %v298 = vpack.c.b16 %v292, %v289
        %v299 = vpack.c.b16 %v293, %v290
        %vm306 = vcmask 261120
        %v308 = vsel %vm306, %v262, 0
        %v311 = vsel %vm306, %v263, 0
        %v314 = vsel %vm306, %v264, 0
        %v317 = vsel %vm306, %v265, 0
        %319 = vmatprep.subr.bf16.mxu0 %v295
        %320 = vmatpush1.bf16.msra.mxu0 %v294
        %321 = vmatprep.subr.bf16.mxu0 %v298
        %322 = vmatpush1.bf16.msra.mxu0 %v297
        %323 = vmatprep.subr.bf16.mxu0 0
        %324 = vmatpush1.bf16.msra.mxu0 0
        %325 = vmatprep.subr.bf16.mxu0 0
        %326 = vmatpush1.bf16.msra.mxu0 0
        %327 = vmatprep.subr.bf16.mxu0 0
        %328 = vmatpush1.bf16.msra.mxu0 0
        %329 = vmatprep.subr.bf16.mxu0 0
        %330 = vmatpush1.bf16.msra.mxu0 0
        %331 = vmatprep.subr.bf16.mxu0 0
        %332 = vmatpush1.bf16.msra.mxu0 0
        %333 = vmatprep.subr.bf16.mxu0 0
        %334 = vmatpush1.bf16.msra.mxu0 0
        %335 = vmatprep.subr.bf16.mxu0 0
        %336 = vmatpush1.bf16.msra.mxu0 0
        %337 = vmatprep.subr.bf16.mxu0 0
        %338 = vmatpush1.bf16.msra.mxu0 0
        %339 = vmatprep.subr.bf16.mxu0 0
        %340 = vmatpush1.bf16.msra.mxu0 0
        %341 = vmatprep.subr.bf16.mxu0 0
        %342 = vmatpush1.bf16.msra.mxu0 0
        %343 = vmatprep.subr.bf16.mxu0 0
        %344 = vmatpush1.bf16.msra.mxu0 0
        %345 = vmatprep.subr.bf16.mxu0 0
        %346 = vmatpush1.bf16.msra.mxu0 0
        %347 = vmatprep.subr.bf16.mxu0 0
        %348 = vmatpush1.bf16.msra.mxu0 0
        %349 = vmatprep.subr.bf16.mxu0 0
        %350 = vmatpush1.bf16.msra.mxu0 0
        %351 = vmatprep.mubr.bf16.mxu0 0
        %352 = vmatmul.mubr.bf16.gmra.mrb[0].mxu0 %v308
        %v353 = vpop.f32.mrb[0].mxu0
        %v354 = vadd.f32 0.0, %v353
        %v355 = vpop.f32.mrb[0].mxu0
        %v356 = vadd.f32 0.0, %v355
        %v357 = vpop.f32.mrb[0].mxu0
        %v358 = vadd.f32 0.0, %v357
        %v359 = vpop.f32.mrb[0].mxu0
        %v360 = vadd.f32 0.0, %v359
        %361 = vmatprep.mubr.bf16.mxu0 0
        %362 = vmatmul.mubr.bf16.gmra.mrb[0].mxu0 %v311
        %v363 = vpop.f32.mrb[0].mxu0
        %v364 = vadd.f32 0.0, %v363
        %v365 = vpop.f32.mrb[0].mxu0
        %v366 = vadd.f32 0.0, %v365
        %v367 = vpop.f32.mrb[0].mxu0
        %v368 = vadd.f32 0.0, %v367
        %v369 = vpop.f32.mrb[0].mxu0
        %v370 = vadd.f32 0.0, %v369
        %371 = vmatprep.mubr.bf16.mxu0 0
        %372 = vmatmul.mubr.bf16.gmra.mrb[0].mxu0 %v314
        %v373 = vpop.f32.mrb[0].mxu0
        %v374 = vadd.f32 0.0, %v373
        %v375 = vpop.f32.mrb[0].mxu0
        %v376 = vadd.f32 0.0, %v375
        %v377 = vpop.f32.mrb[0].mxu0
        %v378 = vadd.f32 0.0, %v377
        %v379 = vpop.f32.mrb[0].mxu0
        %v380 = vadd.f32 0.0, %v379
        %381 = vmatprep.mubr.bf16.mxu0 0
        %382 = vmatmul.mubr.bf16.gmra.mrb[0].mxu0 %v317
        %v383 = vpop.f32.mrb[0].mxu0
        %v384 = vadd.f32 0.0, %v383
        %v385 = vpop.f32.mrb[0].mxu0
        %v386 = vadd.f32 0.0, %v385
        %v387 = vpop.f32.mrb[0].mxu0
        %v388 = vadd.f32 0.0, %v387
        %v389 = vpop.f32.mrb[0].mxu0
        %v390 = vadd.f32 0.0, %v389
        %391 = vdwg.mxu0
        %392 = vmatprep.subr.bf16.mxu0 0
        %393 = vmatpush1.bf16.msra.mxu0 %v296
        %394 = vmatprep.subr.bf16.mxu0 0
        %395 = vmatpush1.bf16.msra.mxu0 %v299
        %396 = vmatprep.subr.bf16.mxu0 0
        %397 = vmatpush1.bf16.msra.mxu0 0
        %398 = vmatprep.subr.bf16.mxu0 0
        %399 = vmatpush1.bf16.msra.mxu0 0
        %400 = vmatprep.subr.bf16.mxu0 0
        %401 = vmatpush1.bf16.msra.mxu0 0
        %402 = vmatprep.subr.bf16.mxu0 0
        %403 = vmatpush1.bf16.msra.mxu0 0
        %404 = vmatprep.subr.bf16.mxu0 0
        %405 = vmatpush1.bf16.msra.mxu0 0
        %406 = vmatprep.subr.bf16.mxu0 0
        %407 = vmatpush1.bf16.msra.mxu0 0
        %408 = vmatprep.subr.bf16.mxu0 0
        %409 = vmatpush1.bf16.msra.mxu0 0
        %410 = vmatprep.subr.bf16.mxu0 0
        %411 = vmatpush1.bf16.msra.mxu0 0
        %412 = vmatprep.subr.bf16.mxu0 0
        %413 = vmatpush1.bf16.msra.mxu0 0
        %414 = vmatprep.subr.bf16.mxu0 0
        %415 = vmatpush1.bf16.msra.mxu0 0
        %416 = vmatprep.subr.bf16.mxu0 0
        %417 = vmatpush1.bf16.msra.mxu0 0
        %418 = vmatprep.subr.bf16.mxu0 0
        %419 = vmatpush1.bf16.msra.mxu0 0
        %420 = vmatprep.subr.bf16.mxu0 0
        %421 = vmatpush1.bf16.msra.mxu0 0
        %422 = vmatprep.subr.bf16.mxu0 0
        %423 = vmatpush1.bf16.msra.mxu0 0
        %424 = vmatprep.mubr.bf16.mxu0 0
        %425 = vmatmul.mubr.bf16.gmra.mrb[0].mxu0 %v308
        %v426 = vpop.f32.mrb[0].mxu0
        %v427 = vadd.f32 0.0, %v426
        %v428 = vpop.f32.mrb[0].mxu0
        %v429 = vpop.f32.mrb[0].mxu0
        %v430 = vadd.f32 0.0, %v429
        %v431 = vpop.f32.mrb[0].mxu0
        %432 = vmatprep.mubr.bf16.mxu0 0
        %433 = vmatmul.mubr.bf16.gmra.mrb[0].mxu0 %v311
        %v434 = vpop.f32.mrb[0].mxu0
        %v435 = vadd.f32 0.0, %v434
        %v436 = vpop.f32.mrb[0].mxu0
        %v437 = vpop.f32.mrb[0].mxu0
        %v438 = vadd.f32 0.0, %v437
        %v439 = vpop.f32.mrb[0].mxu0
        %440 = vmatprep.mubr.bf16.mxu0 0
        %441 = vmatmul.mubr.bf16.gmra.mrb[0].mxu0 %v314
        %v442 = vpop.f32.mrb[0].mxu0
        %v443 = vadd.f32 0.0, %v442
        %v444 = vpop.f32.mrb[0].mxu0
        %v445 = vpop.f32.mrb[0].mxu0
        %v446 = vadd.f32 0.0, %v445
        %v447 = vpop.f32.mrb[0].mxu0
        %448 = vmatprep.mubr.bf16.mxu0 0
        %449 = vmatmul.mubr.bf16.gmra.mrb[0].mxu0 %v317
        %v450 = vpop.f32.mrb[0].mxu0
        %v451 = vadd.f32 0.0, %v450
        %v452 = vpop.f32.mrb[0].mxu0
        %v453 = vpop.f32.mrb[0].mxu0
        %v454 = vadd.f32 0.0, %v453
        %v455 = vpop.f32.mrb[0].mxu0
        %456 = vdwg.mxu0
        %457 = vst [vmem:[#allocation2] sm:$0xff] %v354
        %458 = vst [vmem:[#allocation2 + $0x8] sm:$0xff] %v356
        %459 = vst [vmem:[#allocation2 + $0x10] sm:$0xff] %v427
        %460 = vst [vmem:[#allocation2 + $0x18] sm:$0xff] %v358
        %461 = vst [vmem:[#allocation2 + $0x20] sm:$0xff] %v360
        %462 = vst [vmem:[#allocation2 + $0x28] sm:$0xff] %v430
        %463 = vst [vmem:[#allocation2 + $0x30] sm:$0xff] %v364
        %464 = vst [vmem:[#allocation2 + $0x38] sm:$0xff] %v366
        %465 = vst [vmem:[#allocation2 + $0x40] sm:$0xff] %v435
        %466 = vst [vmem:[#allocation2 + $0x48] sm:$0xff] %v368
        %467 = vst [vmem:[#allocation2 + $0x50] sm:$0xff] %v370
        %468 = vst [vmem:[#allocation2 + $0x58] sm:$0xff] %v438
        %469 = vst [vmem:[#allocation2 + $0x60] sm:$0xff] %v374
        %470 = vst [vmem:[#allocation2 + $0x68] sm:$0xff] %v376
        %471 = vst [vmem:[#allocation2 + $0x70] sm:$0xff] %v443
        %472 = vst [vmem:[#allocation2 + $0x78] sm:$0xff] %v378
        %473 = vst [vmem:[#allocation2 + $0x80] sm:$0xff] %v380
        %474 = vst [vmem:[#allocation2 + $0x88] sm:$0xff] %v446
        %475 = vst [vmem:[#allocation2 + $0x90] sm:$0xff] %v384
        %476 = vst [vmem:[#allocation2 + $0x98] sm:$0xff] %v386
        %477 = vst [vmem:[#allocation2 + $0xa0] sm:$0xff] %v451
        %478 = vst [vmem:[#allocation2 + $0xa8] sm:$0xff] %v388
        %479 = vst [vmem:[#allocation2 + $0xb0] sm:$0xff] %v390
        %480 = vst [vmem:[#allocation2 + $0xb8] sm:$0xff] %v454
        %v481 = vld [vmem:[%s4] sm:$0x3f]
        %v482 = vld [vmem:[#allocation2] sm:$0xff]
        %v483 = vld [vmem:[#allocation2 + $0x18] sm:$0xff]
        %v484 = vld [vmem:[#allocation2 + $0x30] sm:$0xff]
        %v485 = vld [vmem:[#allocation2 + $0x48] sm:$0xff]
        %v486 = vld [vmem:[#allocation2 + $0x60] sm:$0xff]
        %v487 = vld [vmem:[#allocation2 + $0x78] sm:$0xff]
        %v488 = vld [vmem:[#allocation2 + $0x90] sm:$0xff]
        %v489 = vld [vmem:[#allocation2 + $0xa8] sm:$0xff]
        %v490 = vlaneseq
        %v491 = vshrl.u32 %v490, 7
        %v492 = vsub.s32 0, %v491
        %v493 = vrot.slane %v481, %v492
        %v494 = vadd.f32 %v482, %v493
        %v495 = vadd.f32 %v483, %v493
        %v496 = vadd.f32 %v484, %v493
        %v497 = vadd.f32 %v485, %v493
        %v498 = vadd.f32 %v486, %v493
        %v499 = vadd.f32 %v487, %v493
        %v500 = vadd.f32 %v488, %v493
        %v501 = vadd.f32 %v489, %v493
        %vm502 = vcmask 523264
        %v503 = vsel %vm502, %v494, 0.0
        %504 = vadd.xlane.f32.xlu0 %v503
        %v505 = vpop.xlane.xlu0 %504
        %v506 = vsel %vm502, %v495, 0.0
        %507 = vadd.xlane.f32.xlu0 %v506
        %v508 = vpop.xlane.xlu0 %507
        %v509 = vsel %vm502, %v496, 0.0
        %510 = vadd.xlane.f32.xlu0 %v509
        %v511 = vpop.xlane.xlu0 %510
        %v512 = vsel %vm502, %v497, 0.0
        %513 = vadd.xlane.f32.xlu0 %v512
        %v514 = vpop.xlane.xlu0 %513
        %v515 = vsel %vm502, %v498, 0.0
        %516 = vadd.xlane.f32.xlu0 %v515
        %v517 = vpop.xlane.xlu0 %516
        %v518 = vsel %vm502, %v499, 0.0
        %519 = vadd.xlane.f32.xlu0 %v518
        %v520 = vpop.xlane.xlu0 %519
        %v521 = vsel %vm502, %v500, 0.0
        %522 = vadd.xlane.f32.xlu0 %v521
        %v523 = vpop.xlane.xlu0 %522
        %v524 = vsel %vm502, %v501, 0.0
        %525 = vadd.xlane.f32.xlu0 %v524
        %v526 = vpop.xlane.xlu0 %525
        %v527 = vrcp.pop 64.0
        %v528 = vmul.f32 %v505, %v527
        %v529 = vmul.f32 %v508, %v527
        %v530 = vmul.f32 %v511, %v527
        %v531 = vmul.f32 %v514, %v527
        %v532 = vmul.f32 %v517, %v527
        %v533 = vmul.f32 %v520, %v527
        %v534 = vmul.f32 %v523, %v527
        %v535 = vmul.f32 %v526, %v527
        %v536 = vsub.f32 %v494, %v528
        %v537 = vsub.f32 %v495, %v529
        %v538 = vsub.f32 %v496, %v530
        %v539 = vsub.f32 %v497, %v531
        %v540 = vsub.f32 %v498, %v532
        %v541 = vsub.f32 %v499, %v533
        %v542 = vsub.f32 %v500, %v534
        %v543 = vsub.f32 %v501, %v535
        %v544 = vmul.f32 %v536, %v536
        %v545 = vmul.f32 %v537, %v537
        %v546 = vmul.f32 %v538, %v538
        %v547 = vmul.f32 %v539, %v539
        %v548 = vmul.f32 %v540, %v540
        %v549 = vmul.f32 %v541, %v541
        %v550 = vmul.f32 %v542, %v542
        %v551 = vmul.f32 %v543, %v543
        %v552 = vsel %vm502, %v544, 0.0
        %553 = vadd.xlane.f32.xlu0 %v552
        %v554 = vpop.xlane.xlu0 %553
        %v555 = vsel %vm502, %v545, 0.0
        %556 = vadd.xlane.f32.xlu0 %v555
        %v557 = vpop.xlane.xlu0 %556
        %v558 = vsel %vm502, %v546, 0.0
        %559 = vadd.xlane.f32.xlu0 %v558
        %v560 = vpop.xlane.xlu0 %559
        %v561 = vsel %vm502, %v547, 0.0
        %562 = vadd.xlane.f32.xlu0 %v561
        %v563 = vpop.xlane.xlu0 %562
        %v564 = vsel %vm502, %v548, 0.0
        %565 = vadd.xlane.f32.xlu0 %v564
        %v566 = vpop.xlane.xlu0 %565
        %v567 = vsel %vm502, %v549, 0.0
        %568 = vadd.xlane.f32.xlu0 %v567
        %v569 = vpop.xlane.xlu0 %568
        %v570 = vsel %vm502, %v550, 0.0
        %571 = vadd.xlane.f32.xlu0 %v570
        %v572 = vpop.xlane.xlu0 %571
        %v573 = vsel %vm502, %v551, 0.0
        %574 = vadd.xlane.f32.xlu0 %v573
        %v575 = vpop.xlane.xlu0 %574
        %v576 = vmul.f32 %v554, %v527
        %v577 = vmul.f32 %v557, %v527
        %v578 = vmul.f32 %v560, %v527
        %v579 = vmul.f32 %v563, %v527
        %v580 = vmul.f32 %v566, %v527
        %v581 = vmul.f32 %v569, %v527
        %v582 = vmul.f32 %v572, %v527
        %v583 = vmul.f32 %v575, %v527
        %v584 = vadd.f32 %v576, 1e-05
        %v585 = vadd.f32 %v577, 1e-05
        %v586 = vadd.f32 %v578, 1e-05
        %v587 = vadd.f32 %v579, 1e-05
        %v588 = vadd.f32 %v580, 1e-05
        %v589 = vadd.f32 %v581, 1e-05
        %v590 = vadd.f32 %v582, 1e-05
        %v591 = vadd.f32 %v583, 1e-05
        %v592 = vrsqrt.pop %v584
        %v593 = vrsqrt.pop %v585
        %v594 = vrsqrt.pop %v586
        %v595 = vrsqrt.pop %v587
        %v596 = vrsqrt.pop %v588
        %v597 = vrsqrt.pop %v589
        %v598 = vrsqrt.pop %v590
        %v599 = vrsqrt.pop %v591
        %v600 = vmul.f32 %v536, %v592
        %v601 = vmul.f32 %v537, %v593
        %v602 = vmul.f32 %v538, %v594
        %v603 = vmul.f32 %v539, %v595
        %v604 = vmul.f32 %v540, %v596
        %v605 = vmul.f32 %v541, %v597
        %v606 = vmul.f32 %v542, %v598
        %v607 = vmul.f32 %v543, %v599
        %v608 = vlaneseq
        %v609 = vshrl.u32 %v608, 7
        %v610 = vsub.s32 1, %v609
        %v611 = vrot.slane %v481, %v610
        %v612 = vmul.f32 %v600, %v611
        %v613 = vmul.f32 %v601, %v611
        %v614 = vmul.f32 %v602, %v611
        %v615 = vmul.f32 %v603, %v611
        %v616 = vmul.f32 %v604, %v611
        %v617 = vmul.f32 %v605, %v611
        %v618 = vmul.f32 %v606, %v611
        %v619 = vmul.f32 %v607, %v611
        %v620 = vlaneseq
        %v621 = vshrl.u32 %v620, 7
        %v622 = vsub.s32 2, %v621
        %v623 = vrot.slane %v481, %v622
        %v624 = vadd.f32 %v612, %v623
        %v625 = vadd.f32 %v613, %v623
        %v626 = vadd.f32 %v614, %v623
        %v627 = vadd.f32 %v615, %v623
        %v628 = vadd.f32 %v616, %v623
        %v629 = vadd.f32 %v617, %v623
        %v630 = vadd.f32 %v618, %v623
        %v631 = vadd.f32 %v619, %v623
        %v632 = vmin.f32 %v624, 20.0
        %v633 = vmin.f32 %v625, 20.0
        %v634 = vmin.f32 %v626, 20.0
        %v635 = vmin.f32 %v627, 20.0
        %v636 = vmin.f32 %v628, 20.0
        %v637 = vmin.f32 %v629, 20.0
        %v638 = vmin.f32 %v630, 20.0
        %v639 = vmin.f32 %v631, 20.0
        %v640 = vmul.f32 %v632, 1.442695
        %v641 = vpow.pop %v640
        %v642 = vmul.f32 %v633, 1.442695
        %v643 = vpow.pop %v642
        %v644 = vmul.f32 %v634, 1.442695
        %v645 = vpow.pop %v644
        %v646 = vmul.f32 %v635, 1.442695
        %v647 = vpow.pop %v646
        %v648 = vmul.f32 %v636, 1.442695
        %v649 = vpow.pop %v648
        %v650 = vmul.f32 %v637, 1.442695
        %v651 = vpow.pop %v650
        %v652 = vmul.f32 %v638, 1.442695
        %v653 = vpow.pop %v652
        %v654 = vmul.f32 %v639, 1.442695
        %v655 = vpow.pop %v654
        %v656 = vadd.f32 %v641, 2.0
        %v657 = vadd.f32 %v643, 2.0
        %v658 = vadd.f32 %v645, 2.0
        %v659 = vadd.f32 %v647, 2.0
        %v660 = vadd.f32 %v649, 2.0
        %v661 = vadd.f32 %v651, 2.0
        %v662 = vadd.f32 %v653, 2.0
        %v663 = vadd.f32 %v655, 2.0
        %v664 = vmul.f32 %v641, %v656
        %v665 = vmul.f32 %v643, %v657
        %v666 = vmul.f32 %v645, %v658
        %v667 = vmul.f32 %v647, %v659
        %v668 = vmul.f32 %v649, %v660
        %v669 = vmul.f32 %v651, %v661
        %v670 = vmul.f32 %v653, %v662
        %v671 = vmul.f32 %v655, %v663
        %v672 = vadd.f32 %v664, 2.0
        %v673 = vadd.f32 %v665, 2.0
        %v674 = vadd.f32 %v666, 2.0
        %v675 = vadd.f32 %v667, 2.0
        %v676 = vadd.f32 %v668, 2.0
        %v677 = vadd.f32 %v669, 2.0
        %v678 = vadd.f32 %v670, 2.0
        %v679 = vadd.f32 %v671, 2.0
        %v680 = vrcp.pop %v672
        %v681 = vmul.f32 %v664, %v680
        %v682 = vrcp.pop %v673
        %v683 = vmul.f32 %v665, %v682
        %v684 = vrcp.pop %v674
        %v685 = vmul.f32 %v666, %v684
        %v686 = vrcp.pop %v675
        %v687 = vmul.f32 %v667, %v686
        %v688 = vrcp.pop %v676
        %v689 = vmul.f32 %v668, %v688
        %v690 = vrcp.pop %v677
        %v691 = vmul.f32 %v669, %v690
        %v692 = vrcp.pop %v678
        %v693 = vmul.f32 %v670, %v692
        %v694 = vrcp.pop %v679
        %v695 = vmul.f32 %v671, %v694
        %v696 = vmul.f32 %v624, %v681
        %v697 = vmul.f32 %v625, %v683
        %v698 = vmul.f32 %v626, %v685
        %v699 = vmul.f32 %v627, %v687
        %v700 = vmul.f32 %v628, %v689
        %v701 = vmul.f32 %v629, %v691
        %v702 = vmul.f32 %v630, %v693
        %v703 = vmul.f32 %v631, %v695
        %v704 = vpack.c.bf16 %v697, %v696
        %v705 = vpack.c.bf16 %v699, %v698
        %v706 = vpack.c.bf16 %v701, %v700
        %v707 = vpack.c.bf16 %v703, %v702
        %v708 = vld [vmem:[%s2] sm:$0xf]
        %v709 = vld [vmem:[%s2 + $0x4] sm:$0xf]
        %v710 = vld [vmem:[%s2 + $0x8] sm:$0xf]
        %v711 = vld [vmem:[%s2 + $0xc] sm:$0xf]
        %v712 = vld [vmem:[%s2 + $0x10] sm:$0xf]
        %v713 = vld [vmem:[%s2 + $0x14] sm:$0xf]
        %v714 = vld [vmem:[%s2 + $0x18] sm:$0xf]
        %v715 = vld [vmem:[%s2 + $0x1c] sm:$0xf]
        %v716 = vlaneseq
        %v717 = vshrl.u32 %v716, 7
        %v718 = vsub.s32 3, %v717
        %v719 = vrot.slane %v481, %v718
        %v728 = vunpack.c.l.b16 %v708
        %v729 = vunpack.c.l.b16 %v709
        %v730 = vunpack.c.l.b16 %v710
        %v731 = vunpack.c.l.b16 %v711
        %v732 = vunpack.c.l.b16 %v712
        %v733 = vunpack.c.l.b16 %v713
        %v734 = vunpack.c.l.b16 %v714
        %v735 = vunpack.c.l.b16 %v715
        %v736 = vpack.c.b16 %v729, %v728
        %v737 = vpack.c.b16 %v731, %v730
        %v738 = vpack.c.b16 %v733, %v732
        %v739 = vpack.c.b16 %v735, %v734
        %v745 = vsel %vm502, %v704, 0
        %v748 = vsel %vm502, %v705, 0
        %v751 = vsel %vm502, %v706, 0
        %v754 = vsel %vm502, %v707, 0
        %756 = vmatprep.subr.bf16.mxu0 0
        %757 = vmatpush1.bf16.msra.mxu0 %v736
        %758 = vmatprep.subr.bf16.mxu0 0
        %759 = vmatpush1.bf16.msra.mxu0 %v737
        %760 = vmatprep.subr.bf16.mxu0 0
        %761 = vmatpush1.bf16.msra.mxu0 %v738
        %762 = vmatprep.subr.bf16.mxu0 0
        %763 = vmatpush1.bf16.msra.mxu0 %v739
        %764 = vmatprep.subr.bf16.mxu0 0
        %765 = vmatpush1.bf16.msra.mxu0 0
        %766 = vmatprep.subr.bf16.mxu0 0
        %767 = vmatpush1.bf16.msra.mxu0 0
        %768 = vmatprep.subr.bf16.mxu0 0
        %769 = vmatpush1.bf16.msra.mxu0 0
        %770 = vmatprep.subr.bf16.mxu0 0
        %771 = vmatpush1.bf16.msra.mxu0 0
        %772 = vmatprep.subr.bf16.mxu0 0
        %773 = vmatpush1.bf16.msra.mxu0 0
        %774 = vmatprep.subr.bf16.mxu0 0
        %775 = vmatpush1.bf16.msra.mxu0 0
        %776 = vmatprep.subr.bf16.mxu0 0
        %777 = vmatpush1.bf16.msra.mxu0 0
        %778 = vmatprep.subr.bf16.mxu0 0
        %779 = vmatpush1.bf16.msra.mxu0 0
        %780 = vmatprep.subr.bf16.mxu0 0
        %781 = vmatpush1.bf16.msra.mxu0 0
        %782 = vmatprep.subr.bf16.mxu0 0
        %783 = vmatpush1.bf16.msra.mxu0 0
        %784 = vmatprep.subr.bf16.mxu0 0
        %785 = vmatpush1.bf16.msra.mxu0 0
        %786 = vmatprep.subr.bf16.mxu0 0
        %787 = vmatpush1.bf16.msra.mxu0 0
        %788 = vmatprep.mubr.bf16.mxu0 0
        %789 = vmatmul.mubr.bf16.gmra.mrb[0].mxu0 %v745
        %v790 = vpop.f32.mrb[0].mxu0
        %v791 = vadd.f32 %v719, %v790
        %v792 = vpop.f32.mrb[0].mxu0
        %v793 = vpop.f32.mrb[0].mxu0
        %v794 = vadd.f32 %v719, %v793
        %v795 = vpop.f32.mrb[0].mxu0
        %796 = vmatprep.mubr.bf16.mxu0 0
        %797 = vmatmul.mubr.bf16.gmra.mrb[0].mxu0 %v748
        %v798 = vpop.f32.mrb[0].mxu0
        %v799 = vadd.f32 %v719, %v798
        %v800 = vpop.f32.mrb[0].mxu0
        %v801 = vpop.f32.mrb[0].mxu0
        %v802 = vadd.f32 %v719, %v801
        %v803 = vpop.f32.mrb[0].mxu0
        %804 = vmatprep.mubr.bf16.mxu0 0
        %805 = vmatmul.mubr.bf16.gmra.mrb[0].mxu0 %v751
        %v806 = vpop.f32.mrb[0].mxu0
        %v807 = vadd.f32 %v719, %v806
        %v808 = vpop.f32.mrb[0].mxu0
        %v809 = vpop.f32.mrb[0].mxu0
        %v810 = vadd.f32 %v719, %v809
        %v811 = vpop.f32.mrb[0].mxu0
        %812 = vmatprep.mubr.bf16.mxu0 0
        %813 = vmatmul.mubr.bf16.gmra.mrb[0].mxu0 %v754
        %v814 = vpop.f32.mrb[0].mxu0
        %v815 = vadd.f32 %v719, %v814
        %v816 = vpop.f32.mrb[0].mxu0
        %v817 = vpop.f32.mrb[0].mxu0
        %v818 = vadd.f32 %v719, %v817
        %v819 = vpop.f32.mrb[0].mxu0
        %820 = vdwg.mxu0
        %v821 = vsel %vm502, %v791, 0.0
        %822 = vadd.xlane.f32.xlu0 %v821
        %v823 = vpop.xlane.xlu0 %822
        %v824 = vsel %vm502, %v794, 0.0
        %825 = vadd.xlane.f32.xlu0 %v824
        %v826 = vpop.xlane.xlu0 %825
        %v827 = vsel %vm502, %v799, 0.0
        %828 = vadd.xlane.f32.xlu0 %v827
        %v829 = vpop.xlane.xlu0 %828
        %v830 = vsel %vm502, %v802, 0.0
        %831 = vadd.xlane.f32.xlu0 %v830
        %v832 = vpop.xlane.xlu0 %831
        %v833 = vsel %vm502, %v807, 0.0
        %834 = vadd.xlane.f32.xlu0 %v833
        %v835 = vpop.xlane.xlu0 %834
        %v836 = vsel %vm502, %v810, 0.0
        %837 = vadd.xlane.f32.xlu0 %v836
        %v838 = vpop.xlane.xlu0 %837
        %v839 = vsel %vm502, %v815, 0.0
        %840 = vadd.xlane.f32.xlu0 %v839
        %v841 = vpop.xlane.xlu0 %840
        %v842 = vsel %vm502, %v818, 0.0
        %843 = vadd.xlane.f32.xlu0 %v842
        %v844 = vpop.xlane.xlu0 %843
        %v845 = vmul.f32 %v823, %v527
        %v846 = vmul.f32 %v826, %v527
        %v847 = vmul.f32 %v829, %v527
        %v848 = vmul.f32 %v832, %v527
        %v849 = vmul.f32 %v835, %v527
        %v850 = vmul.f32 %v838, %v527
        %v851 = vmul.f32 %v841, %v527
        %v852 = vmul.f32 %v844, %v527
        %v853 = vsub.f32 %v791, %v845
        %v854 = vsub.f32 %v794, %v846
        %v855 = vsub.f32 %v799, %v847
        %v856 = vsub.f32 %v802, %v848
        %v857 = vsub.f32 %v807, %v849
        %v858 = vsub.f32 %v810, %v850
        %v859 = vsub.f32 %v815, %v851
        %v860 = vsub.f32 %v818, %v852
        %v861 = vmul.f32 %v853, %v853
        %v862 = vmul.f32 %v854, %v854
        %v863 = vmul.f32 %v855, %v855
        %v864 = vmul.f32 %v856, %v856
        %v865 = vmul.f32 %v857, %v857
        %v866 = vmul.f32 %v858, %v858
        %v867 = vmul.f32 %v859, %v859
        %v868 = vmul.f32 %v860, %v860
        %v869 = vsel %vm502, %v861, 0.0
        %870 = vadd.xlane.f32.xlu0 %v869
        %v871 = vpop.xlane.xlu0 %870
        %v872 = vsel %vm502, %v862, 0.0
        %873 = vadd.xlane.f32.xlu0 %v872
        %v874 = vpop.xlane.xlu0 %873
        %v875 = vsel %vm502, %v863, 0.0
        %876 = vadd.xlane.f32.xlu0 %v875
        %v877 = vpop.xlane.xlu0 %876
        %v878 = vsel %vm502, %v864, 0.0
        %879 = vadd.xlane.f32.xlu0 %v878
        %v880 = vpop.xlane.xlu0 %879
        %v881 = vsel %vm502, %v865, 0.0
        %882 = vadd.xlane.f32.xlu0 %v881
        %v883 = vpop.xlane.xlu0 %882
        %v884 = vsel %vm502, %v866, 0.0
        %885 = vadd.xlane.f32.xlu0 %v884
        %v886 = vpop.xlane.xlu0 %885
        %v887 = vsel %vm502, %v867, 0.0
        %888 = vadd.xlane.f32.xlu0 %v887
        %v889 = vpop.xlane.xlu0 %888
        %v890 = vsel %vm502, %v868, 0.0
        %891 = vadd.xlane.f32.xlu0 %v890
        %v892 = vpop.xlane.xlu0 %891
        %v893 = vmul.f32 %v871, %v527
        %v894 = vmul.f32 %v874, %v527
        %v895 = vmul.f32 %v877, %v527
        %v896 = vmul.f32 %v880, %v527
        %v897 = vmul.f32 %v883, %v527
        %v898 = vmul.f32 %v886, %v527
        %v899 = vmul.f32 %v889, %v527
        %v900 = vmul.f32 %v892, %v527
        %v901 = vadd.f32 %v893, 1e-05
        %v902 = vadd.f32 %v894, 1e-05
        %v903 = vadd.f32 %v895, 1e-05
        %v904 = vadd.f32 %v896, 1e-05
        %v905 = vadd.f32 %v897, 1e-05
        %v906 = vadd.f32 %v898, 1e-05
        %v907 = vadd.f32 %v899, 1e-05
        %v908 = vadd.f32 %v900, 1e-05
        %v909 = vrsqrt.pop %v901
        %v910 = vrsqrt.pop %v902
        %v911 = vrsqrt.pop %v903
        %v912 = vrsqrt.pop %v904
        %v913 = vrsqrt.pop %v905
        %v914 = vrsqrt.pop %v906
        %v915 = vrsqrt.pop %v907
        %v916 = vrsqrt.pop %v908
        %v917 = vmul.f32 %v853, %v909
        %v918 = vmul.f32 %v854, %v910
        %v919 = vmul.f32 %v855, %v911
        %v920 = vmul.f32 %v856, %v912
        %v921 = vmul.f32 %v857, %v913
        %v922 = vmul.f32 %v858, %v914
        %v923 = vmul.f32 %v859, %v915
        %v924 = vmul.f32 %v860, %v916
        %v925 = vlaneseq
        %v926 = vshrl.u32 %v925, 7
        %v927 = vsub.s32 4, %v926
        %v928 = vrot.slane %v481, %v927
        %v929 = vmul.f32 %v917, %v928
        %v930 = vmul.f32 %v918, %v928
        %v931 = vmul.f32 %v919, %v928
        %v932 = vmul.f32 %v920, %v928
        %v933 = vmul.f32 %v921, %v928
        %v934 = vmul.f32 %v922, %v928
        %v935 = vmul.f32 %v923, %v928
        %v936 = vmul.f32 %v924, %v928
        %v937 = vlaneseq
        %v938 = vshrl.u32 %v937, 7
        %v939 = vsub.s32 5, %v938
        %v940 = vrot.slane %v481, %v939
        %v941 = vadd.f32 %v929, %v940
        %v942 = vadd.f32 %v930, %v940
        %v943 = vadd.f32 %v931, %v940
        %v944 = vadd.f32 %v932, %v940
        %v945 = vadd.f32 %v933, %v940
        %v946 = vadd.f32 %v934, %v940
        %v947 = vadd.f32 %v935, %v940
        %v948 = vadd.f32 %v936, %v940
        %v949 = vmin.f32 %v941, 20.0
        %v950 = vmin.f32 %v942, 20.0
        %v951 = vmin.f32 %v943, 20.0
        %v952 = vmin.f32 %v944, 20.0
        %v953 = vmin.f32 %v945, 20.0
        %v954 = vmin.f32 %v946, 20.0
        %v955 = vmin.f32 %v947, 20.0
        %v956 = vmin.f32 %v948, 20.0
        %v957 = vmul.f32 %v949, 1.442695
        %v958 = vpow.pop %v957
        %v959 = vmul.f32 %v950, 1.442695
        %v960 = vpow.pop %v959
        %v961 = vmul.f32 %v951, 1.442695
        %v962 = vpow.pop %v961
        %v963 = vmul.f32 %v952, 1.442695
        %v964 = vpow.pop %v963
        %v965 = vmul.f32 %v953, 1.442695
        %v966 = vpow.pop %v965
        %v967 = vmul.f32 %v954, 1.442695
        %v968 = vpow.pop %v967
        %v969 = vmul.f32 %v955, 1.442695
        %v970 = vpow.pop %v969
        %v971 = vmul.f32 %v956, 1.442695
        %v972 = vpow.pop %v971
        %v973 = vadd.f32 %v958, 2.0
        %v974 = vadd.f32 %v960, 2.0
        %v975 = vadd.f32 %v962, 2.0
        %v976 = vadd.f32 %v964, 2.0
        %v977 = vadd.f32 %v966, 2.0
        %v978 = vadd.f32 %v968, 2.0
        %v979 = vadd.f32 %v970, 2.0
        %v980 = vadd.f32 %v972, 2.0
        %v981 = vmul.f32 %v958, %v973
        %v982 = vmul.f32 %v960, %v974
        %v983 = vmul.f32 %v962, %v975
        %v984 = vmul.f32 %v964, %v976
        %v985 = vmul.f32 %v966, %v977
        %v986 = vmul.f32 %v968, %v978
        %v987 = vmul.f32 %v970, %v979
        %v988 = vmul.f32 %v972, %v980
        %v989 = vadd.f32 %v981, 2.0
        %v990 = vadd.f32 %v982, 2.0
        %v991 = vadd.f32 %v983, 2.0
        %v992 = vadd.f32 %v984, 2.0
        %v993 = vadd.f32 %v985, 2.0
        %v994 = vadd.f32 %v986, 2.0
        %v995 = vadd.f32 %v987, 2.0
        %v996 = vadd.f32 %v988, 2.0
        %v997 = vrcp.pop %v989
        %v998 = vmul.f32 %v981, %v997
        %v999 = vrcp.pop %v990
        %v1000 = vmul.f32 %v982, %v999
        %v1001 = vrcp.pop %v991
        %v1002 = vmul.f32 %v983, %v1001
        %v1003 = vrcp.pop %v992
        %v1004 = vmul.f32 %v984, %v1003
        %v1005 = vrcp.pop %v993
        %v1006 = vmul.f32 %v985, %v1005
        %v1007 = vrcp.pop %v994
        %v1008 = vmul.f32 %v986, %v1007
        %v1009 = vrcp.pop %v995
        %v1010 = vmul.f32 %v987, %v1009
        %v1011 = vrcp.pop %v996
        %v1012 = vmul.f32 %v988, %v1011
        %v1013 = vmul.f32 %v941, %v998
        %v1014 = vmul.f32 %v942, %v1000
        %v1015 = vmul.f32 %v943, %v1002
        %v1016 = vmul.f32 %v944, %v1004
        %v1017 = vmul.f32 %v945, %v1006
        %v1018 = vmul.f32 %v946, %v1008
        %v1019 = vmul.f32 %v947, %v1010
        %v1020 = vmul.f32 %v948, %v1012
        %v1021 = vpack.c.bf16 %v1014, %v1013
        %v1022 = vpack.c.bf16 %v1016, %v1015
        %v1023 = vpack.c.bf16 %v1018, %v1017
        %v1024 = vpack.c.bf16 %v1020, %v1019
        %v1025 = vld [vmem:[%s3] sm:$0xf]
        %v1026 = vld [vmem:[%s3 + $0x4] sm:$0xf]
        %v1027 = vld [vmem:[%s3 + $0x8] sm:$0xf]
        %v1028 = vld [vmem:[%s3 + $0xc] sm:$0xf]
        %v1029 = vld [vmem:[%s3 + $0x10] sm:$0xf]
        %v1030 = vld [vmem:[%s3 + $0x14] sm:$0xf]
        %v1031 = vld [vmem:[%s3 + $0x18] sm:$0xf]
        %v1032 = vld [vmem:[%s3 + $0x1c] sm:$0xf]
        %s1033 = scalar_lea.vmem %s4, 8
        %v1034 = vld [vmem:[%s1033] sm:$0x3f]
        %s1035 = scalar_lea.vmem [#allocation2], 8
        %v1036 = vld [vmem:[%s1035] sm:$0xff]
        %v1037 = vld [vmem:[%s1035 + $0x18] sm:$0xff]
        %v1038 = vld [vmem:[%s1035 + $0x30] sm:$0xff]
        %v1039 = vld [vmem:[%s1035 + $0x48] sm:$0xff]
        %v1040 = vld [vmem:[%s1035 + $0x60] sm:$0xff]
        %v1041 = vld [vmem:[%s1035 + $0x78] sm:$0xff]
        %v1042 = vld [vmem:[%s1035 + $0x90] sm:$0xff]
        %v1043 = vld [vmem:[%s1035 + $0xa8] sm:$0xff]
        %v1044 = vlaneseq
        %v1045 = vshrl.u32 %v1044, 7
        %v1046 = vsub.s32 0, %v1045
        %v1047 = vrot.slane %v1034, %v1046
        %v1048 = vadd.f32 %v1036, %v1047
        %v1049 = vadd.f32 %v1037, %v1047
        %v1050 = vadd.f32 %v1038, %v1047
        %v1051 = vadd.f32 %v1039, %v1047
        %v1052 = vadd.f32 %v1040, %v1047
        %v1053 = vadd.f32 %v1041, %v1047
        %v1054 = vadd.f32 %v1042, %v1047
        %v1055 = vadd.f32 %v1043, %v1047
        %v1056 = vsel %vm502, %v1048, 0.0
        %1057 = vadd.xlane.f32.xlu0 %v1056
        %v1058 = vpop.xlane.xlu0 %1057
        %v1059 = vsel %vm502, %v1049, 0.0
        %1060 = vadd.xlane.f32.xlu0 %v1059
        %v1061 = vpop.xlane.xlu0 %1060
        %v1062 = vsel %vm502, %v1050, 0.0
        %1063 = vadd.xlane.f32.xlu0 %v1062
        %v1064 = vpop.xlane.xlu0 %1063
        %v1065 = vsel %vm502, %v1051, 0.0
        %1066 = vadd.xlane.f32.xlu0 %v1065
        %v1067 = vpop.xlane.xlu0 %1066
        %v1068 = vsel %vm502, %v1052, 0.0
        %1069 = vadd.xlane.f32.xlu0 %v1068
        %v1070 = vpop.xlane.xlu0 %1069
        %v1071 = vsel %vm502, %v1053, 0.0
        %1072 = vadd.xlane.f32.xlu0 %v1071
        %v1073 = vpop.xlane.xlu0 %1072
        %v1074 = vsel %vm502, %v1054, 0.0
        %1075 = vadd.xlane.f32.xlu0 %v1074
        %v1076 = vpop.xlane.xlu0 %1075
        %v1077 = vsel %vm502, %v1055, 0.0
        %1078 = vadd.xlane.f32.xlu0 %v1077
        %v1079 = vpop.xlane.xlu0 %1078
        %v1080 = vmul.f32 %v1058, %v527
        %v1081 = vmul.f32 %v1061, %v527
        %v1082 = vmul.f32 %v1064, %v527
        %v1083 = vmul.f32 %v1067, %v527
        %v1084 = vmul.f32 %v1070, %v527
        %v1085 = vmul.f32 %v1073, %v527
        %v1086 = vmul.f32 %v1076, %v527
        %v1087 = vmul.f32 %v1079, %v527
        %v1088 = vsub.f32 %v1048, %v1080
        %v1089 = vsub.f32 %v1049, %v1081
        %v1090 = vsub.f32 %v1050, %v1082
        %v1091 = vsub.f32 %v1051, %v1083
        %v1092 = vsub.f32 %v1052, %v1084
        %v1093 = vsub.f32 %v1053, %v1085
        %v1094 = vsub.f32 %v1054, %v1086
        %v1095 = vsub.f32 %v1055, %v1087
        %v1096 = vmul.f32 %v1088, %v1088
        %v1097 = vmul.f32 %v1089, %v1089
        %v1098 = vmul.f32 %v1090, %v1090
        %v1099 = vmul.f32 %v1091, %v1091
        %v1100 = vmul.f32 %v1092, %v1092
        %v1101 = vmul.f32 %v1093, %v1093
        %v1102 = vmul.f32 %v1094, %v1094
        %v1103 = vmul.f32 %v1095, %v1095
        %v1104 = vsel %vm502, %v1096, 0.0
        %1105 = vadd.xlane.f32.xlu0 %v1104
        %v1106 = vpop.xlane.xlu0 %1105
        %v1107 = vsel %vm502, %v1097, 0.0
        %1108 = vadd.xlane.f32.xlu0 %v1107
        %v1109 = vpop.xlane.xlu0 %1108
        %v1110 = vsel %vm502, %v1098, 0.0
        %1111 = vadd.xlane.f32.xlu0 %v1110
        %v1112 = vpop.xlane.xlu0 %1111
        %v1113 = vsel %vm502, %v1099, 0.0
        %1114 = vadd.xlane.f32.xlu0 %v1113
        %v1115 = vpop.xlane.xlu0 %1114
        %v1116 = vsel %vm502, %v1100, 0.0
        %1117 = vadd.xlane.f32.xlu0 %v1116
        %v1118 = vpop.xlane.xlu0 %1117
        %v1119 = vsel %vm502, %v1101, 0.0
        %1120 = vadd.xlane.f32.xlu0 %v1119
        %v1121 = vpop.xlane.xlu0 %1120
        %v1122 = vsel %vm502, %v1102, 0.0
        %1123 = vadd.xlane.f32.xlu0 %v1122
        %v1124 = vpop.xlane.xlu0 %1123
        %v1125 = vsel %vm502, %v1103, 0.0
        %1126 = vadd.xlane.f32.xlu0 %v1125
        %v1127 = vpop.xlane.xlu0 %1126
        %v1128 = vmul.f32 %v1106, %v527
        %v1129 = vmul.f32 %v1109, %v527
        %v1130 = vmul.f32 %v1112, %v527
        %v1131 = vmul.f32 %v1115, %v527
        %v1132 = vmul.f32 %v1118, %v527
        %v1133 = vmul.f32 %v1121, %v527
        %v1134 = vmul.f32 %v1124, %v527
        %v1135 = vmul.f32 %v1127, %v527
        %v1136 = vadd.f32 %v1128, 1e-05
        %v1137 = vadd.f32 %v1129, 1e-05
        %v1138 = vadd.f32 %v1130, 1e-05
        %v1139 = vadd.f32 %v1131, 1e-05
        %v1140 = vadd.f32 %v1132, 1e-05
        %v1141 = vadd.f32 %v1133, 1e-05
        %v1142 = vadd.f32 %v1134, 1e-05
        %v1143 = vadd.f32 %v1135, 1e-05
        %v1144 = vrsqrt.pop %v1136
        %v1145 = vrsqrt.pop %v1137
        %v1146 = vrsqrt.pop %v1138
        %v1147 = vrsqrt.pop %v1139
        %v1148 = vrsqrt.pop %v1140
        %v1149 = vrsqrt.pop %v1141
        %v1150 = vrsqrt.pop %v1142
        %v1151 = vrsqrt.pop %v1143
        %v1152 = vmul.f32 %v1088, %v1144
        %v1153 = vmul.f32 %v1089, %v1145
        %v1154 = vmul.f32 %v1090, %v1146
        %v1155 = vmul.f32 %v1091, %v1147
        %v1156 = vmul.f32 %v1092, %v1148
        %v1157 = vmul.f32 %v1093, %v1149
        %v1158 = vmul.f32 %v1094, %v1150
        %v1159 = vmul.f32 %v1095, %v1151
        %v1160 = vlaneseq
        %v1161 = vshrl.u32 %v1160, 7
        %v1162 = vsub.s32 1, %v1161
        %v1163 = vrot.slane %v1034, %v1162
        %v1164 = vmul.f32 %v1152, %v1163
        %v1165 = vmul.f32 %v1153, %v1163
        %v1166 = vmul.f32 %v1154, %v1163
        %v1167 = vmul.f32 %v1155, %v1163
        %v1168 = vmul.f32 %v1156, %v1163
        %v1169 = vmul.f32 %v1157, %v1163
        %v1170 = vmul.f32 %v1158, %v1163
        %v1171 = vmul.f32 %v1159, %v1163
        %v1172 = vlaneseq
        %v1173 = vshrl.u32 %v1172, 7
        %v1174 = vsub.s32 2, %v1173
        %v1175 = vrot.slane %v1034, %v1174
        %v1176 = vadd.f32 %v1164, %v1175
        %v1177 = vadd.f32 %v1165, %v1175
        %v1178 = vadd.f32 %v1166, %v1175
        %v1179 = vadd.f32 %v1167, %v1175
        %v1180 = vadd.f32 %v1168, %v1175
        %v1181 = vadd.f32 %v1169, %v1175
        %v1182 = vadd.f32 %v1170, %v1175
        %v1183 = vadd.f32 %v1171, %v1175
        %v1184 = vmin.f32 %v1176, 20.0
        %v1185 = vmin.f32 %v1177, 20.0
        %v1186 = vmin.f32 %v1178, 20.0
        %v1187 = vmin.f32 %v1179, 20.0
        %v1188 = vmin.f32 %v1180, 20.0
        %v1189 = vmin.f32 %v1181, 20.0
        %v1190 = vmin.f32 %v1182, 20.0
        %v1191 = vmin.f32 %v1183, 20.0
        %v1192 = vmul.f32 %v1184, 1.442695
        %v1193 = vpow.pop %v1192
        %v1194 = vmul.f32 %v1185, 1.442695
        %v1195 = vpow.pop %v1194
        %v1196 = vmul.f32 %v1186, 1.442695
        %v1197 = vpow.pop %v1196
        %v1198 = vmul.f32 %v1187, 1.442695
        %v1199 = vpow.pop %v1198
        %v1200 = vmul.f32 %v1188, 1.442695
        %v1201 = vpow.pop %v1200
        %v1202 = vmul.f32 %v1189, 1.442695
        %v1203 = vpow.pop %v1202
        %v1204 = vmul.f32 %v1190, 1.442695
        %v1205 = vpow.pop %v1204
        %v1206 = vmul.f32 %v1191, 1.442695
        %v1207 = vpow.pop %v1206
        %v1208 = vadd.f32 %v1193, 2.0
        %v1209 = vadd.f32 %v1195, 2.0
        %v1210 = vadd.f32 %v1197, 2.0
        %v1211 = vadd.f32 %v1199, 2.0
        %v1212 = vadd.f32 %v1201, 2.0
        %v1213 = vadd.f32 %v1203, 2.0
        %v1214 = vadd.f32 %v1205, 2.0
        %v1215 = vadd.f32 %v1207, 2.0
        %v1216 = vmul.f32 %v1193, %v1208
        %v1217 = vmul.f32 %v1195, %v1209
        %v1218 = vmul.f32 %v1197, %v1210
        %v1219 = vmul.f32 %v1199, %v1211
        %v1220 = vmul.f32 %v1201, %v1212
        %v1221 = vmul.f32 %v1203, %v1213
        %v1222 = vmul.f32 %v1205, %v1214
        %v1223 = vmul.f32 %v1207, %v1215
        %v1224 = vadd.f32 %v1216, 2.0
        %v1225 = vadd.f32 %v1217, 2.0
        %v1226 = vadd.f32 %v1218, 2.0
        %v1227 = vadd.f32 %v1219, 2.0
        %v1228 = vadd.f32 %v1220, 2.0
        %v1229 = vadd.f32 %v1221, 2.0
        %v1230 = vadd.f32 %v1222, 2.0
        %v1231 = vadd.f32 %v1223, 2.0
        %v1232 = vrcp.pop %v1224
        %v1233 = vmul.f32 %v1216, %v1232
        %v1234 = vrcp.pop %v1225
        %v1235 = vmul.f32 %v1217, %v1234
        %v1236 = vrcp.pop %v1226
        %v1237 = vmul.f32 %v1218, %v1236
        %v1238 = vrcp.pop %v1227
        %v1239 = vmul.f32 %v1219, %v1238
        %v1240 = vrcp.pop %v1228
        %v1241 = vmul.f32 %v1220, %v1240
        %v1242 = vrcp.pop %v1229
        %v1243 = vmul.f32 %v1221, %v1242
        %v1244 = vrcp.pop %v1230
        %v1245 = vmul.f32 %v1222, %v1244
        %v1246 = vrcp.pop %v1231
        %v1247 = vmul.f32 %v1223, %v1246
        %v1248 = vmul.f32 %v1176, %v1233
        %v1249 = vmul.f32 %v1177, %v1235
        %v1250 = vmul.f32 %v1178, %v1237
        %v1251 = vmul.f32 %v1179, %v1239
        %v1252 = vmul.f32 %v1180, %v1241
        %v1253 = vmul.f32 %v1181, %v1243
        %v1254 = vmul.f32 %v1182, %v1245
        %v1255 = vmul.f32 %v1183, %v1247
        %v1256 = vpack.c.bf16 %v1249, %v1248
        %v1257 = vpack.c.bf16 %v1251, %v1250
        %v1258 = vpack.c.bf16 %v1253, %v1252
        %v1259 = vpack.c.bf16 %v1255, %v1254
        %s1260 = scalar_lea.vmem %s2, 32
        %v1261 = vld [vmem:[%s1260] sm:$0xf]
        %v1262 = vld [vmem:[%s1260 + $0x4] sm:$0xf]
        %v1263 = vld [vmem:[%s1260 + $0x8] sm:$0xf]
        %v1264 = vld [vmem:[%s1260 + $0xc] sm:$0xf]
        %v1265 = vld [vmem:[%s1260 + $0x10] sm:$0xf]
        %v1266 = vld [vmem:[%s1260 + $0x14] sm:$0xf]
        %v1267 = vld [vmem:[%s1260 + $0x18] sm:$0xf]
        %v1268 = vld [vmem:[%s1260 + $0x1c] sm:$0xf]
        %v1269 = vlaneseq
        %v1270 = vshrl.u32 %v1269, 7
        %v1271 = vsub.s32 3, %v1270
        %v1272 = vrot.slane %v1034, %v1271
        %v1281 = vunpack.c.l.b16 %v1261
        %v1282 = vunpack.c.l.b16 %v1262
        %v1283 = vunpack.c.l.b16 %v1263
        %v1284 = vunpack.c.l.b16 %v1264
        %v1285 = vunpack.c.l.b16 %v1265
        %v1286 = vunpack.c.l.b16 %v1266
        %v1287 = vunpack.c.l.b16 %v1267
        %v1288 = vunpack.c.l.b16 %v1268
        %v1289 = vpack.c.b16 %v1282, %v1281
        %v1290 = vpack.c.b16 %v1284, %v1283
        %v1291 = vpack.c.b16 %v1286, %v1285
        %v1292 = vpack.c.b16 %v1288, %v1287
        %v1298 = vsel %vm502, %v1256, 0
        %v1301 = vsel %vm502, %v1257, 0
        %v1304 = vsel %vm502, %v1258, 0
        %v1307 = vsel %vm502, %v1259, 0
        %1309 = vmatprep.subr.bf16.mxu0 0
        %1310 = vmatpush1.bf16.msra.mxu0 %v1289
        %1311 = vmatprep.subr.bf16.mxu0 0
        %1312 = vmatpush1.bf16.msra.mxu0 %v1290
        %1313 = vmatprep.subr.bf16.mxu0 0
        %1314 = vmatpush1.bf16.msra.mxu0 %v1291
        %1315 = vmatprep.subr.bf16.mxu0 0
        %1316 = vmatpush1.bf16.msra.mxu0 %v1292
        %1317 = vmatprep.subr.bf16.mxu0 0
        %1318 = vmatpush1.bf16.msra.mxu0 0
        %1319 = vmatprep.subr.bf16.mxu0 0
        %1320 = vmatpush1.bf16.msra.mxu0 0
        %1321 = vmatprep.subr.bf16.mxu0 0
        %1322 = vmatpush1.bf16.msra.mxu0 0
        %1323 = vmatprep.subr.bf16.mxu0 0
        %1324 = vmatpush1.bf16.msra.mxu0 0
        %1325 = vmatprep.subr.bf16.mxu0 0
        %1326 = vmatpush1.bf16.msra.mxu0 0
        %1327 = vmatprep.subr.bf16.mxu0 0
        %1328 = vmatpush1.bf16.msra.mxu0 0
        %1329 = vmatprep.subr.bf16.mxu0 0
        %1330 = vmatpush1.bf16.msra.mxu0 0
        %1331 = vmatprep.subr.bf16.mxu0 0
        %1332 = vmatpush1.bf16.msra.mxu0 0
        %1333 = vmatprep.subr.bf16.mxu0 0
        %1334 = vmatpush1.bf16.msra.mxu0 0
        %1335 = vmatprep.subr.bf16.mxu0 0
        %1336 = vmatpush1.bf16.msra.mxu0 0
        %1337 = vmatprep.subr.bf16.mxu0 0
        %1338 = vmatpush1.bf16.msra.mxu0 0
        %1339 = vmatprep.subr.bf16.mxu0 0
        %1340 = vmatpush1.bf16.msra.mxu0 0
        %1341 = vmatprep.mubr.bf16.mxu0 0
        %1342 = vmatmul.mubr.bf16.gmra.mrb[0].mxu0 %v1298
        %v1343 = vpop.f32.mrb[0].mxu0
        %v1344 = vadd.f32 %v1272, %v1343
        %v1345 = vpop.f32.mrb[0].mxu0
        %v1346 = vpop.f32.mrb[0].mxu0
        %v1347 = vadd.f32 %v1272, %v1346
        %v1348 = vpop.f32.mrb[0].mxu0
        %1349 = vmatprep.mubr.bf16.mxu0 0
        %1350 = vmatmul.mubr.bf16.gmra.mrb[0].mxu0 %v1301
        %v1351 = vpop.f32.mrb[0].mxu0
        %v1352 = vadd.f32 %v1272, %v1351
        %v1353 = vpop.f32.mrb[0].mxu0
        %v1354 = vpop.f32.mrb[0].mxu0
        %v1355 = vadd.f32 %v1272, %v1354
        %v1356 = vpop.f32.mrb[0].mxu0
        %1357 = vmatprep.mubr.bf16.mxu0 0
        %1358 = vmatmul.mubr.bf16.gmra.mrb[0].mxu0 %v1304
        %v1359 = vpop.f32.mrb[0].mxu0
        %v1360 = vadd.f32 %v1272, %v1359
        %v1361 = vpop.f32.mrb[0].mxu0
        %v1362 = vpop.f32.mrb[0].mxu0
        %v1363 = vadd.f32 %v1272, %v1362
        %v1364 = vpop.f32.mrb[0].mxu0
        %1365 = vmatprep.mubr.bf16.mxu0 0
        %1366 = vmatmul.mubr.bf16.gmra.mrb[0].mxu0 %v1307
        %v1367 = vpop.f32.mrb[0].mxu0
        %v1368 = vadd.f32 %v1272, %v1367
        %v1369 = vpop.f32.mrb[0].mxu0
        %v1370 = vpop.f32.mrb[0].mxu0
        %v1371 = vadd.f32 %v1272, %v1370
        %v1372 = vpop.f32.mrb[0].mxu0
        %1373 = vdwg.mxu0
        %v1374 = vsel %vm502, %v1344, 0.0
        %1375 = vadd.xlane.f32.xlu0 %v1374
        %v1376 = vpop.xlane.xlu0 %1375
        %v1377 = vsel %vm502, %v1347, 0.0
        %1378 = vadd.xlane.f32.xlu0 %v1377
        %v1379 = vpop.xlane.xlu0 %1378
        %v1380 = vsel %vm502, %v1352, 0.0
        %1381 = vadd.xlane.f32.xlu0 %v1380
        %v1382 = vpop.xlane.xlu0 %1381
        %v1383 = vsel %vm502, %v1355, 0.0
        %1384 = vadd.xlane.f32.xlu0 %v1383
        %v1385 = vpop.xlane.xlu0 %1384
        %v1386 = vsel %vm502, %v1360, 0.0
        %1387 = vadd.xlane.f32.xlu0 %v1386
        %v1388 = vpop.xlane.xlu0 %1387
        %v1389 = vsel %vm502, %v1363, 0.0
        %1390 = vadd.xlane.f32.xlu0 %v1389
        %v1391 = vpop.xlane.xlu0 %1390
        %v1392 = vsel %vm502, %v1368, 0.0
        %1393 = vadd.xlane.f32.xlu0 %v1392
        %v1394 = vpop.xlane.xlu0 %1393
        %v1395 = vsel %vm502, %v1371, 0.0
        %1396 = vadd.xlane.f32.xlu0 %v1395
        %v1397 = vpop.xlane.xlu0 %1396
        %v1398 = vmul.f32 %v1376, %v527
        %v1399 = vmul.f32 %v1379, %v527
        %v1400 = vmul.f32 %v1382, %v527
        %v1401 = vmul.f32 %v1385, %v527
        %v1402 = vmul.f32 %v1388, %v527
        %v1403 = vmul.f32 %v1391, %v527
        %v1404 = vmul.f32 %v1394, %v527
        %v1405 = vmul.f32 %v1397, %v527
        %v1406 = vsub.f32 %v1344, %v1398
        %v1407 = vsub.f32 %v1347, %v1399
        %v1408 = vsub.f32 %v1352, %v1400
        %v1409 = vsub.f32 %v1355, %v1401
        %v1410 = vsub.f32 %v1360, %v1402
        %v1411 = vsub.f32 %v1363, %v1403
        %v1412 = vsub.f32 %v1368, %v1404
        %v1413 = vsub.f32 %v1371, %v1405
        %v1414 = vmul.f32 %v1406, %v1406
        %v1415 = vmul.f32 %v1407, %v1407
        %v1416 = vmul.f32 %v1408, %v1408
        %v1417 = vmul.f32 %v1409, %v1409
        %v1418 = vmul.f32 %v1410, %v1410
        %v1419 = vmul.f32 %v1411, %v1411
        %v1420 = vmul.f32 %v1412, %v1412
        %v1421 = vmul.f32 %v1413, %v1413
        %v1422 = vsel %vm502, %v1414, 0.0
        %1423 = vadd.xlane.f32.xlu0 %v1422
        %v1424 = vpop.xlane.xlu0 %1423
        %v1425 = vsel %vm502, %v1415, 0.0
        %1426 = vadd.xlane.f32.xlu0 %v1425
        %v1427 = vpop.xlane.xlu0 %1426
        %v1428 = vsel %vm502, %v1416, 0.0
        %1429 = vadd.xlane.f32.xlu0 %v1428
        %v1430 = vpop.xlane.xlu0 %1429
        %v1431 = vsel %vm502, %v1417, 0.0
        %1432 = vadd.xlane.f32.xlu0 %v1431
        %v1433 = vpop.xlane.xlu0 %1432
        %v1434 = vsel %vm502, %v1418, 0.0
        %1435 = vadd.xlane.f32.xlu0 %v1434
        %v1436 = vpop.xlane.xlu0 %1435
        %v1437 = vsel %vm502, %v1419, 0.0
        %1438 = vadd.xlane.f32.xlu0 %v1437
        %v1439 = vpop.xlane.xlu0 %1438
        %v1440 = vsel %vm502, %v1420, 0.0
        %1441 = vadd.xlane.f32.xlu0 %v1440
        %v1442 = vpop.xlane.xlu0 %1441
        %v1443 = vsel %vm502, %v1421, 0.0
        %1444 = vadd.xlane.f32.xlu0 %v1443
        %v1445 = vpop.xlane.xlu0 %1444
        %v1446 = vmul.f32 %v1424, %v527
        %v1447 = vmul.f32 %v1427, %v527
        %v1448 = vmul.f32 %v1430, %v527
        %v1449 = vmul.f32 %v1433, %v527
        %v1450 = vmul.f32 %v1436, %v527
        %v1451 = vmul.f32 %v1439, %v527
        %v1452 = vmul.f32 %v1442, %v527
        %v1453 = vmul.f32 %v1445, %v527
        %v1454 = vadd.f32 %v1446, 1e-05
        %v1455 = vadd.f32 %v1447, 1e-05
        %v1456 = vadd.f32 %v1448, 1e-05
        %v1457 = vadd.f32 %v1449, 1e-05
        %v1458 = vadd.f32 %v1450, 1e-05
        %v1459 = vadd.f32 %v1451, 1e-05
        %v1460 = vadd.f32 %v1452, 1e-05
        %v1461 = vadd.f32 %v1453, 1e-05
        %v1462 = vrsqrt.pop %v1454
        %v1463 = vrsqrt.pop %v1455
        %v1464 = vrsqrt.pop %v1456
        %v1465 = vrsqrt.pop %v1457
        %v1466 = vrsqrt.pop %v1458
        %v1467 = vrsqrt.pop %v1459
        %v1468 = vrsqrt.pop %v1460
        %v1469 = vrsqrt.pop %v1461
        %v1470 = vmul.f32 %v1406, %v1462
        %v1471 = vmul.f32 %v1407, %v1463
        %v1472 = vmul.f32 %v1408, %v1464
        %v1473 = vmul.f32 %v1409, %v1465
        %v1474 = vmul.f32 %v1410, %v1466
        %v1475 = vmul.f32 %v1411, %v1467
        %v1476 = vmul.f32 %v1412, %v1468
        %v1477 = vmul.f32 %v1413, %v1469
        %v1478 = vlaneseq
        %v1479 = vshrl.u32 %v1478, 7
        %v1480 = vsub.s32 4, %v1479
        %v1481 = vrot.slane %v1034, %v1480
        %v1482 = vmul.f32 %v1470, %v1481
        %v1483 = vmul.f32 %v1471, %v1481
        %v1484 = vmul.f32 %v1472, %v1481
        %v1485 = vmul.f32 %v1473, %v1481
        %v1486 = vmul.f32 %v1474, %v1481
        %v1487 = vmul.f32 %v1475, %v1481
        %v1488 = vmul.f32 %v1476, %v1481
        %v1489 = vmul.f32 %v1477, %v1481
        %v1490 = vlaneseq
        %v1491 = vshrl.u32 %v1490, 7
        %v1492 = vsub.s32 5, %v1491
        %v1493 = vrot.slane %v1034, %v1492
        %v1494 = vadd.f32 %v1482, %v1493
        %v1495 = vadd.f32 %v1483, %v1493
        %v1496 = vadd.f32 %v1484, %v1493
        %v1497 = vadd.f32 %v1485, %v1493
        %v1498 = vadd.f32 %v1486, %v1493
        %v1499 = vadd.f32 %v1487, %v1493
        %v1500 = vadd.f32 %v1488, %v1493
        %v1501 = vadd.f32 %v1489, %v1493
        %v1502 = vmin.f32 %v1494, 20.0
        %v1503 = vmin.f32 %v1495, 20.0
        %v1504 = vmin.f32 %v1496, 20.0
        %v1505 = vmin.f32 %v1497, 20.0
        %v1506 = vmin.f32 %v1498, 20.0
        %v1507 = vmin.f32 %v1499, 20.0
        %v1508 = vmin.f32 %v1500, 20.0
        %v1509 = vmin.f32 %v1501, 20.0
        %v1510 = vmul.f32 %v1502, 1.442695
        %v1511 = vpow.pop %v1510
        %v1512 = vmul.f32 %v1503, 1.442695
        %v1513 = vpow.pop %v1512
        %v1514 = vmul.f32 %v1504, 1.442695
        %v1515 = vpow.pop %v1514
        %v1516 = vmul.f32 %v1505, 1.442695
        %v1517 = vpow.pop %v1516
        %v1518 = vmul.f32 %v1506, 1.442695
        %v1519 = vpow.pop %v1518
        %v1520 = vmul.f32 %v1507, 1.442695
        %v1521 = vpow.pop %v1520
        %v1522 = vmul.f32 %v1508, 1.442695
        %v1523 = vpow.pop %v1522
        %v1524 = vmul.f32 %v1509, 1.442695
        %v1525 = vpow.pop %v1524
        %v1526 = vadd.f32 %v1511, 2.0
        %v1527 = vadd.f32 %v1513, 2.0
        %v1528 = vadd.f32 %v1515, 2.0
        %v1529 = vadd.f32 %v1517, 2.0
        %v1530 = vadd.f32 %v1519, 2.0
        %v1531 = vadd.f32 %v1521, 2.0
        %v1532 = vadd.f32 %v1523, 2.0
        %v1533 = vadd.f32 %v1525, 2.0
        %v1534 = vmul.f32 %v1511, %v1526
        %v1535 = vmul.f32 %v1513, %v1527
        %v1536 = vmul.f32 %v1515, %v1528
        %v1537 = vmul.f32 %v1517, %v1529
        %v1538 = vmul.f32 %v1519, %v1530
        %v1539 = vmul.f32 %v1521, %v1531
        %v1540 = vmul.f32 %v1523, %v1532
        %v1541 = vmul.f32 %v1525, %v1533
        %v1542 = vadd.f32 %v1534, 2.0
        %v1543 = vadd.f32 %v1535, 2.0
        %v1544 = vadd.f32 %v1536, 2.0
        %v1545 = vadd.f32 %v1537, 2.0
        %v1546 = vadd.f32 %v1538, 2.0
        %v1547 = vadd.f32 %v1539, 2.0
        %v1548 = vadd.f32 %v1540, 2.0
        %v1549 = vadd.f32 %v1541, 2.0
        %v1550 = vrcp.pop %v1542
        %v1551 = vmul.f32 %v1534, %v1550
        %v1552 = vrcp.pop %v1543
        %v1553 = vmul.f32 %v1535, %v1552
        %v1554 = vrcp.pop %v1544
        %v1555 = vmul.f32 %v1536, %v1554
        %v1556 = vrcp.pop %v1545
        %v1557 = vmul.f32 %v1537, %v1556
        %v1558 = vrcp.pop %v1546
        %v1559 = vmul.f32 %v1538, %v1558
        %v1560 = vrcp.pop %v1547
        %v1561 = vmul.f32 %v1539, %v1560
        %v1562 = vrcp.pop %v1548
        %v1563 = vmul.f32 %v1540, %v1562
        %v1564 = vrcp.pop %v1549
        %v1565 = vmul.f32 %v1541, %v1564
        %v1566 = vmul.f32 %v1494, %v1551
        %v1567 = vmul.f32 %v1495, %v1553
        %v1568 = vmul.f32 %v1496, %v1555
        %v1569 = vmul.f32 %v1497, %v1557
        %v1570 = vmul.f32 %v1498, %v1559
        %v1571 = vmul.f32 %v1499, %v1561
        %v1572 = vmul.f32 %v1500, %v1563
        %v1573 = vmul.f32 %v1501, %v1565
        %v1574 = vpack.c.bf16 %v1567, %v1566
        %v1575 = vpack.c.bf16 %v1569, %v1568
        %v1576 = vpack.c.bf16 %v1571, %v1570
        %v1577 = vpack.c.bf16 %v1573, %v1572
        %s1578 = scalar_lea.vmem %s3, 32
        %v1579 = vld [vmem:[%s1578] sm:$0xf]
        %v1580 = vld [vmem:[%s1578 + $0x4] sm:$0xf]
        %v1581 = vld [vmem:[%s1578 + $0x8] sm:$0xf]
        %v1582 = vld [vmem:[%s1578 + $0xc] sm:$0xf]
        %v1583 = vld [vmem:[%s1578 + $0x10] sm:$0xf]
        %v1584 = vld [vmem:[%s1578 + $0x14] sm:$0xf]
        %v1585 = vld [vmem:[%s1578 + $0x18] sm:$0xf]
        %v1586 = vld [vmem:[%s1578 + $0x1c] sm:$0xf]
        %v1595 = vunpack.c.l.b16 %v1579
        %v1596 = vunpack.c.l.b16 %v1580
        %v1597 = vunpack.c.l.b16 %v1581
        %v1598 = vunpack.c.l.b16 %v1582
        %v1599 = vunpack.c.l.b16 %v1583
        %v1600 = vunpack.c.l.b16 %v1584
        %v1601 = vunpack.c.l.b16 %v1585
        %v1602 = vunpack.c.l.b16 %v1586
        %v1603 = vpack.c.b16 %v1596, %v1595
        %v1604 = vpack.c.b16 %v1598, %v1597
        %v1605 = vpack.c.b16 %v1600, %v1599
        %v1606 = vpack.c.b16 %v1602, %v1601
        %v1612 = vsel %vm502, %v1574, 0
        %v1615 = vsel %vm502, %v1575, 0
        %v1618 = vsel %vm502, %v1576, 0
        %v1621 = vsel %vm502, %v1577, 0
        %1623 = vmatprep.subr.bf16.mxu0 0
        %1624 = vmatpush1.bf16.msra.mxu0 %v1603
        %1625 = vmatprep.subr.bf16.mxu0 0
        %1626 = vmatpush1.bf16.msra.mxu0 %v1604
        %1627 = vmatprep.subr.bf16.mxu0 0
        %1628 = vmatpush1.bf16.msra.mxu0 %v1605
        %1629 = vmatprep.subr.bf16.mxu0 0
        %1630 = vmatpush1.bf16.msra.mxu0 %v1606
        %1631 = vmatprep.subr.bf16.mxu0 0
        %1632 = vmatpush1.bf16.msra.mxu0 0
        %1633 = vmatprep.subr.bf16.mxu0 0
        %1634 = vmatpush1.bf16.msra.mxu0 0
        %1635 = vmatprep.subr.bf16.mxu0 0
        %1636 = vmatpush1.bf16.msra.mxu0 0
        %1637 = vmatprep.subr.bf16.mxu0 0
        %1638 = vmatpush1.bf16.msra.mxu0 0
        %1639 = vmatprep.subr.bf16.mxu0 0
        %1640 = vmatpush1.bf16.msra.mxu0 0
        %1641 = vmatprep.subr.bf16.mxu0 0
        %1642 = vmatpush1.bf16.msra.mxu0 0
        %1643 = vmatprep.subr.bf16.mxu0 0
        %1644 = vmatpush1.bf16.msra.mxu0 0
        %1645 = vmatprep.subr.bf16.mxu0 0
        %1646 = vmatpush1.bf16.msra.mxu0 0
        %1647 = vmatprep.subr.bf16.mxu0 0
        %1648 = vmatpush1.bf16.msra.mxu0 0
        %1649 = vmatprep.subr.bf16.mxu0 0
        %1650 = vmatpush1.bf16.msra.mxu0 0
        %1651 = vmatprep.subr.bf16.mxu0 0
        %1652 = vmatpush1.bf16.msra.mxu0 0
        %1653 = vmatprep.subr.bf16.mxu0 0
        %1654 = vmatpush1.bf16.msra.mxu0 0
        %1655 = vmatprep.mubr.bf16.mxu0 0
        %1656 = vmatmul.mubr.bf16.gmra.mrb[0].mxu0 %v1612
        %v1657 = vpop.f32.mrb[0].mxu0
        %v1658 = vadd.f32 0.0, %v1657
        %v1659 = vpop.f32.mrb[0].mxu0
        %v1660 = vpop.f32.mrb[0].mxu0
        %v1661 = vadd.f32 0.0, %v1660
        %v1662 = vpop.f32.mrb[0].mxu0
        %1663 = vmatprep.mubr.bf16.mxu0 0
        %1664 = vmatmul.mubr.bf16.gmra.mrb[0].mxu0 %v1615
        %v1665 = vpop.f32.mrb[0].mxu0
        %v1666 = vadd.f32 0.0, %v1665
        %v1667 = vpop.f32.mrb[0].mxu0
        %v1668 = vpop.f32.mrb[0].mxu0
        %v1669 = vadd.f32 0.0, %v1668
        %v1670 = vpop.f32.mrb[0].mxu0
        %1671 = vmatprep.mubr.bf16.mxu0 0
        %1672 = vmatmul.mubr.bf16.gmra.mrb[0].mxu0 %v1618
        %v1673 = vpop.f32.mrb[0].mxu0
        %v1674 = vadd.f32 0.0, %v1673
        %v1675 = vpop.f32.mrb[0].mxu0
        %v1676 = vpop.f32.mrb[0].mxu0
        %v1677 = vadd.f32 0.0, %v1676
        %v1678 = vpop.f32.mrb[0].mxu0
        %1679 = vmatprep.mubr.bf16.mxu0 0
        %1680 = vmatmul.mubr.bf16.gmra.mrb[0].mxu0 %v1621
        %v1681 = vpop.f32.mrb[0].mxu0
        %v1682 = vadd.f32 0.0, %v1681
        %v1683 = vpop.f32.mrb[0].mxu0
        %v1684 = vpop.f32.mrb[0].mxu0
        %v1685 = vadd.f32 0.0, %v1684
        %v1686 = vpop.f32.mrb[0].mxu0
        %1687 = vdwg.mxu0
        %v1696 = vunpack.c.l.b16 %v1025
        %v1697 = vunpack.c.l.b16 %v1026
        %v1698 = vunpack.c.l.b16 %v1027
        %v1699 = vunpack.c.l.b16 %v1028
        %v1700 = vunpack.c.l.b16 %v1029
        %v1701 = vunpack.c.l.b16 %v1030
        %v1702 = vunpack.c.l.b16 %v1031
        %v1703 = vunpack.c.l.b16 %v1032
        %v1704 = vpack.c.b16 %v1697, %v1696
        %v1705 = vpack.c.b16 %v1699, %v1698
        %v1706 = vpack.c.b16 %v1701, %v1700
        %v1707 = vpack.c.b16 %v1703, %v1702
        %v1713 = vsel %vm502, %v1021, 0
        %v1716 = vsel %vm502, %v1022, 0
        %v1719 = vsel %vm502, %v1023, 0
        %v1722 = vsel %vm502, %v1024, 0
        %1724 = vmatprep.subr.bf16.mxu0 0
        %1725 = vmatpush1.bf16.msra.mxu0 %v1704
        %1726 = vmatprep.subr.bf16.mxu0 0
        %1727 = vmatpush1.bf16.msra.mxu0 %v1705
        %1728 = vmatprep.subr.bf16.mxu0 0
        %1729 = vmatpush1.bf16.msra.mxu0 %v1706
        %1730 = vmatprep.subr.bf16.mxu0 0
        %1731 = vmatpush1.bf16.msra.mxu0 %v1707
        %1732 = vmatprep.subr.bf16.mxu0 0
        %1733 = vmatpush1.bf16.msra.mxu0 0
        %1734 = vmatprep.subr.bf16.mxu0 0
        %1735 = vmatpush1.bf16.msra.mxu0 0
        %1736 = vmatprep.subr.bf16.mxu0 0
        %1737 = vmatpush1.bf16.msra.mxu0 0
        %1738 = vmatprep.subr.bf16.mxu0 0
        %1739 = vmatpush1.bf16.msra.mxu0 0
        %1740 = vmatprep.subr.bf16.mxu0 0
        %1741 = vmatpush1.bf16.msra.mxu0 0
        %1742 = vmatprep.subr.bf16.mxu0 0
        %1743 = vmatpush1.bf16.msra.mxu0 0
        %1744 = vmatprep.subr.bf16.mxu0 0
        %1745 = vmatpush1.bf16.msra.mxu0 0
        %1746 = vmatprep.subr.bf16.mxu0 0
        %1747 = vmatpush1.bf16.msra.mxu0 0
        %1748 = vmatprep.subr.bf16.mxu0 0
        %1749 = vmatpush1.bf16.msra.mxu0 0
        %1750 = vmatprep.subr.bf16.mxu0 0
        %1751 = vmatpush1.bf16.msra.mxu0 0
        %1752 = vmatprep.subr.bf16.mxu0 0
        %1753 = vmatpush1.bf16.msra.mxu0 0
        %1754 = vmatprep.subr.bf16.mxu0 0
        %1755 = vmatpush1.bf16.msra.mxu0 0
        %1756 = vmatprep.mubr.bf16.mxu0 0
        %1757 = vmatmul.mubr.bf16.gmra.mrb[0].mxu0 %v1713
        %v1758 = vpop.f32.mrb[0].mxu0
        %v1759 = vadd.f32 %v1658, %v1758
        %v1760 = vpop.f32.mrb[0].mxu0
        %v1761 = vpop.f32.mrb[0].mxu0
        %v1762 = vadd.f32 %v1661, %v1761
        %v1763 = vpop.f32.mrb[0].mxu0
        %1764 = vmatprep.mubr.bf16.mxu0 0
        %1765 = vmatmul.mubr.bf16.gmra.mrb[0].mxu0 %v1716
        %v1766 = vpop.f32.mrb[0].mxu0
        %v1767 = vadd.f32 %v1666, %v1766
        %v1768 = vpop.f32.mrb[0].mxu0
        %v1769 = vpop.f32.mrb[0].mxu0
        %v1770 = vadd.f32 %v1669, %v1769
        %v1771 = vpop.f32.mrb[0].mxu0
        %1772 = vmatprep.mubr.bf16.mxu0 0
        %1773 = vmatmul.mubr.bf16.gmra.mrb[0].mxu0 %v1719
        %v1774 = vpop.f32.mrb[0].mxu0
        %v1775 = vadd.f32 %v1674, %v1774
        %v1776 = vpop.f32.mrb[0].mxu0
        %v1777 = vpop.f32.mrb[0].mxu0
        %v1778 = vadd.f32 %v1677, %v1777
        %v1779 = vpop.f32.mrb[0].mxu0
        %1780 = vmatprep.mubr.bf16.mxu0 0
        %1781 = vmatmul.mubr.bf16.gmra.mrb[0].mxu0 %v1722
        %v1782 = vpop.f32.mrb[0].mxu0
        %v1783 = vadd.f32 %v1682, %v1782
        %v1784 = vpop.f32.mrb[0].mxu0
        %v1785 = vpop.f32.mrb[0].mxu0
        %v1786 = vadd.f32 %v1685, %v1785
        %v1787 = vpop.f32.mrb[0].mxu0
        %1788 = vdwg.mxu0
        %s1789 = scalar_lea.vmem %s4, 16
        %v1790 = vld [vmem:[%s1789] sm:$0x3f]
        %s1791 = scalar_lea.vmem [#allocation2], 16
        %v1792 = vld [vmem:[%s1791] sm:$0xff]
        %v1793 = vld [vmem:[%s1791 + $0x18] sm:$0xff]
        %v1794 = vld [vmem:[%s1791 + $0x30] sm:$0xff]
        %v1795 = vld [vmem:[%s1791 + $0x48] sm:$0xff]
        %v1796 = vld [vmem:[%s1791 + $0x60] sm:$0xff]
        %v1797 = vld [vmem:[%s1791 + $0x78] sm:$0xff]
        %v1798 = vld [vmem:[%s1791 + $0x90] sm:$0xff]
        %v1799 = vld [vmem:[%s1791 + $0xa8] sm:$0xff]
        %v1800 = vlaneseq
        %v1801 = vshrl.u32 %v1800, 7
        %v1802 = vsub.s32 0, %v1801
        %v1803 = vrot.slane %v1790, %v1802
        %v1804 = vadd.f32 %v1792, %v1803
        %v1805 = vadd.f32 %v1793, %v1803
        %v1806 = vadd.f32 %v1794, %v1803
        %v1807 = vadd.f32 %v1795, %v1803
        %v1808 = vadd.f32 %v1796, %v1803
        %v1809 = vadd.f32 %v1797, %v1803
        %v1810 = vadd.f32 %v1798, %v1803
        %v1811 = vadd.f32 %v1799, %v1803
        %v1812 = vsel %vm502, %v1804, 0.0
        %1813 = vadd.xlane.f32.xlu0 %v1812
        %v1814 = vpop.xlane.xlu0 %1813
        %v1815 = vsel %vm502, %v1805, 0.0
        %1816 = vadd.xlane.f32.xlu0 %v1815
        %v1817 = vpop.xlane.xlu0 %1816
        %v1818 = vsel %vm502, %v1806, 0.0
        %1819 = vadd.xlane.f32.xlu0 %v1818
        %v1820 = vpop.xlane.xlu0 %1819
        %v1821 = vsel %vm502, %v1807, 0.0
        %1822 = vadd.xlane.f32.xlu0 %v1821
        %v1823 = vpop.xlane.xlu0 %1822
        %v1824 = vsel %vm502, %v1808, 0.0
        %1825 = vadd.xlane.f32.xlu0 %v1824
        %v1826 = vpop.xlane.xlu0 %1825
        %v1827 = vsel %vm502, %v1809, 0.0
        %1828 = vadd.xlane.f32.xlu0 %v1827
        %v1829 = vpop.xlane.xlu0 %1828
        %v1830 = vsel %vm502, %v1810, 0.0
        %1831 = vadd.xlane.f32.xlu0 %v1830
        %v1832 = vpop.xlane.xlu0 %1831
        %v1833 = vsel %vm502, %v1811, 0.0
        %1834 = vadd.xlane.f32.xlu0 %v1833
        %v1835 = vpop.xlane.xlu0 %1834
        %v1836 = vmul.f32 %v1814, %v527
        %v1837 = vmul.f32 %v1817, %v527
        %v1838 = vmul.f32 %v1820, %v527
        %v1839 = vmul.f32 %v1823, %v527
        %v1840 = vmul.f32 %v1826, %v527
        %v1841 = vmul.f32 %v1829, %v527
        %v1842 = vmul.f32 %v1832, %v527
        %v1843 = vmul.f32 %v1835, %v527
        %v1844 = vsub.f32 %v1804, %v1836
        %v1845 = vsub.f32 %v1805, %v1837
        %v1846 = vsub.f32 %v1806, %v1838
        %v1847 = vsub.f32 %v1807, %v1839
        %v1848 = vsub.f32 %v1808, %v1840
        %v1849 = vsub.f32 %v1809, %v1841
        %v1850 = vsub.f32 %v1810, %v1842
        %v1851 = vsub.f32 %v1811, %v1843
        %v1852 = vmul.f32 %v1844, %v1844
        %v1853 = vmul.f32 %v1845, %v1845
        %v1854 = vmul.f32 %v1846, %v1846
        %v1855 = vmul.f32 %v1847, %v1847
        %v1856 = vmul.f32 %v1848, %v1848
        %v1857 = vmul.f32 %v1849, %v1849
        %v1858 = vmul.f32 %v1850, %v1850
        %v1859 = vmul.f32 %v1851, %v1851
        %v1860 = vsel %vm502, %v1852, 0.0
        %1861 = vadd.xlane.f32.xlu0 %v1860
        %v1862 = vpop.xlane.xlu0 %1861
        %v1863 = vsel %vm502, %v1853, 0.0
        %1864 = vadd.xlane.f32.xlu0 %v1863
        %v1865 = vpop.xlane.xlu0 %1864
        %v1866 = vsel %vm502, %v1854, 0.0
        %1867 = vadd.xlane.f32.xlu0 %v1866
        %v1868 = vpop.xlane.xlu0 %1867
        %v1869 = vsel %vm502, %v1855, 0.0
        %1870 = vadd.xlane.f32.xlu0 %v1869
        %v1871 = vpop.xlane.xlu0 %1870
        %v1872 = vsel %vm502, %v1856, 0.0
        %1873 = vadd.xlane.f32.xlu0 %v1872
        %v1874 = vpop.xlane.xlu0 %1873
        %v1875 = vsel %vm502, %v1857, 0.0
        %1876 = vadd.xlane.f32.xlu0 %v1875
        %v1877 = vpop.xlane.xlu0 %1876
        %v1878 = vsel %vm502, %v1858, 0.0
        %1879 = vadd.xlane.f32.xlu0 %v1878
        %v1880 = vpop.xlane.xlu0 %1879
        %v1881 = vsel %vm502, %v1859, 0.0
        %1882 = vadd.xlane.f32.xlu0 %v1881
        %v1883 = vpop.xlane.xlu0 %1882
        %v1884 = vmul.f32 %v1862, %v527
        %v1885 = vmul.f32 %v1865, %v527
        %v1886 = vmul.f32 %v1868, %v527
        %v1887 = vmul.f32 %v1871, %v527
        %v1888 = vmul.f32 %v1874, %v527
        %v1889 = vmul.f32 %v1877, %v527
        %v1890 = vmul.f32 %v1880, %v527
        %v1891 = vmul.f32 %v1883, %v527
        %v1892 = vadd.f32 %v1884, 1e-05
        %v1893 = vadd.f32 %v1885, 1e-05
        %v1894 = vadd.f32 %v1886, 1e-05
        %v1895 = vadd.f32 %v1887, 1e-05
        %v1896 = vadd.f32 %v1888, 1e-05
        %v1897 = vadd.f32 %v1889, 1e-05
        %v1898 = vadd.f32 %v1890, 1e-05
        %v1899 = vadd.f32 %v1891, 1e-05
        %v1900 = vrsqrt.pop %v1892
        %v1901 = vrsqrt.pop %v1893
        %v1902 = vrsqrt.pop %v1894
        %v1903 = vrsqrt.pop %v1895
        %v1904 = vrsqrt.pop %v1896
        %v1905 = vrsqrt.pop %v1897
        %v1906 = vrsqrt.pop %v1898
        %v1907 = vrsqrt.pop %v1899
        %v1908 = vmul.f32 %v1844, %v1900
        %v1909 = vmul.f32 %v1845, %v1901
        %v1910 = vmul.f32 %v1846, %v1902
        %v1911 = vmul.f32 %v1847, %v1903
        %v1912 = vmul.f32 %v1848, %v1904
        %v1913 = vmul.f32 %v1849, %v1905
        %v1914 = vmul.f32 %v1850, %v1906
        %v1915 = vmul.f32 %v1851, %v1907
        %v1916 = vlaneseq
        %v1917 = vshrl.u32 %v1916, 7
        %v1918 = vsub.s32 1, %v1917
        %v1919 = vrot.slane %v1790, %v1918
        %v1920 = vmul.f32 %v1908, %v1919
        %v1921 = vmul.f32 %v1909, %v1919
        %v1922 = vmul.f32 %v1910, %v1919
        %v1923 = vmul.f32 %v1911, %v1919
        %v1924 = vmul.f32 %v1912, %v1919
        %v1925 = vmul.f32 %v1913, %v1919
        %v1926 = vmul.f32 %v1914, %v1919
        %v1927 = vmul.f32 %v1915, %v1919
        %v1928 = vlaneseq
        %v1929 = vshrl.u32 %v1928, 7
        %v1930 = vsub.s32 2, %v1929
        %v1931 = vrot.slane %v1790, %v1930
        %v1932 = vadd.f32 %v1920, %v1931
        %v1933 = vadd.f32 %v1921, %v1931
        %v1934 = vadd.f32 %v1922, %v1931
        %v1935 = vadd.f32 %v1923, %v1931
        %v1936 = vadd.f32 %v1924, %v1931
        %v1937 = vadd.f32 %v1925, %v1931
        %v1938 = vadd.f32 %v1926, %v1931
        %v1939 = vadd.f32 %v1927, %v1931
        %v1940 = vmin.f32 %v1932, 20.0
        %v1941 = vmin.f32 %v1933, 20.0
        %v1942 = vmin.f32 %v1934, 20.0
        %v1943 = vmin.f32 %v1935, 20.0
        %v1944 = vmin.f32 %v1936, 20.0
        %v1945 = vmin.f32 %v1937, 20.0
        %v1946 = vmin.f32 %v1938, 20.0
        %v1947 = vmin.f32 %v1939, 20.0
        %v1948 = vmul.f32 %v1940, 1.442695
        %v1949 = vpow.pop %v1948
        %v1950 = vmul.f32 %v1941, 1.442695
        %v1951 = vpow.pop %v1950
        %v1952 = vmul.f32 %v1942, 1.442695
        %v1953 = vpow.pop %v1952
        %v1954 = vmul.f32 %v1943, 1.442695
        %v1955 = vpow.pop %v1954
        %v1956 = vmul.f32 %v1944, 1.442695
        %v1957 = vpow.pop %v1956
        %v1958 = vmul.f32 %v1945, 1.442695
        %v1959 = vpow.pop %v1958
        %v1960 = vmul.f32 %v1946, 1.442695
        %v1961 = vpow.pop %v1960
        %v1962 = vmul.f32 %v1947, 1.442695
        %v1963 = vpow.pop %v1962
        %v1964 = vadd.f32 %v1949, 2.0
        %v1965 = vadd.f32 %v1951, 2.0
        %v1966 = vadd.f32 %v1953, 2.0
        %v1967 = vadd.f32 %v1955, 2.0
        %v1968 = vadd.f32 %v1957, 2.0
        %v1969 = vadd.f32 %v1959, 2.0
        %v1970 = vadd.f32 %v1961, 2.0
        %v1971 = vadd.f32 %v1963, 2.0
        %v1972 = vmul.f32 %v1949, %v1964
        %v1973 = vmul.f32 %v1951, %v1965
        %v1974 = vmul.f32 %v1953, %v1966
        %v1975 = vmul.f32 %v1955, %v1967
        %v1976 = vmul.f32 %v1957, %v1968
        %v1977 = vmul.f32 %v1959, %v1969
        %v1978 = vmul.f32 %v1961, %v1970
        %v1979 = vmul.f32 %v1963, %v1971
        %v1980 = vadd.f32 %v1972, 2.0
        %v1981 = vadd.f32 %v1973, 2.0
        %v1982 = vadd.f32 %v1974, 2.0
        %v1983 = vadd.f32 %v1975, 2.0
        %v1984 = vadd.f32 %v1976, 2.0
        %v1985 = vadd.f32 %v1977, 2.0
        %v1986 = vadd.f32 %v1978, 2.0
        %v1987 = vadd.f32 %v1979, 2.0
        %v1988 = vrcp.pop %v1980
        %v1989 = vmul.f32 %v1972, %v1988
        %v1990 = vrcp.pop %v1981
        %v1991 = vmul.f32 %v1973, %v1990
        %v1992 = vrcp.pop %v1982
        %v1993 = vmul.f32 %v1974, %v1992
        %v1994 = vrcp.pop %v1983
        %v1995 = vmul.f32 %v1975, %v1994
        %v1996 = vrcp.pop %v1984
        %v1997 = vmul.f32 %v1976, %v1996
        %v1998 = vrcp.pop %v1985
        %v1999 = vmul.f32 %v1977, %v1998
        %v2000 = vrcp.pop %v1986
        %v2001 = vmul.f32 %v1978, %v2000
        %v2002 = vrcp.pop %v1987
        %v2003 = vmul.f32 %v1979, %v2002
        %v2004 = vmul.f32 %v1932, %v1989
        %v2005 = vmul.f32 %v1933, %v1991
        %v2006 = vmul.f32 %v1934, %v1993
        %v2007 = vmul.f32 %v1935, %v1995
        %v2008 = vmul.f32 %v1936, %v1997
        %v2009 = vmul.f32 %v1937, %v1999
        %v2010 = vmul.f32 %v1938, %v2001
        %v2011 = vmul.f32 %v1939, %v2003
        %v2012 = vpack.c.bf16 %v2005, %v2004
        %v2013 = vpack.c.bf16 %v2007, %v2006
        %v2014 = vpack.c.bf16 %v2009, %v2008
        %v2015 = vpack.c.bf16 %v2011, %v2010
        %s2016 = scalar_lea.vmem %s2, 64
        %v2017 = vld [vmem:[%s2016] sm:$0xf]
        %v2018 = vld [vmem:[%s2016 + $0x4] sm:$0xf]
        %v2019 = vld [vmem:[%s2016 + $0x8] sm:$0xf]
        %v2020 = vld [vmem:[%s2016 + $0xc] sm:$0xf]
        %v2021 = vld [vmem:[%s2016 + $0x10] sm:$0xf]
        %v2022 = vld [vmem:[%s2016 + $0x14] sm:$0xf]
        %v2023 = vld [vmem:[%s2016 + $0x18] sm:$0xf]
        %v2024 = vld [vmem:[%s2016 + $0x1c] sm:$0xf]
        %v2025 = vlaneseq
        %v2026 = vshrl.u32 %v2025, 7
        %v2027 = vsub.s32 3, %v2026
        %v2028 = vrot.slane %v1790, %v2027
        %v2037 = vunpack.c.l.b16 %v2017
        %v2038 = vunpack.c.l.b16 %v2018
        %v2039 = vunpack.c.l.b16 %v2019
        %v2040 = vunpack.c.l.b16 %v2020
        %v2041 = vunpack.c.l.b16 %v2021
        %v2042 = vunpack.c.l.b16 %v2022
        %v2043 = vunpack.c.l.b16 %v2023
        %v2044 = vunpack.c.l.b16 %v2024
        %v2045 = vpack.c.b16 %v2038, %v2037
        %v2046 = vpack.c.b16 %v2040, %v2039
        %v2047 = vpack.c.b16 %v2042, %v2041
        %v2048 = vpack.c.b16 %v2044, %v2043
        %v2054 = vsel %vm502, %v2012, 0
        %v2057 = vsel %vm502, %v2013, 0
        %v2060 = vsel %vm502, %v2014, 0
        %v2063 = vsel %vm502, %v2015, 0
        %2065 = vmatprep.subr.bf16.mxu0 0
        %2066 = vmatpush1.bf16.msra.mxu0 %v2045
        %2067 = vmatprep.subr.bf16.mxu0 0
        %2068 = vmatpush1.bf16.msra.mxu0 %v2046
        %2069 = vmatprep.subr.bf16.mxu0 0
        %2070 = vmatpush1.bf16.msra.mxu0 %v2047
        %2071 = vmatprep.subr.bf16.mxu0 0
        %2072 = vmatpush1.bf16.msra.mxu0 %v2048
        %2073 = vmatprep.subr.bf16.mxu0 0
        %2074 = vmatpush1.bf16.msra.mxu0 0
        %2075 = vmatprep.subr.bf16.mxu0 0
        %2076 = vmatpush1.bf16.msra.mxu0 0
        %2077 = vmatprep.subr.bf16.mxu0 0
        %2078 = vmatpush1.bf16.msra.mxu0 0
        %2079 = vmatprep.subr.bf16.mxu0 0
        %2080 = vmatpush1.bf16.msra.mxu0 0
        %2081 = vmatprep.subr.bf16.mxu0 0
        %2082 = vmatpush1.bf16.msra.mxu0 0
        %2083 = vmatprep.subr.bf16.mxu0 0
        %2084 = vmatpush1.bf16.msra.mxu0 0
        %2085 = vmatprep.subr.bf16.mxu0 0
        %2086 = vmatpush1.bf16.msra.mxu0 0
        %2087 = vmatprep.subr.bf16.mxu0 0
        %2088 = vmatpush1.bf16.msra.mxu0 0
        %2089 = vmatprep.subr.bf16.mxu0 0
        %2090 = vmatpush1.bf16.msra.mxu0 0
        %2091 = vmatprep.subr.bf16.mxu0 0
        %2092 = vmatpush1.bf16.msra.mxu0 0
        %2093 = vmatprep.subr.bf16.mxu0 0
        %2094 = vmatpush1.bf16.msra.mxu0 0
        %2095 = vmatprep.subr.bf16.mxu0 0
        %2096 = vmatpush1.bf16.msra.mxu0 0
        %2097 = vmatprep.mubr.bf16.mxu0 0
        %2098 = vmatmul.mubr.bf16.gmra.mrb[0].mxu0 %v2054
        %v2099 = vpop.f32.mrb[0].mxu0
        %v2100 = vadd.f32 %v2028, %v2099
        %v2101 = vpop.f32.mrb[0].mxu0
        %v2102 = vpop.f32.mrb[0].mxu0
        %v2103 = vadd.f32 %v2028, %v2102
        %v2104 = vpop.f32.mrb[0].mxu0
        %2105 = vmatprep.mubr.bf16.mxu0 0
        %2106 = vmatmul.mubr.bf16.gmra.mrb[0].mxu0 %v2057
        %v2107 = vpop.f32.mrb[0].mxu0
        %v2108 = vadd.f32 %v2028, %v2107
        %v2109 = vpop.f32.mrb[0].mxu0
        %v2110 = vpop.f32.mrb[0].mxu0
        %v2111 = vadd.f32 %v2028, %v2110
        %v2112 = vpop.f32.mrb[0].mxu0
        %2113 = vmatprep.mubr.bf16.mxu0 0
        %2114 = vmatmul.mubr.bf16.gmra.mrb[0].mxu0 %v2060
        %v2115 = vpop.f32.mrb[0].mxu0
        %v2116 = vadd.f32 %v2028, %v2115
        %v2117 = vpop.f32.mrb[0].mxu0
        %v2118 = vpop.f32.mrb[0].mxu0
        %v2119 = vadd.f32 %v2028, %v2118
        %v2120 = vpop.f32.mrb[0].mxu0
        %2121 = vmatprep.mubr.bf16.mxu0 0
        %2122 = vmatmul.mubr.bf16.gmra.mrb[0].mxu0 %v2063
        %v2123 = vpop.f32.mrb[0].mxu0
        %v2124 = vadd.f32 %v2028, %v2123
        %v2125 = vpop.f32.mrb[0].mxu0
        %v2126 = vpop.f32.mrb[0].mxu0
        %v2127 = vadd.f32 %v2028, %v2126
        %v2128 = vpop.f32.mrb[0].mxu0
        %2129 = vdwg.mxu0
        %v2130 = vsel %vm502, %v2100, 0.0
        %2131 = vadd.xlane.f32.xlu0 %v2130
        %v2132 = vpop.xlane.xlu0 %2131
        %v2133 = vsel %vm502, %v2103, 0.0
        %2134 = vadd.xlane.f32.xlu0 %v2133
        %v2135 = vpop.xlane.xlu0 %2134
        %v2136 = vsel %vm502, %v2108, 0.0
        %2137 = vadd.xlane.f32.xlu0 %v2136
        %v2138 = vpop.xlane.xlu0 %2137
        %v2139 = vsel %vm502, %v2111, 0.0
        %2140 = vadd.xlane.f32.xlu0 %v2139
        %v2141 = vpop.xlane.xlu0 %2140
        %v2142 = vsel %vm502, %v2116, 0.0
        %2143 = vadd.xlane.f32.xlu0 %v2142
        %v2144 = vpop.xlane.xlu0 %2143
        %v2145 = vsel %vm502, %v2119, 0.0
        %2146 = vadd.xlane.f32.xlu0 %v2145
        %v2147 = vpop.xlane.xlu0 %2146
        %v2148 = vsel %vm502, %v2124, 0.0
        %2149 = vadd.xlane.f32.xlu0 %v2148
        %v2150 = vpop.xlane.xlu0 %2149
        %v2151 = vsel %vm502, %v2127, 0.0
        %2152 = vadd.xlane.f32.xlu0 %v2151
        %v2153 = vpop.xlane.xlu0 %2152
        %v2154 = vmul.f32 %v2132, %v527
        %v2155 = vmul.f32 %v2135, %v527
        %v2156 = vmul.f32 %v2138, %v527
        %v2157 = vmul.f32 %v2141, %v527
        %v2158 = vmul.f32 %v2144, %v527
        %v2159 = vmul.f32 %v2147, %v527
        %v2160 = vmul.f32 %v2150, %v527
        %v2161 = vmul.f32 %v2153, %v527
        %v2162 = vsub.f32 %v2100, %v2154
        %v2163 = vsub.f32 %v2103, %v2155
        %v2164 = vsub.f32 %v2108, %v2156
        %v2165 = vsub.f32 %v2111, %v2157
        %v2166 = vsub.f32 %v2116, %v2158
        %v2167 = vsub.f32 %v2119, %v2159
        %v2168 = vsub.f32 %v2124, %v2160
        %v2169 = vsub.f32 %v2127, %v2161
        %v2170 = vmul.f32 %v2162, %v2162
        %v2171 = vmul.f32 %v2163, %v2163
        %v2172 = vmul.f32 %v2164, %v2164
        %v2173 = vmul.f32 %v2165, %v2165
        %v2174 = vmul.f32 %v2166, %v2166
        %v2175 = vmul.f32 %v2167, %v2167
        %v2176 = vmul.f32 %v2168, %v2168
        %v2177 = vmul.f32 %v2169, %v2169
        %v2178 = vsel %vm502, %v2170, 0.0
        %2179 = vadd.xlane.f32.xlu0 %v2178
        %v2180 = vpop.xlane.xlu0 %2179
        %v2181 = vsel %vm502, %v2171, 0.0
        %2182 = vadd.xlane.f32.xlu0 %v2181
        %v2183 = vpop.xlane.xlu0 %2182
        %v2184 = vsel %vm502, %v2172, 0.0
        %2185 = vadd.xlane.f32.xlu0 %v2184
        %v2186 = vpop.xlane.xlu0 %2185
        %v2187 = vsel %vm502, %v2173, 0.0
        %2188 = vadd.xlane.f32.xlu0 %v2187
        %v2189 = vpop.xlane.xlu0 %2188
        %v2190 = vsel %vm502, %v2174, 0.0
        %2191 = vadd.xlane.f32.xlu0 %v2190
        %v2192 = vpop.xlane.xlu0 %2191
        %v2193 = vsel %vm502, %v2175, 0.0
        %2194 = vadd.xlane.f32.xlu0 %v2193
        %v2195 = vpop.xlane.xlu0 %2194
        %v2196 = vsel %vm502, %v2176, 0.0
        %2197 = vadd.xlane.f32.xlu0 %v2196
        %v2198 = vpop.xlane.xlu0 %2197
        %v2199 = vsel %vm502, %v2177, 0.0
        %2200 = vadd.xlane.f32.xlu0 %v2199
        %v2201 = vpop.xlane.xlu0 %2200
        %v2202 = vmul.f32 %v2180, %v527
        %v2203 = vmul.f32 %v2183, %v527
        %v2204 = vmul.f32 %v2186, %v527
        %v2205 = vmul.f32 %v2189, %v527
        %v2206 = vmul.f32 %v2192, %v527
        %v2207 = vmul.f32 %v2195, %v527
        %v2208 = vmul.f32 %v2198, %v527
        %v2209 = vmul.f32 %v2201, %v527
        %v2210 = vadd.f32 %v2202, 1e-05
        %v2211 = vadd.f32 %v2203, 1e-05
        %v2212 = vadd.f32 %v2204, 1e-05
        %v2213 = vadd.f32 %v2205, 1e-05
        %v2214 = vadd.f32 %v2206, 1e-05
        %v2215 = vadd.f32 %v2207, 1e-05
        %v2216 = vadd.f32 %v2208, 1e-05
        %v2217 = vadd.f32 %v2209, 1e-05
        %v2218 = vrsqrt.pop %v2210
        %v2219 = vrsqrt.pop %v2211
        %v2220 = vrsqrt.pop %v2212
        %v2221 = vrsqrt.pop %v2213
        %v2222 = vrsqrt.pop %v2214
        %v2223 = vrsqrt.pop %v2215
        %v2224 = vrsqrt.pop %v2216
        %v2225 = vrsqrt.pop %v2217
        %v2226 = vmul.f32 %v2162, %v2218
        %v2227 = vmul.f32 %v2163, %v2219
        %v2228 = vmul.f32 %v2164, %v2220
        %v2229 = vmul.f32 %v2165, %v2221
        %v2230 = vmul.f32 %v2166, %v2222
        %v2231 = vmul.f32 %v2167, %v2223
        %v2232 = vmul.f32 %v2168, %v2224
        %v2233 = vmul.f32 %v2169, %v2225
        %v2234 = vlaneseq
        %v2235 = vshrl.u32 %v2234, 7
        %v2236 = vsub.s32 4, %v2235
        %v2237 = vrot.slane %v1790, %v2236
        %v2238 = vmul.f32 %v2226, %v2237
        %v2239 = vmul.f32 %v2227, %v2237
        %v2240 = vmul.f32 %v2228, %v2237
        %v2241 = vmul.f32 %v2229, %v2237
        %v2242 = vmul.f32 %v2230, %v2237
        %v2243 = vmul.f32 %v2231, %v2237
        %v2244 = vmul.f32 %v2232, %v2237
        %v2245 = vmul.f32 %v2233, %v2237
        %v2246 = vlaneseq
        %v2247 = vshrl.u32 %v2246, 7
        %v2248 = vsub.s32 5, %v2247
        %v2249 = vrot.slane %v1790, %v2248
        %v2250 = vadd.f32 %v2238, %v2249
        %v2251 = vadd.f32 %v2239, %v2249
        %v2252 = vadd.f32 %v2240, %v2249
        %v2253 = vadd.f32 %v2241, %v2249
        %v2254 = vadd.f32 %v2242, %v2249
        %v2255 = vadd.f32 %v2243, %v2249
        %v2256 = vadd.f32 %v2244, %v2249
        %v2257 = vadd.f32 %v2245, %v2249
        %v2258 = vmin.f32 %v2250, 20.0
        %v2259 = vmin.f32 %v2251, 20.0
        %v2260 = vmin.f32 %v2252, 20.0
        %v2261 = vmin.f32 %v2253, 20.0
        %v2262 = vmin.f32 %v2254, 20.0
        %v2263 = vmin.f32 %v2255, 20.0
        %v2264 = vmin.f32 %v2256, 20.0
        %v2265 = vmin.f32 %v2257, 20.0
        %v2266 = vmul.f32 %v2258, 1.442695
        %v2267 = vpow.pop %v2266
        %v2268 = vmul.f32 %v2259, 1.442695
        %v2269 = vpow.pop %v2268
        %v2270 = vmul.f32 %v2260, 1.442695
        %v2271 = vpow.pop %v2270
        %v2272 = vmul.f32 %v2261, 1.442695
        %v2273 = vpow.pop %v2272
        %v2274 = vmul.f32 %v2262, 1.442695
        %v2275 = vpow.pop %v2274
        %v2276 = vmul.f32 %v2263, 1.442695
        %v2277 = vpow.pop %v2276
        %v2278 = vmul.f32 %v2264, 1.442695
        %v2279 = vpow.pop %v2278
        %v2280 = vmul.f32 %v2265, 1.442695
        %v2281 = vpow.pop %v2280
        %v2282 = vadd.f32 %v2267, 2.0
        %v2283 = vadd.f32 %v2269, 2.0
        %v2284 = vadd.f32 %v2271, 2.0
        %v2285 = vadd.f32 %v2273, 2.0
        %v2286 = vadd.f32 %v2275, 2.0
        %v2287 = vadd.f32 %v2277, 2.0
        %v2288 = vadd.f32 %v2279, 2.0
        %v2289 = vadd.f32 %v2281, 2.0
        %v2290 = vmul.f32 %v2267, %v2282
        %v2291 = vmul.f32 %v2269, %v2283
        %v2292 = vmul.f32 %v2271, %v2284
        %v2293 = vmul.f32 %v2273, %v2285
        %v2294 = vmul.f32 %v2275, %v2286
        %v2295 = vmul.f32 %v2277, %v2287
        %v2296 = vmul.f32 %v2279, %v2288
        %v2297 = vmul.f32 %v2281, %v2289
        %v2298 = vadd.f32 %v2290, 2.0
        %v2299 = vadd.f32 %v2291, 2.0
        %v2300 = vadd.f32 %v2292, 2.0
        %v2301 = vadd.f32 %v2293, 2.0
        %v2302 = vadd.f32 %v2294, 2.0
        %v2303 = vadd.f32 %v2295, 2.0
        %v2304 = vadd.f32 %v2296, 2.0
        %v2305 = vadd.f32 %v2297, 2.0
        %v2306 = vrcp.pop %v2298
        %v2307 = vmul.f32 %v2290, %v2306
        %v2308 = vrcp.pop %v2299
        %v2309 = vmul.f32 %v2291, %v2308
        %v2310 = vrcp.pop %v2300
        %v2311 = vmul.f32 %v2292, %v2310
        %v2312 = vrcp.pop %v2301
        %v2313 = vmul.f32 %v2293, %v2312
        %v2314 = vrcp.pop %v2302
        %v2315 = vmul.f32 %v2294, %v2314
        %v2316 = vrcp.pop %v2303
        %v2317 = vmul.f32 %v2295, %v2316
        %v2318 = vrcp.pop %v2304
        %v2319 = vmul.f32 %v2296, %v2318
        %v2320 = vrcp.pop %v2305
        %v2321 = vmul.f32 %v2297, %v2320
        %v2322 = vmul.f32 %v2250, %v2307
        %v2323 = vmul.f32 %v2251, %v2309
        %v2324 = vmul.f32 %v2252, %v2311
        %v2325 = vmul.f32 %v2253, %v2313
        %v2326 = vmul.f32 %v2254, %v2315
        %v2327 = vmul.f32 %v2255, %v2317
        %v2328 = vmul.f32 %v2256, %v2319
        %v2329 = vmul.f32 %v2257, %v2321
        %v2330 = vpack.c.bf16 %v2323, %v2322
        %v2331 = vpack.c.bf16 %v2325, %v2324
        %v2332 = vpack.c.bf16 %v2327, %v2326
        %v2333 = vpack.c.bf16 %v2329, %v2328
        %s2334 = scalar_lea.vmem %s3, 64
        %v2335 = vld [vmem:[%s2334] sm:$0xf]
        %v2336 = vld [vmem:[%s2334 + $0x4] sm:$0xf]
        %v2337 = vld [vmem:[%s2334 + $0x8] sm:$0xf]
        %v2338 = vld [vmem:[%s2334 + $0xc] sm:$0xf]
        %v2339 = vld [vmem:[%s2334 + $0x10] sm:$0xf]
        %v2340 = vld [vmem:[%s2334 + $0x14] sm:$0xf]
        %v2341 = vld [vmem:[%s2334 + $0x18] sm:$0xf]
        %v2342 = vld [vmem:[%s2334 + $0x1c] sm:$0xf]
        %v2351 = vunpack.c.l.b16 %v2335
        %v2352 = vunpack.c.l.b16 %v2336
        %v2353 = vunpack.c.l.b16 %v2337
        %v2354 = vunpack.c.l.b16 %v2338
        %v2355 = vunpack.c.l.b16 %v2339
        %v2356 = vunpack.c.l.b16 %v2340
        %v2357 = vunpack.c.l.b16 %v2341
        %v2358 = vunpack.c.l.b16 %v2342
        %v2359 = vpack.c.b16 %v2352, %v2351
        %v2360 = vpack.c.b16 %v2354, %v2353
        %v2361 = vpack.c.b16 %v2356, %v2355
        %v2362 = vpack.c.b16 %v2358, %v2357
        %v2368 = vsel %vm502, %v2330, 0
        %v2371 = vsel %vm502, %v2331, 0
        %v2374 = vsel %vm502, %v2332, 0
        %v2377 = vsel %vm502, %v2333, 0
        %2379 = vmatprep.subr.bf16.mxu0 0
        %2380 = vmatpush1.bf16.msra.mxu0 %v2359
        %2381 = vmatprep.subr.bf16.mxu0 0
        %2382 = vmatpush1.bf16.msra.mxu0 %v2360
        %2383 = vmatprep.subr.bf16.mxu0 0
        %2384 = vmatpush1.bf16.msra.mxu0 %v2361
        %2385 = vmatprep.subr.bf16.mxu0 0
        %2386 = vmatpush1.bf16.msra.mxu0 %v2362
        %2387 = vmatprep.subr.bf16.mxu0 0
        %2388 = vmatpush1.bf16.msra.mxu0 0
        %2389 = vmatprep.subr.bf16.mxu0 0
        %2390 = vmatpush1.bf16.msra.mxu0 0
        %2391 = vmatprep.subr.bf16.mxu0 0
        %2392 = vmatpush1.bf16.msra.mxu0 0
        %2393 = vmatprep.subr.bf16.mxu0 0
        %2394 = vmatpush1.bf16.msra.mxu0 0
        %2395 = vmatprep.subr.bf16.mxu0 0
        %2396 = vmatpush1.bf16.msra.mxu0 0
        %2397 = vmatprep.subr.bf16.mxu0 0
        %2398 = vmatpush1.bf16.msra.mxu0 0
        %2399 = vmatprep.subr.bf16.mxu0 0
        %2400 = vmatpush1.bf16.msra.mxu0 0
        %2401 = vmatprep.subr.bf16.mxu0 0
        %2402 = vmatpush1.bf16.msra.mxu0 0
        %2403 = vmatprep.subr.bf16.mxu0 0
        %2404 = vmatpush1.bf16.msra.mxu0 0
        %2405 = vmatprep.subr.bf16.mxu0 0
        %2406 = vmatpush1.bf16.msra.mxu0 0
        %2407 = vmatprep.subr.bf16.mxu0 0
        %2408 = vmatpush1.bf16.msra.mxu0 0
        %2409 = vmatprep.subr.bf16.mxu0 0
        %2410 = vmatpush1.bf16.msra.mxu0 0
        %2411 = vmatprep.mubr.bf16.mxu0 0
        %2412 = vmatmul.mubr.bf16.gmra.mrb[0].mxu0 %v2368
        %v2413 = vpop.f32.mrb[0].mxu0
        %v2414 = vadd.f32 0.0, %v2413
        %v2415 = vpop.f32.mrb[0].mxu0
        %v2416 = vpop.f32.mrb[0].mxu0
        %v2417 = vadd.f32 0.0, %v2416
        %v2418 = vpop.f32.mrb[0].mxu0
        %2419 = vmatprep.mubr.bf16.mxu0 0
        %2420 = vmatmul.mubr.bf16.gmra.mrb[0].mxu0 %v2371
        %v2421 = vpop.f32.mrb[0].mxu0
        %v2422 = vadd.f32 0.0, %v2421
        %v2423 = vpop.f32.mrb[0].mxu0
        %v2424 = vpop.f32.mrb[0].mxu0
        %v2425 = vadd.f32 0.0, %v2424
        %v2426 = vpop.f32.mrb[0].mxu0
        %2427 = vmatprep.mubr.bf16.mxu0 0
        %2428 = vmatmul.mubr.bf16.gmra.mrb[0].mxu0 %v2374
        %v2429 = vpop.f32.mrb[0].mxu0
        %v2430 = vadd.f32 0.0, %v2429
        %v2431 = vpop.f32.mrb[0].mxu0
        %v2432 = vpop.f32.mrb[0].mxu0
        %v2433 = vadd.f32 0.0, %v2432
        %v2434 = vpop.f32.mrb[0].mxu0
        %2435 = vmatprep.mubr.bf16.mxu0 0
        %2436 = vmatmul.mubr.bf16.gmra.mrb[0].mxu0 %v2377
        %v2437 = vpop.f32.mrb[0].mxu0
        %v2438 = vadd.f32 0.0, %v2437
        %v2439 = vpop.f32.mrb[0].mxu0
        %v2440 = vpop.f32.mrb[0].mxu0
        %v2441 = vadd.f32 0.0, %v2440
        %v2442 = vpop.f32.mrb[0].mxu0
        %2443 = vdwg.mxu0
        %v2444 = vadd.f32 %v1759, %v2414
        %v2445 = vadd.f32 %v1762, %v2417
        %v2446 = vadd.f32 %v1767, %v2422
        %v2447 = vadd.f32 %v1770, %v2425
        %v2448 = vadd.f32 %v1775, %v2430
        %v2449 = vadd.f32 %v1778, %v2433
        %v2450 = vadd.f32 %v1783, %v2438
        %v2451 = vadd.f32 %v1786, %v2441
        %v2452 = vld [vmem:[%s5] sm:$0x1]
        %v2454 = vlaneseq
        %v2455 = vshrl.u32 %v2454, 7
        %v2456 = vsub.s32 0, %v2455
        %v2457 = vrot.slane %v2452, %v2456
        %v2459 = vadd.f32 %v2444, %v2457
        %v2460 = vadd.f32 %v2445, %v2457
        %v2461 = vadd.f32 %v2446, %v2457
        %v2462 = vadd.f32 %v2447, %v2457
        %v2463 = vadd.f32 %v2448, %v2457
        %v2464 = vadd.f32 %v2449, %v2457
        %v2465 = vadd.f32 %v2450, %v2457
        %v2466 = vadd.f32 %v2451, %v2457
        %2467 = vst [vmem:[%s245] sm:$0xff] %v2459
        %2468 = vst [vmem:[%s245 + $0x8] sm:$0xff] %v2460
        %2469 = vst [vmem:[%s245 + $0x10] sm:$0xff] %v2461
        %2470 = vst [vmem:[%s245 + $0x18] sm:$0xff] %v2462
        %2471 = vst [vmem:[%s245 + $0x20] sm:$0xff] %v2463
        %2472 = vst [vmem:[%s245 + $0x28] sm:$0xff] %v2464
        %2473 = vst [vmem:[%s245 + $0x30] sm:$0xff] %v2465
        %2474 = vst [vmem:[%s245 + $0x38] sm:$0xff] %v2466
        %s2475 = sand.u32 %s159, 1
        %s2476 = scalar_lea.sflag [#allocation4], %s2475
        %s2477 = sand.u32 %s159, 1
        %s2478 = smul.addr %s2477, 64
        %s2479 = scalar_lea.vmem [#allocation3], %s2478
        // Predicated region
        $region45: #{tpu_custom_call.1} parent=43 // pred_check
          %p2480 = pneg %p169
        $region46: #{tpu_custom_call.1} parent=43 // pred_check_branch
          %2482 = sbr.rel (%p2480) target = $region48
        $region47: #{tpu_custom_call.1} parent=43 // pred_region
          %s2483 = smul.u32 8, %s20
          %s2485 = ssub.s32 1024, 1024
          %2486 = vsyncadd %s2476, %s2485
          %s2487 = smul.addr %s2483, 128
          %s2488 = scalar_lea.hbm %s6, %s2487
          %s2489 = sshll.u32 %s2479, 4
          %s2490 = int_to_ptr.vmem [resolvable:$true] %s2489
          %2495 = dma.vmem_to_hbm [thread:$0]  %s2490, 1024, %s2488, %s2476, 128, 128, 8
        $region48: #{tpu_custom_call.1} parent=43 // pred_fallthru
          _
      $region44: #{tpu_custom_call.1} parent=5 // pred_fallthru
        _
      %p2496 = scmp.le.s32.totalorder 2, %s15
      // Predicated region
      $region49: #{tpu_custom_call.1} parent=5 // pred_check
        %p2497 = pneg %p2496
      $region50: #{tpu_custom_call.1} parent=5 // pred_check_branch
        %2499 = sbr.rel (%p2497) target = $region52
      $region51: #{tpu_custom_call.1} parent=5 // pred_region
        %s2500 = ssub.s32 %s15, 2
        // Predicated region
        $region53: #{tpu_custom_call.1} parent=51 // pred_check
          %p2501 = pneg %p175
        $region54: #{tpu_custom_call.1} parent=51 // pred_check_branch
          %2503 = sbr.rel (%p2501) target = $region56
        $region55: #{tpu_custom_call.1} parent=51 // pred_region
          %s2504 = sand.u32 %s160, 1
          %s2505 = scalar_lea.sflag [#allocation4], %s2504
          %s2506 = sand.u32 %s160, 1
          %s2507 = smul.addr %s2506, 64
          %s2508 = scalar_lea.vmem [#allocation3], %s2507
          %2509 = dma.done %s2505, 1024
        $region56: #{tpu_custom_call.1} parent=51 // pred_fallthru
          _
      $region52: #{tpu_custom_call.1} parent=5 // pred_fallthru
        _
    $region6: #{tpu_custom_call.1} parent=1 // loop_footer
      %s19 = sadd.s32 1, %s15
    $region7: #{tpu_custom_call.1} parent=1 // loop_footer_branch
      %14 = sbr.rel target = $region3
    $region8: #{tpu_custom_call.1} parent=1 // loop_exit
      _
    %2510 = vsyncpa [#allocation4], 1
    %s2511 = scalar_lea.sflag [#allocation4], 1
    %2512 = vsyncpa %s2511, 1

</llo_original>
